<compile_context>
chip_gen: v6e
topology: v6e:2x2x1
jax: 0.10.0
libtpu: 0.0.40
codegen_flags: <defaults>
</compile_context>

<pallas_src>
import functools

import jax
import jax.numpy as jnp
from jax.experimental import pallas as pl
from jax.experimental.pallas import tpu as pltpu

_VMEM = pl.BlockSpec(memory_space=pltpu.MemorySpace.VMEM)
_HIGHEST = jax.lax.Precision.HIGHEST


# ----------------------------------------------------------------------------
# Pallas kernels
# ----------------------------------------------------------------------------
def _dblock_kernel(x_ref, wg_ref, bg_ref, wh_ref, bh_ref, out_ref):
    """Packed DBlock: g = x@[W1|W2]+[b1|b2]; t = tanh(g_lo)*sigmoid(g_hi);
    out = t@[Wmu|Wls|0-pad] + [bmu|bls|0-pad]  (mu / logsigma packed along lanes,
    zero-padded to a lane-dense 128-wide output slab)."""
    x = x_ref[...]
    h = wg_ref.shape[1] // 2
    g = jnp.dot(x, wg_ref[...], preferred_element_type=jnp.float32,
                precision=_HIGHEST) + bg_ref[...]
    t = jnp.tanh(g[:, :h]) * jax.nn.sigmoid(g[:, h:])
    out = jnp.dot(t, wh_ref[...], preferred_element_type=jnp.float32,
                  precision=_HIGHEST) + bh_ref[...]
    out_ref[...] = out.astype(out_ref.dtype)


def _belief_kernel(b_ref,
                   wg2_ref, bg2_ref, wh2_ref, bh2_ref,
                   wg1b_ref, wg1z_ref, bg1_ref, wh1_ref, bh1_ref,
                   wj1_ref, wj2_ref, bj_ref,
                   out_ref, *, z_dim):
    """Fused l2_b2z DBlock -> l1_b2z DBlock -> joint_decoder (Linear+ReLU).

    Head/joint weights are zero-padded into disjoint lane ranges of one
    128-wide output slab:
        cols [0 : 2z]        = [z2_mu | z2_logsigma]
        cols [2z : 4z]       = [z1_mu | z1_logsigma]
        cols [4z : 4z+joint] = joint_pred
    so the final result is assembled with adds and stored lane-dense once.
    """
    f32 = jnp.float32
    b = b_ref[...]
    h = wg2_ref.shape[1] // 2
    z = z_dim

    # ---- l2_b2z: packed gate matmul (2*hidden = 128-lane intermediate) ----
    g2 = jnp.dot(b, wg2_ref[...], preferred_element_type=f32,
                 precision=_HIGHEST) + bg2_ref[...]
    t2 = jnp.tanh(g2[:, :h]) * jax.nn.sigmoid(g2[:, h:])
    # packed heads [Wmu|Wls], zero-padded to the full output slab (cols [0:2z])
    y2 = jnp.dot(t2, wh2_ref[...], preferred_element_type=f32,
                 precision=_HIGHEST) + bh2_ref[...]
    z2_mu = y2[:, 0:z]

    # ---- l1_b2z on [b, z2_mu]: split matmul, no concatenate, no HBM hop ----
    g1 = (jnp.dot(b, wg1b_ref[...], preferred_element_type=f32, precision=_HIGHEST)
          + jnp.dot(z2_mu, wg1z_ref[...], preferred_element_type=f32, precision=_HIGHEST)
          + bg1_ref[...])
    t1 = jnp.tanh(g1[:, :h]) * jax.nn.sigmoid(g1[:, h:])
    # packed heads padded into cols [2z:4z]
    y1 = jnp.dot(t1, wh1_ref[...], preferred_element_type=f32,
                 precision=_HIGHEST) + bh1_ref[...]
    z1_mu = y1[:, 2 * z:3 * z]

    # ---- joint_decoder ReLU(Linear([z1_mu, z2_mu])): split matmul,
    #      weights padded into cols [4z:4z+joint] (ReLU(0) = 0 elsewhere) ----
    yj = (jnp.dot(z1_mu, wj1_ref[...], preferred_element_type=f32, precision=_HIGHEST)
          + jnp.dot(z2_mu, wj2_ref[...], preferred_element_type=f32, precision=_HIGHEST)
          + bj_ref[...])
    yj = jnp.maximum(yj, 0.0)

    # disjoint lane ranges -> one add-assembled, unmasked 128-lane store.
    out_ref[...] = (y2 + y1 + yj).astype(out_ref.dtype)


# ----------------------------------------------------------------------------
# Wrappers
# ----------------------------------------------------------------------------
def dblock_forward(x, padded):
    """Standalone packed DBlock (pre-padded params from `prep_dblock_padded`).
    x: (B, d_in) f32 -> (mu, logsigma), each (B, d_out)."""
    B = x.shape[0]
    out_w = padded["wh"].shape[1]
    out = pl.pallas_call(
        _dblock_kernel,
        out_shape=jax.ShapeDtypeStruct((B, out_w), jnp.float32),
        in_specs=[_VMEM] * 5,
        out_specs=_VMEM,
    )(x, padded["wg"], padded["bg"], padded["wh"], padded["bh"])
    d = padded["d_out"]
    return out[:, :d], out[:, d:2 * d]


# ----------------------------------------------------------------------------
# Parameter construction (mirrors nn.Linear's U(-1/sqrt(in), +1/sqrt(in)))
# ----------------------------------------------------------------------------
def _linear_params(key, d_in, d_out):
    kw, kb = jax.random.split(key)
    bound = 1.0 / float(d_in) ** 0.5
    w = jax.random.uniform(kw, (d_in, d_out), jnp.float32, -bound, bound)
    b = jax.random.uniform(kb, (1, d_out), jnp.float32, -bound, bound)
    return w, b


def _init_dblock(key, d_in, hidden, d_out):
    """Packed DBlock params: wg=[W1|W2] (d_in, 2h), wh=[Wmu|Wls] (h, 2*d_out)."""
    k1, k2, k3, k4 = jax.random.split(key, 4)
    w1, b1 = _linear_params(k1, d_in, hidden)
    w2, b2 = _linear_params(k2, d_in, hidden)
    wmu, bmu = _linear_params(k3, hidden, d_out)
    wls, bls = _linear_params(k4, hidden, d_out)
    return dict(
        wg=jnp.concatenate([w1, w2], axis=1),
        bg=jnp.concatenate([b1, b2], axis=1),
        wh=jnp.concatenate([wmu, wls], axis=1),
        bh=jnp.concatenate([bmu, bls], axis=1),
        d_out=d_out,
    )


def _round_up(n, m):
    return ((n + m - 1) // m) * m


def _pad_cols(w, b, col_off, out_w):
    """Zero-pad weight columns (and bias) into a wider [*, out_w] slab at col_off."""
    wp = jnp.zeros((w.shape[0], out_w), jnp.float32).at[:, col_off:col_off + w.shape[1]].set(w)
    bp = jnp.zeros((1, out_w), jnp.float32).at[:, col_off:col_off + b.shape[1]].set(b)
    return wp, bp


def prep_dblock_padded(p):
    """One-time layout work for the standalone DBlock kernel: pad the packed
    head weights/bias to a 128-lane-multiple output slab (unmasked vst)."""
    out_w = _round_up(p["wh"].shape[1], 128)
    wh_p, bh_p = _pad_cols(p["wh"], p["bh"], 0, out_w)
    return dict(wg=p["wg"], bg=p["bg"], wh=wh_p, bh=bh_p, d_out=p["d_out"])


class TDVAEPallas:
    HIDDEN = 64  # DBlock hidden size from the PyTorch module

    def __init__(self, image_feat_dim, joint_dim, rnn_hidden_dims, rnn_taus,
                 b_dim, z_dim, key):
        self.image_feat_dim = image_feat_dim
        self.joint_dim = joint_dim
        self.rnn_hidden_dims = rnn_hidden_dims
        self.rnn_taus = rnn_taus
        self.b_dim = b_dim
        self.z_dim = z_dim

        H = self.HIDDEN
        keys = jax.random.split(key, 7)
        self.l2_b2z = _init_dblock(keys[0], b_dim, H, z_dim)
        self.l1_b2z = _init_dblock(keys[1], b_dim + z_dim, H, z_dim)
        self.l2_infer_z = _init_dblock(keys[2], b_dim + 2 * z_dim, H, z_dim)
        self.l1_infer_z = _init_dblock(keys[3], b_dim + 2 * z_dim + z_dim, H, z_dim)
        self.l2_trans_z = _init_dblock(keys[4], 2 * z_dim, H, z_dim)
        self.l1_trans_z = _init_dblock(keys[5], 2 * z_dim + z_dim, H, z_dim)
        wj, bj = _linear_params(keys[6], 2 * z_dim, joint_dim)
        self.joint_decoder = dict(w=wj, b=bj)

        # Pre-padded params for the standalone infer/trans DBlock kernel
        # (lane-dense 128-wide output slab; done once here, not per call).
        self.l2_infer_z_p = prep_dblock_padded(self.l2_infer_z)
        self.l1_infer_z_p = prep_dblock_padded(self.l1_infer_z)
        self.l2_trans_z_p = prep_dblock_padded(self.l2_trans_z)
        self.l1_trans_z_p = prep_dblock_padded(self.l1_trans_z)

        # --- one-time weight layout work for the fused belief kernel:
        #     pad heads/joint into disjoint columns of a 128-wide output slab,
        #     split the concatenated-input weights (no per-call wrapper plumbing).
        z = z_dim
        out_w = _round_up(4 * z + joint_dim, 128)
        wh2_p, bh2_p = _pad_cols(self.l2_b2z["wh"], self.l2_b2z["bh"], 0, out_w)
        wh1_p, bh1_p = _pad_cols(self.l1_b2z["wh"], self.l1_b2z["bh"], 2 * z, out_w)
        wj_p, bj_p = _pad_cols(wj, bj, 4 * z, out_w)
        self._out_w = out_w
        self._belief_args = (
            self.l2_b2z["wg"], self.l2_b2z["bg"], wh2_p, bh2_p,
            self.l1_b2z["wg"][:b_dim], self.l1_b2z["wg"][b_dim:], self.l1_b2z["bg"],
            wh1_p, bh1_p,
            wj_p[:z], wj_p[z:], bj_p,
        )
        # bind static z_dim once so pallas_call's trace cache keys stay stable
        self._belief_kernel = functools.partial(_belief_kernel, z_dim=z_dim)

    def belief_forward(self, b):
        """Fused belief -> hierarchical latent -> joint prediction path
        (l2_b2z -> l1_b2z -> joint_decoder) in a single pallas_call."""
        B = b.shape[0]
        z, jd = self.z_dim, self.joint_dim
        out = pl.pallas_call(
            self._belief_kernel,
            out_shape=jax.ShapeDtypeStruct((B, self._out_w), jnp.float32),
            in_specs=[_VMEM] * 13,
            out_specs=_VMEM,
        )(b, *self._belief_args)
        z2_mu = out[:, 0:z]
        z2_ls = out[:, z:2 * z]
        z1_mu = out[:, 2 * z:3 * z]
        z1_ls = out[:, 3 * z:4 * z]
        joint_pred = out[:, 4 * z:4 * z + jd]
        return z2_mu, z2_ls, z1_mu, z1_ls, joint_pred


# ----------------------------------------------------------------------------
# Pure-JAX references for verification
# ----------------------------------------------------------------------------
def _ref_dblock(x, p):
    h = p["wg"].shape[1] // 2
    g = jnp.dot(x, p["wg"], precision=_HIGHEST) + p["bg"]
    t = jnp.tanh(g[:, :h]) * jax.nn.sigmoid(g[:, h:])
    o = jnp.dot(t, p["wh"], precision=_HIGHEST) + p["bh"]
    d = p["d_out"]
    return o[:, :d], o[:, d:2 * d]


def _ref_belief_forward(model, b):
    z2_mu, z2_ls = _ref_dblock(b, model.l2_b2z)
    z1_mu, z1_ls = _ref_dblock(jnp.concatenate([b, z2_mu], axis=-1), model.l1_b2z)
    zcat = jnp.concatenate([z1_mu, z2_mu], axis=-1)
    joint_pred = jnp.maximum(
        jnp.dot(zcat, model.joint_decoder["w"], precision=_HIGHEST)
        + model.joint_decoder["b"], 0.0)
    return z2_mu, z2_ls, z1_mu, z1_ls, joint_pred


if __name__ == "__main__":
    key = jax.random.PRNGKey(0)
    kparams, kb = jax.random.split(key)

    # Small, consistent dims.
    image_feat_dim = 16
    joint_dim = 8
    rnn_hidden_dims = (32, 32, 32)
    rnn_taus = (2.0, 4.0, 8.0)
    b_dim = 32
    z_dim = 8
    batch = 8

    model = TDVAEPallas(image_feat_dim, joint_dim, rnn_hidden_dims, rnn_taus,
                        b_dim, z_dim, kparams)

    # Belief vector b (would be produced by the undefined MTRNNCell in the
    # original module).  layout: (batch, features).
    b = jax.random.normal(kb, (batch, b_dim), jnp.float32)

    outs = jax.block_until_ready(model.belief_forward(b))
    refs = _ref_belief_forward(model, b)
    for got, ref in zip(outs, refs):
        assert got.shape == ref.shape and got.dtype == ref.dtype
        assert jnp.allclose(got, ref, atol=1e-5, rtol=1e-5), "belief path mismatch vs reference"

    # Standalone packed-DBlock kernel (used for the infer/trans blocks).
    x_tr = jax.random.normal(jax.random.PRNGKey(1), (batch, 2 * z_dim), jnp.float32)
    mu, ls = jax.block_until_ready(dblock_forward(x_tr, model.l2_trans_z_p))
    mu_r, ls_r = _ref_dblock(x_tr, model.l2_trans_z)
    assert jnp.allclose(mu, mu_r, atol=1e-5, rtol=1e-5), "DBlock mu mismatch vs reference"
    assert jnp.allclose(ls, ls_r, atol=1e-5, rtol=1e-5), "DBlock logsigma mismatch vs reference"

    x_inf = jax.random.normal(jax.random.PRNGKey(2), (batch, b_dim + 2 * z_dim), jnp.float32)
    mu2, ls2 = jax.block_until_ready(dblock_forward(x_inf, model.l2_infer_z_p))
    mu2_r, ls2_r = _ref_dblock(x_inf, model.l2_infer_z)
    assert jnp.allclose(mu2, mu2_r, atol=1e-5, rtol=1e-5), "infer DBlock mu mismatch vs reference"
    assert jnp.allclose(ls2, ls2_r, atol=1e-5, rtol=1e-5), "infer DBlock logsigma mismatch vs reference"

    print("KERNEL_OK")
</pallas_src>

<mosaic_0001>
module attributes {stable_mosaic.version = 11 : i64} {
  func.func @_belief_kernel(%arg0: memref<8x32xf32, #tpu.memory_space<vmem>>, %arg1: memref<32x128xf32, #tpu.memory_space<vmem>>, %arg2: memref<1x128xf32, #tpu.memory_space<vmem>>, %arg3: memref<64x128xf32, #tpu.memory_space<vmem>>, %arg4: memref<1x128xf32, #tpu.memory_space<vmem>>, %arg5: memref<32x128xf32, #tpu.memory_space<vmem>>, %arg6: memref<8x128xf32, #tpu.memory_space<vmem>>, %arg7: memref<1x128xf32, #tpu.memory_space<vmem>>, %arg8: memref<64x128xf32, #tpu.memory_space<vmem>>, %arg9: memref<1x128xf32, #tpu.memory_space<vmem>>, %arg10: memref<8x128xf32, #tpu.memory_space<vmem>>, %arg11: memref<8x128xf32, #tpu.memory_space<vmem>>, %arg12: memref<1x128xf32, #tpu.memory_space<vmem>>, %arg13: memref<8x128xf32, #tpu.memory_space<vmem>>) attributes {dimension_semantics = [], scalar_prefetch = 0 : i64, scratch_operands = 0 : i64, tpu.core_type = #tpu.core_type<tc>} {
    %c0 = arith.constant 0 : index
    %c0_0 = arith.constant 0 : index
    %0 = vector.load %arg0[%c0, %c0_0] : memref<8x32xf32, #tpu.memory_space<vmem>>, vector<8x32xf32>
    %c0_1 = arith.constant 0 : index
    %c0_2 = arith.constant 0 : index
    %1 = vector.load %arg1[%c0_1, %c0_2] : memref<32x128xf32, #tpu.memory_space<vmem>>, vector<32x128xf32>
    %cst = arith.constant dense<0.000000e+00> : vector<8x128xf32>
    %2 = tpu.matmul %0, %1, %cst {dimension_numbers = #tpu.dot_dimension_numbers<[1], [0], [0], [1], [0, 0, 1, 1], [], []>, precision = #tpu.contract_precision<fp32>} : vector<8x32xf32>, vector<32x128xf32>, vector<8x128xf32> -> vector<8x128xf32>
    %c0_3 = arith.constant 0 : index
    %c0_4 = arith.constant 0 : index
    %3 = vector.load %arg2[%c0_3, %c0_4] : memref<1x128xf32, #tpu.memory_space<vmem>>, vector<1x128xf32>
    %4 = vector.broadcast %3 : vector<1x128xf32> to vector<8x128xf32>
    %5 = arith.addf %2, %4 : vector<8x128xf32>
    %6 = vector.extract_strided_slice %5 {offsets = [0, 0], sizes = [8, 64], strides = [1, 1]} : vector<8x128xf32> to vector<8x64xf32>
    %7 = math.tanh %6 : vector<8x64xf32>
    %8 = vector.extract_strided_slice %5 {offsets = [0, 64], sizes = [8, 64], strides = [1, 1]} : vector<8x128xf32> to vector<8x64xf32>
    %9 = arith.negf %8 : vector<8x64xf32>
    %10 = math.exp %9 : vector<8x64xf32>
    %cst_5 = arith.constant 1.000000e+00 : f32
    %11 = vector.broadcast %cst_5 : f32 to vector<8x64xf32>
    %12 = arith.addf %11, %10 : vector<8x64xf32>
    %13 = arith.divf %11, %12 : vector<8x64xf32>
    %14 = arith.mulf %7, %13 : vector<8x64xf32>
    %c0_6 = arith.constant 0 : index
    %c0_7 = arith.constant 0 : index
    %15 = vector.load %arg3[%c0_6, %c0_7] : memref<64x128xf32, #tpu.memory_space<vmem>>, vector<64x128xf32>
    %cst_8 = arith.constant dense<0.000000e+00> : vector<8x128xf32>
    %16 = tpu.matmul %14, %15, %cst_8 {dimension_numbers = #tpu.dot_dimension_numbers<[1], [0], [0], [1], [0, 0, 1, 1], [], []>, precision = #tpu.contract_precision<fp32>} : vector<8x64xf32>, vector<64x128xf32>, vector<8x128xf32> -> vector<8x128xf32>
    %c0_9 = arith.constant 0 : index
    %c0_10 = arith.constant 0 : index
    %17 = vector.load %arg4[%c0_9, %c0_10] : memref<1x128xf32, #tpu.memory_space<vmem>>, vector<1x128xf32>
    %18 = vector.broadcast %17 : vector<1x128xf32> to vector<8x128xf32>
    %19 = arith.addf %16, %18 : vector<8x128xf32>
    %20 = vector.extract_strided_slice %19 {offsets = [0, 0], sizes = [8, 8], strides = [1, 1]} : vector<8x128xf32> to vector<8x8xf32>
    %c0_11 = arith.constant 0 : index
    %c0_12 = arith.constant 0 : index
    %21 = vector.load %arg5[%c0_11, %c0_12] : memref<32x128xf32, #tpu.memory_space<vmem>>, vector<32x128xf32>
    %cst_13 = arith.constant dense<0.000000e+00> : vector<8x128xf32>
    %22 = tpu.matmul %0, %21, %cst_13 {dimension_numbers = #tpu.dot_dimension_numbers<[1], [0], [0], [1], [0, 0, 1, 1], [], []>, precision = #tpu.contract_precision<fp32>} : vector<8x32xf32>, vector<32x128xf32>, vector<8x128xf32> -> vector<8x128xf32>
    %c0_14 = arith.constant 0 : index
    %c0_15 = arith.constant 0 : index
    %23 = vector.load %arg6[%c0_14, %c0_15] : memref<8x128xf32, #tpu.memory_space<vmem>>, vector<8x128xf32>
    %cst_16 = arith.constant dense<0.000000e+00> : vector<8x128xf32>
    %24 = tpu.matmul %20, %23, %cst_16 {dimension_numbers = #tpu.dot_dimension_numbers<[1], [0], [0], [1], [0, 0, 1, 1], [], []>, precision = #tpu.contract_precision<fp32>} : vector<8x8xf32>, vector<8x128xf32>, vector<8x128xf32> -> vector<8x128xf32>
    %25 = arith.addf %22, %24 : vector<8x128xf32>
    %c0_17 = arith.constant 0 : index
    %c0_18 = arith.constant 0 : index
    %26 = vector.load %arg7[%c0_17, %c0_18] : memref<1x128xf32, #tpu.memory_space<vmem>>, vector<1x128xf32>
    %27 = vector.broadcast %26 : vector<1x128xf32> to vector<8x128xf32>
    %28 = arith.addf %25, %27 : vector<8x128xf32>
    %29 = vector.extract_strided_slice %28 {offsets = [0, 0], sizes = [8, 64], strides = [1, 1]} : vector<8x128xf32> to vector<8x64xf32>
    %30 = math.tanh %29 : vector<8x64xf32>
    %31 = vector.extract_strided_slice %28 {offsets = [0, 64], sizes = [8, 64], strides = [1, 1]} : vector<8x128xf32> to vector<8x64xf32>
    %32 = arith.negf %31 : vector<8x64xf32>
    %33 = math.exp %32 : vector<8x64xf32>
    %cst_19 = arith.constant 1.000000e+00 : f32
    %34 = vector.broadcast %cst_19 : f32 to vector<8x64xf32>
    %35 = arith.addf %34, %33 : vector<8x64xf32>
    %36 = arith.divf %34, %35 : vector<8x64xf32>
    %37 = arith.mulf %30, %36 : vector<8x64xf32>
    %c0_20 = arith.constant 0 : index
    %c0_21 = arith.constant 0 : index
    %38 = vector.load %arg8[%c0_20, %c0_21] : memref<64x128xf32, #tpu.memory_space<vmem>>, vector<64x128xf32>
    %cst_22 = arith.constant dense<0.000000e+00> : vector<8x128xf32>
    %39 = tpu.matmul %37, %38, %cst_22 {dimension_numbers = #tpu.dot_dimension_numbers<[1], [0], [0], [1], [0, 0, 1, 1], [], []>, precision = #tpu.contract_precision<fp32>} : vector<8x64xf32>, vector<64x128xf32>, vector<8x128xf32> -> vector<8x128xf32>
    %c0_23 = arith.constant 0 : index
    %c0_24 = arith.constant 0 : index
    %40 = vector.load %arg9[%c0_23, %c0_24] : memref<1x128xf32, #tpu.memory_space<vmem>>, vector<1x128xf32>
    %41 = vector.broadcast %40 : vector<1x128xf32> to vector<8x128xf32>
    %42 = arith.addf %39, %41 : vector<8x128xf32>
    %43 = vector.extract_strided_slice %42 {offsets = [0, 16], sizes = [8, 8], strides = [1, 1]} : vector<8x128xf32> to vector<8x8xf32>
    %c0_25 = arith.constant 0 : index
    %c0_26 = arith.constant 0 : index
    %44 = vector.load %arg10[%c0_25, %c0_26] : memref<8x128xf32, #tpu.memory_space<vmem>>, vector<8x128xf32>
    %cst_27 = arith.constant dense<0.000000e+00> : vector<8x128xf32>
    %45 = tpu.matmul %43, %44, %cst_27 {dimension_numbers = #tpu.dot_dimension_numbers<[1], [0], [0], [1], [0, 0, 1, 1], [], []>, precision = #tpu.contract_precision<fp32>} : vector<8x8xf32>, vector<8x128xf32>, vector<8x128xf32> -> vector<8x128xf32>
    %c0_28 = arith.constant 0 : index
    %c0_29 = arith.constant 0 : index
    %46 = vector.load %arg11[%c0_28, %c0_29] : memref<8x128xf32, #tpu.memory_space<vmem>>, vector<8x128xf32>
    %cst_30 = arith.constant dense<0.000000e+00> : vector<8x128xf32>
    %47 = tpu.matmul %20, %46, %cst_30 {dimension_numbers = #tpu.dot_dimension_numbers<[1], [0], [0], [1], [0, 0, 1, 1], [], []>, precision = #tpu.contract_precision<fp32>} : vector<8x8xf32>, vector<8x128xf32>, vector<8x128xf32> -> vector<8x128xf32>
    %48 = arith.addf %45, %47 : vector<8x128xf32>
    %c0_31 = arith.constant 0 : index
    %c0_32 = arith.constant 0 : index
    %49 = vector.load %arg12[%c0_31, %c0_32] : memref<1x128xf32, #tpu.memory_space<vmem>>, vector<1x128xf32>
    %50 = vector.broadcast %49 : vector<1x128xf32> to vector<8x128xf32>
    %51 = arith.addf %48, %50 : vector<8x128xf32>
    %cst_33 = arith.constant 0.000000e+00 : f32
    %52 = vector.broadcast %cst_33 : f32 to vector<8x128xf32>
    %53 = arith.maximumf %51, %52 : vector<8x128xf32>
    %54 = arith.addf %19, %42 : vector<8x128xf32>
    %55 = arith.addf %54, %53 : vector<8x128xf32>
    %c0_34 = arith.constant 0 : index
    %c0_35 = arith.constant 0 : index
    %56 = vector.load %arg13[%c0_34, %c0_35] : memref<8x128xf32, #tpu.memory_space<vmem>>, vector<8x128xf32>
    tpu.vector_store %arg13[%c0_34, %c0_35], %55 {strides = array<i32>} : memref<8x128xf32, #tpu.memory_space<vmem>>, vector<8x128xf32>,
    return
  }
}

</mosaic_0001>

<llo_original>
// kernel: tpu_custom_call.1
$region0: #{tpu_custom_call.1}
  #allocation0 [shape = 'u32[]', space=smem, size = 0x4, offset = 0x4, fixed_abs, tag = 'smem constant byte address 0x4 - core index']
  #allocation1 [shape = 'u32[144,128]{1,0:T(1,128)}', space=vmem, size = 0x12000, scoped, tag = 'internal scratch']
  %s0 = inlined_call_operand.hbm [shape: f32[8,32], index: 0, kind: input, shape index: {}]
  %s1 = inlined_call_operand.hbm [shape: f32[32,128], index: 1, kind: input, shape index: {}]
  %s2 = inlined_call_operand.hbm [shape: f32[1,128], index: 2, kind: input, shape index: {}]
  %s3 = inlined_call_operand.hbm [shape: f32[64,128], index: 3, kind: input, shape index: {}]
  %s4 = inlined_call_operand.hbm [shape: f32[1,128], index: 4, kind: input, shape index: {}]
  %s5 = inlined_call_operand.hbm [shape: f32[32,128], index: 5, kind: input, shape index: {}]
  %s6 = inlined_call_operand.vmem [shape: f32[8,128], index: 6, kind: input, shape index: {}]
  %s7 = inlined_call_operand.hbm [shape: f32[1,128], index: 7, kind: input, shape index: {}]
  %s8 = inlined_call_operand.hbm [shape: f32[64,128], index: 8, kind: input, shape index: {}]
  %s9 = inlined_call_operand.hbm [shape: f32[1,128], index: 9, kind: input, shape index: {}]
  %s10 = inlined_call_operand.vmem [shape: f32[8,128], index: 10, kind: input, shape index: {}]
  %s11 = inlined_call_operand.hbm [shape: f32[8,128], index: 11, kind: input, shape index: {}]
  %s12 = inlined_call_operand.vmem [shape: f32[1,128], index: 12, kind: input, shape index: {}]
  %s13 = inlined_call_operand.hbm [shape: f32[8,128], index: 13, kind: output, shape index: {}]
  %s14 = sld [smem:[#allocation0]]
  $region102: #{tpu_custom_call.1} parent=0
    _
  %s16 = ssub.s32 1, %s14
  %s17 = scalar_select 0, %s16, %s14
  $region1: #{tpu_custom_call.1} parent=0
    #allocation2 [shape = 'u8[4096]{0}', space=vmem, size = 0x1000, scoped, tag = 'input window, operand 0, single buffered']
    #allocation3 [shape = 's32[1]{0}', space=sflag, size = 0x4, scoped, tag = 'scoped memory for tpu_custom_call.1']
    #allocation4 [shape = 's32[1]{0}', space=sflag, size = 0x4, scoped, tag = 'scoped memory for tpu_custom_call.1']
    #allocation5 [shape = 'u8[16384]{0}', space=vmem, size = 0x4000, scoped, tag = 'input window, operand 1, single buffered']
    #allocation6 [shape = 's32[1]{0}', space=sflag, size = 0x4, scoped, tag = 'scoped memory for tpu_custom_call.1']
    #allocation7 [shape = 'u8[512]{0}', space=vmem, size = 0x400, scoped, tag = 'input window, operand 2, single buffered']
    #allocation8 [shape = 'u8[32768]{0}', space=vmem, size = 0x8000, scoped, tag = 'input window, operand 3, single buffered']
    #allocation9 [shape = 's32[1]{0}', space=sflag, size = 0x4, scoped, tag = 'scoped memory for tpu_custom_call.1']
    #allocation10 [shape = 'u8[512]{0}', space=vmem, size = 0x400, scoped, tag = 'input window, operand 4, single buffered']
    #allocation11 [shape = 'u8[16384]{0}', space=vmem, size = 0x4000, scoped, tag = 'input window, operand 5, single buffered']
    #allocation12 [shape = 's32[1]{0}', space=sflag, size = 0x4, scoped, tag = 'scoped memory for tpu_custom_call.1']
    #allocation13 [shape = 'u8[512]{0}', space=vmem, size = 0x400, scoped, tag = 'input window, operand 7, single buffered']
    #allocation14 [shape = 'u8[32768]{0}', space=vmem, size = 0x8000, scoped, tag = 'input window, operand 8, single buffered']
    #allocation15 [shape = 's32[1]{0}', space=sflag, size = 0x4, scoped, tag = 'scoped memory for tpu_custom_call.1']
    #allocation16 [shape = 'u8[512]{0}', space=vmem, size = 0x400, scoped, tag = 'input window, operand 9, single buffered']
    #allocation17 [shape = 'u8[4096]{0}', space=vmem, size = 0x1000, scoped, tag = 'input window, operand 11, single buffered']
    #allocation18 [shape = 's32[1]{0}', space=sflag, size = 0x4, scoped, tag = 'scoped memory for tpu_custom_call.1']
    #allocation19 [shape = 'u8[4096]{0}', space=vmem, size = 0x1000, scoped, tag = 'output window, operand 0, single buffered']
    %18 = vsyncpa [#allocation3], 0
    %19 = vsyncpa [#allocation6], 0
    %20 = vsyncpa [#allocation9], 0
    %21 = vsyncpa [#allocation12], 0
    %22 = vsyncpa [#allocation15], 0
    %23 = vsyncpa [#allocation18], 0
    %24 = vsyncpa [#allocation4], 0
    // Predicated region
    $region2: #{tpu_custom_call.1} parent=1 // pred_check
      _
    $region3: #{tpu_custom_call.1} parent=1 // pred_check_branch
      %26 = sbr.rel (0) target = $region5
    $region4: #{tpu_custom_call.1} parent=1 // pred_region
      %s28 = ssub.s32 128, 128
      %29 = vsyncadd [#allocation3], %s28
      %s31 = sshll.u32 [#allocation2], 4
      %s32 = int_to_ptr.vmem [resolvable:$true] %s31
      %34 = dma.hbm_to_vmem [thread:$0]  %s0, 128, %s32, [#allocation3]
    $region5: #{tpu_custom_call.1} parent=1 // pred_fallthru
      _
    // Predicated region
    $region6: #{tpu_custom_call.1} parent=1 // pred_check
      _
    $region7: #{tpu_custom_call.1} parent=1 // pred_check_branch
      %36 = sbr.rel (0) target = $region9
    $region8: #{tpu_custom_call.1} parent=1 // pred_region
      %s38 = ssub.s32 512, 512
      %39 = vsyncadd [#allocation6], %s38
      %s40 = sshll.u32 [#allocation5], 4
      %s41 = int_to_ptr.vmem [resolvable:$true] %s40
      %46 = dma.hbm_to_vmem [thread:$0]  %s1, 512, %s41, [#allocation6], 128, 128, 8
    $region9: #{tpu_custom_call.1} parent=1 // pred_fallthru
      _
    // Predicated region
    $region10: #{tpu_custom_call.1} parent=1 // pred_check
      _
    $region11: #{tpu_custom_call.1} parent=1 // pred_check_branch
      %48 = sbr.rel (0) target = $region13
    $region12: #{tpu_custom_call.1} parent=1 // pred_region
      %s50 = ssub.s32 16, 16
      %51 = vsyncadd [#allocation6], %s50
      %s53 = sshll.u32 [#allocation7], 4
      %s54 = int_to_ptr.vmem [resolvable:$true] %s53
      %56 = dma.hbm_to_vmem [thread:$0]  %s2, 16, %s54, [#allocation6]
    $region13: #{tpu_custom_call.1} parent=1 // pred_fallthru
      _
    // Predicated region
    $region14: #{tpu_custom_call.1} parent=1 // pred_check
      _
    $region15: #{tpu_custom_call.1} parent=1 // pred_check_branch
      %58 = sbr.rel (0) target = $region17
    $region16: #{tpu_custom_call.1} parent=1 // pred_region
      %s60 = ssub.s32 1024, 1024
      %61 = vsyncadd [#allocation9], %s60
      %s62 = sshll.u32 [#allocation8], 4
      %s63 = int_to_ptr.vmem [resolvable:$true] %s62
      %68 = dma.hbm_to_vmem [thread:$0]  %s3, 1024, %s63, [#allocation9], 128, 128, 8
    $region17: #{tpu_custom_call.1} parent=1 // pred_fallthru
      _
    // Predicated region
    $region18: #{tpu_custom_call.1} parent=1 // pred_check
      _
    $region19: #{tpu_custom_call.1} parent=1 // pred_check_branch
      %70 = sbr.rel (0) target = $region21
    $region20: #{tpu_custom_call.1} parent=1 // pred_region
      %s72 = ssub.s32 16, 16
      %73 = vsyncadd [#allocation9], %s72
      %s75 = sshll.u32 [#allocation10], 4
      %s76 = int_to_ptr.vmem [resolvable:$true] %s75
      %78 = dma.hbm_to_vmem [thread:$0]  %s4, 16, %s76, [#allocation9]
    $region21: #{tpu_custom_call.1} parent=1 // pred_fallthru
      _
    // Predicated region
    $region22: #{tpu_custom_call.1} parent=1 // pred_check
      _
    $region23: #{tpu_custom_call.1} parent=1 // pred_check_branch
      %80 = sbr.rel (0) target = $region25
    $region24: #{tpu_custom_call.1} parent=1 // pred_region
      %s82 = ssub.s32 512, 512
      %83 = vsyncadd [#allocation12], %s82
      %s84 = sshll.u32 [#allocation11], 4
      %s85 = int_to_ptr.vmem [resolvable:$true] %s84
      %90 = dma.hbm_to_vmem [thread:$0]  %s5, 512, %s85, [#allocation12], 128, 128, 8
    $region25: #{tpu_custom_call.1} parent=1 // pred_fallthru
      _
    // Predicated region
    $region26: #{tpu_custom_call.1} parent=1 // pred_check
      _
    $region27: #{tpu_custom_call.1} parent=1 // pred_check_branch
      %92 = sbr.rel (0) target = $region29
    $region28: #{tpu_custom_call.1} parent=1 // pred_region
      _
    $region29: #{tpu_custom_call.1} parent=1 // pred_fallthru
      _
    // Predicated region
    $region30: #{tpu_custom_call.1} parent=1 // pred_check
      _
    $region31: #{tpu_custom_call.1} parent=1 // pred_check_branch
      %94 = sbr.rel (0) target = $region33
    $region32: #{tpu_custom_call.1} parent=1 // pred_region
      %s96 = ssub.s32 16, 16
      %97 = vsyncadd [#allocation12], %s96
      %s99 = sshll.u32 [#allocation13], 4
      %s100 = int_to_ptr.vmem [resolvable:$true] %s99
      %102 = dma.hbm_to_vmem [thread:$0]  %s7, 16, %s100, [#allocation12]
    $region33: #{tpu_custom_call.1} parent=1 // pred_fallthru
      _
    // Predicated region
    $region34: #{tpu_custom_call.1} parent=1 // pred_check
      _
    $region35: #{tpu_custom_call.1} parent=1 // pred_check_branch
      %104 = sbr.rel (0) target = $region37
    $region36: #{tpu_custom_call.1} parent=1 // pred_region
      %s106 = ssub.s32 1024, 1024
      %107 = vsyncadd [#allocation15], %s106
      %s108 = sshll.u32 [#allocation14], 4
      %s109 = int_to_ptr.vmem [resolvable:$true] %s108
      %114 = dma.hbm_to_vmem [thread:$0]  %s8, 1024, %s109, [#allocation15], 128, 128, 8
    $region37: #{tpu_custom_call.1} parent=1 // pred_fallthru
      _
    // Predicated region
    $region38: #{tpu_custom_call.1} parent=1 // pred_check
      _
    $region39: #{tpu_custom_call.1} parent=1 // pred_check_branch
      %116 = sbr.rel (0) target = $region41
    $region40: #{tpu_custom_call.1} parent=1 // pred_region
      %s118 = ssub.s32 16, 16
      %119 = vsyncadd [#allocation15], %s118
      %s121 = sshll.u32 [#allocation16], 4
      %s122 = int_to_ptr.vmem [resolvable:$true] %s121
      %124 = dma.hbm_to_vmem [thread:$0]  %s9, 16, %s122, [#allocation15]
    $region41: #{tpu_custom_call.1} parent=1 // pred_fallthru
      _
    // Predicated region
    $region42: #{tpu_custom_call.1} parent=1 // pred_check
      _
    $region43: #{tpu_custom_call.1} parent=1 // pred_check_branch
      %126 = sbr.rel (0) target = $region45
    $region44: #{tpu_custom_call.1} parent=1 // pred_region
      _
    $region45: #{tpu_custom_call.1} parent=1 // pred_fallthru
      _
    // Predicated region
    $region46: #{tpu_custom_call.1} parent=1 // pred_check
      _
    $region47: #{tpu_custom_call.1} parent=1 // pred_check_branch
      %128 = sbr.rel (0) target = $region49
    $region48: #{tpu_custom_call.1} parent=1 // pred_region
      %s130 = ssub.s32 128, 128
      %131 = vsyncadd [#allocation18], %s130
      %s133 = sshll.u32 [#allocation17], 4
      %s134 = int_to_ptr.vmem [resolvable:$true] %s133
      %136 = dma.hbm_to_vmem [thread:$0]  %s11, 128, %s134, [#allocation18]
    $region49: #{tpu_custom_call.1} parent=1 // pred_fallthru
      _
    // Predicated region
    $region50: #{tpu_custom_call.1} parent=1 // pred_check
      _
    $region51: #{tpu_custom_call.1} parent=1 // pred_check_branch
      %138 = sbr.rel (0) target = $region53
    $region52: #{tpu_custom_call.1} parent=1 // pred_region
      _
    $region53: #{tpu_custom_call.1} parent=1 // pred_fallthru
      _
    // Predicated region
    $region54: #{tpu_custom_call.1} parent=1 // pred_check
      _
    $region55: #{tpu_custom_call.1} parent=1 // pred_check_branch
      %140 = sbr.rel (0) target = $region57
    $region56: #{tpu_custom_call.1} parent=1 // pred_region
      %141 = dma.done [#allocation3], 128
    $region57: #{tpu_custom_call.1} parent=1 // pred_fallthru
      _
    // Predicated region
    $region58: #{tpu_custom_call.1} parent=1 // pred_check
      _
    $region59: #{tpu_custom_call.1} parent=1 // pred_check_branch
      %143 = sbr.rel (0) target = $region61
    $region60: #{tpu_custom_call.1} parent=1 // pred_region
      %144 = dma.done [#allocation6], 512
    $region61: #{tpu_custom_call.1} parent=1 // pred_fallthru
      _
    // Predicated region
    $region62: #{tpu_custom_call.1} parent=1 // pred_check
      _
    $region63: #{tpu_custom_call.1} parent=1 // pred_check_branch
      %146 = sbr.rel (0) target = $region65
    $region64: #{tpu_custom_call.1} parent=1 // pred_region
      %147 = dma.done [#allocation6], 16
    $region65: #{tpu_custom_call.1} parent=1 // pred_fallthru
      _
    // Predicated region
    $region66: #{tpu_custom_call.1} parent=1 // pred_check
      _
    $region67: #{tpu_custom_call.1} parent=1 // pred_check_branch
      %149 = sbr.rel (0) target = $region69
    $region68: #{tpu_custom_call.1} parent=1 // pred_region
      %150 = dma.done [#allocation9], 1024
    $region69: #{tpu_custom_call.1} parent=1 // pred_fallthru
      _
    // Predicated region
    $region70: #{tpu_custom_call.1} parent=1 // pred_check
      _
    $region71: #{tpu_custom_call.1} parent=1 // pred_check_branch
      %152 = sbr.rel (0) target = $region73
    $region72: #{tpu_custom_call.1} parent=1 // pred_region
      %153 = dma.done [#allocation9], 16
    $region73: #{tpu_custom_call.1} parent=1 // pred_fallthru
      _
    // Predicated region
    $region74: #{tpu_custom_call.1} parent=1 // pred_check
      _
    $region75: #{tpu_custom_call.1} parent=1 // pred_check_branch
      %155 = sbr.rel (0) target = $region77
    $region76: #{tpu_custom_call.1} parent=1 // pred_region
      %156 = dma.done [#allocation12], 512
    $region77: #{tpu_custom_call.1} parent=1 // pred_fallthru
      _
    // Predicated region
    $region78: #{tpu_custom_call.1} parent=1 // pred_check
      _
    $region79: #{tpu_custom_call.1} parent=1 // pred_check_branch
      %158 = sbr.rel (0) target = $region81
    $region80: #{tpu_custom_call.1} parent=1 // pred_region
      %159 = dma.done [#allocation12], 16
    $region81: #{tpu_custom_call.1} parent=1 // pred_fallthru
      _
    // Predicated region
    $region82: #{tpu_custom_call.1} parent=1 // pred_check
      _
    $region83: #{tpu_custom_call.1} parent=1 // pred_check_branch
      %161 = sbr.rel (0) target = $region85
    $region84: #{tpu_custom_call.1} parent=1 // pred_region
      %162 = dma.done [#allocation15], 1024
    $region85: #{tpu_custom_call.1} parent=1 // pred_fallthru
      _
    // Predicated region
    $region86: #{tpu_custom_call.1} parent=1 // pred_check
      _
    $region87: #{tpu_custom_call.1} parent=1 // pred_check_branch
      %164 = sbr.rel (0) target = $region89
    $region88: #{tpu_custom_call.1} parent=1 // pred_region
      %165 = dma.done [#allocation15], 16
    $region89: #{tpu_custom_call.1} parent=1 // pred_fallthru
      _
    // Predicated region
    $region90: #{tpu_custom_call.1} parent=1 // pred_check
      _
    $region91: #{tpu_custom_call.1} parent=1 // pred_check_branch
      %167 = sbr.rel (0) target = $region93
    $region92: #{tpu_custom_call.1} parent=1 // pred_region
      %168 = dma.done [#allocation18], 128
    $region93: #{tpu_custom_call.1} parent=1 // pred_fallthru
      _
    %v169 = vld [vmem:[#allocation2] sm:$0xff]
    %v170 = vld [vmem:[#allocation5] sm:$0xff]
    %v171 = vld [vmem:[#allocation5 + $0x8] sm:$0xff]
    %v172 = vld [vmem:[#allocation5 + $0x10] sm:$0xff]
    %v173 = vld [vmem:[#allocation5 + $0x18] sm:$0xff]
    %v174 = vld [vmem:[#allocation7] sm:$0x1]
    %v176 = vlaneseq
    %v177 = vshrl.u32 %v176, 7
    %v178 = vsub.s32 0, %v177
    %v179 = vrot.slane %v174, %v178
    %vm181 = vcmask 261120
    %v183 = vsel %vm181, %v169, 0
    %185 = vmatprep.subr.mxu0 0.0
    %186 = vmatpush1.msra.mxu0 0.0
    %187 = vmatprep.subr.mxu0 0.0
    %188 = vmatpush1.msra.mxu0 0.0
    %189 = vmatprep.subr.mxu0 0.0
    %190 = vmatpush1.msra.mxu0 0.0
    %191 = vmatprep.subr.mxu0 0.0
    %192 = vmatpush1.msra.mxu0 0.0
    %193 = vmatprep.subr.mxu0 0.0
    %194 = vmatpush1.msra.mxu0 0.0
    %195 = vmatprep.subr.mxu0 0.0
    %196 = vmatpush1.msra.mxu0 0.0
    %197 = vmatprep.subr.mxu0 0.0
    %198 = vmatpush1.msra.mxu0 0.0
    %199 = vmatprep.subr.mxu0 0.0
    %200 = vmatpush1.msra.mxu0 0.0
    %201 = vmatprep.subr.mxu0 0.0
    %202 = vmatpush1.msra.mxu0 0.0
    %203 = vmatprep.subr.mxu0 0.0
    %204 = vmatpush1.msra.mxu0 0.0
    %205 = vmatprep.subr.mxu0 0.0
    %206 = vmatpush1.msra.mxu0 0.0
    %207 = vmatprep.subr.mxu0 0.0
    %208 = vmatpush1.msra.mxu0 0.0
    %209 = vmatprep.subr.mxu0 0.0
    %v210 = vand.u32 %v173, 4294901760
    %211 = vmatpush1.msra.mxu0 %v210
    %212 = vmatprep.subr.mxu0 0.0
    %v213 = vand.u32 %v172, 4294901760
    %214 = vmatpush1.msra.mxu0 %v213
    %215 = vmatprep.subr.mxu0 0.0
    %v216 = vand.u32 %v171, 4294901760
    %217 = vmatpush1.msra.mxu0 %v216
    %218 = vmatprep.subr.mxu0 0.0
    %v219 = vand.u32 %v170, 4294901760
    %220 = vmatpush1.msra.mxu0 %v219
    %221 = vmatprep.subr.mxu0 0.0
    %222 = vmatpush2.msra.mxu0 0.0
    %223 = vmatprep.subr.mxu0 0.0
    %224 = vmatpush2.msra.mxu0 0.0
    %225 = vmatprep.subr.mxu0 0.0
    %226 = vmatpush2.msra.mxu0 0.0
    %227 = vmatprep.subr.mxu0 0.0
    %228 = vmatpush2.msra.mxu0 0.0
    %229 = vmatprep.subr.mxu0 0.0
    %230 = vmatpush2.msra.mxu0 0.0
    %231 = vmatprep.subr.mxu0 0.0
    %232 = vmatpush2.msra.mxu0 0.0
    %233 = vmatprep.subr.mxu0 0.0
    %234 = vmatpush2.msra.mxu0 0.0
    %235 = vmatprep.subr.mxu0 0.0
    %236 = vmatpush2.msra.mxu0 0.0
    %237 = vmatprep.subr.mxu0 0.0
    %238 = vmatpush2.msra.mxu0 0.0
    %239 = vmatprep.subr.mxu0 0.0
    %240 = vmatpush2.msra.mxu0 0.0
    %241 = vmatprep.subr.mxu0 0.0
    %242 = vmatpush2.msra.mxu0 0.0
    %243 = vmatprep.subr.mxu0 0.0
    %244 = vmatpush2.msra.mxu0 0.0
    %245 = vmatprep.subr.mxu0 0.0
    %246 = vmatpush2.msra.mxu0 0.0
    %247 = vmatprep.subr.mxu0 0.0
    %248 = vmatpush2.msra.mxu0 0.0
    %249 = vmatprep.subr.mxu0 0.0
    %250 = vmatpush2.msra.mxu0 0.0
    %251 = vmatprep.subr.mxu0 0.0
    %252 = vmatpush2.msra.mxu0 0.0
    %253 = vmatprep.mubr.f32.mxu0 0.0
    %v254 = vand.u32 %v183, 4294901760
    %v255 = vsub.f32 %v183, %v254
    %v256 = vand.u32 %v255, 4294901760
    %v257 = vsub.f32 %v255, %v256
    %v258 = vand.u32 %v257, 4294901760
    %259 = vmatmul.mubr.f32.gmra.mxu0 %v258
    %v260 = vpop.f32.mrf.mxu0
    %v261 = vadd.f32 %v179, %v260
    %v262 = vpop.f32.mrf.mxu0
    %263 = vdwg.mxu0
    %264 = vmatprep.subr.mxu0 0.0
    %265 = vmatpush1.msra.mxu0 0.0
    %266 = vmatprep.subr.mxu0 0.0
    %267 = vmatpush1.msra.mxu0 0.0
    %268 = vmatprep.subr.mxu0 0.0
    %269 = vmatpush1.msra.mxu0 0.0
    %270 = vmatprep.subr.mxu0 0.0
    %271 = vmatpush1.msra.mxu0 0.0
    %272 = vmatprep.subr.mxu0 0.0
    %273 = vmatpush1.msra.mxu0 0.0
    %274 = vmatprep.subr.mxu0 0.0
    %275 = vmatpush1.msra.mxu0 0.0
    %276 = vmatprep.subr.mxu0 0.0
    %277 = vmatpush1.msra.mxu0 0.0
    %278 = vmatprep.subr.mxu0 0.0
    %279 = vmatpush1.msra.mxu0 0.0
    %280 = vmatprep.subr.mxu0 0.0
    %281 = vmatpush1.msra.mxu0 0.0
    %282 = vmatprep.subr.mxu0 0.0
    %283 = vmatpush1.msra.mxu0 0.0
    %284 = vmatprep.subr.mxu0 0.0
    %285 = vmatpush1.msra.mxu0 0.0
    %286 = vmatprep.subr.mxu0 0.0
    %287 = vmatpush1.msra.mxu0 0.0
    %288 = vmatprep.subr.mxu0 0.0
    %v289 = vand.u32 %v173, 4294901760
    %v290 = vsub.f32 %v173, %v289
    %v291 = vand.u32 %v290, 4294901760
    %v292 = vsub.f32 %v290, %v291
    %v293 = vand.u32 %v292, 4294901760
    %294 = vmatpush1.msra.mxu0 %v293
    %295 = vmatprep.subr.mxu0 0.0
    %v296 = vand.u32 %v172, 4294901760
    %v297 = vsub.f32 %v172, %v296
    %v298 = vand.u32 %v297, 4294901760
    %v299 = vsub.f32 %v297, %v298
    %v300 = vand.u32 %v299, 4294901760
    %301 = vmatpush1.msra.mxu0 %v300
    %302 = vmatprep.subr.mxu0 0.0
    %v303 = vand.u32 %v171, 4294901760
    %v304 = vsub.f32 %v171, %v303
    %v305 = vand.u32 %v304, 4294901760
    %v306 = vsub.f32 %v304, %v305
    %v307 = vand.u32 %v306, 4294901760
    %308 = vmatpush1.msra.mxu0 %v307
    %309 = vmatprep.subr.mxu0 0.0
    %v310 = vand.u32 %v170, 4294901760
    %v311 = vsub.f32 %v170, %v310
    %v312 = vand.u32 %v311, 4294901760
    %v313 = vsub.f32 %v311, %v312
    %v314 = vand.u32 %v313, 4294901760
    %315 = vmatpush1.msra.mxu0 %v314
    %316 = vmatprep.subr.mxu0 0.0
    %317 = vmatpush2.msra.mxu0 0.0
    %318 = vmatprep.subr.mxu0 0.0
    %319 = vmatpush2.msra.mxu0 0.0
    %320 = vmatprep.subr.mxu0 0.0
    %321 = vmatpush2.msra.mxu0 0.0
    %322 = vmatprep.subr.mxu0 0.0
    %323 = vmatpush2.msra.mxu0 0.0
    %324 = vmatprep.subr.mxu0 0.0
    %325 = vmatpush2.msra.mxu0 0.0
    %326 = vmatprep.subr.mxu0 0.0
    %327 = vmatpush2.msra.mxu0 0.0
    %328 = vmatprep.subr.mxu0 0.0
    %329 = vmatpush2.msra.mxu0 0.0
    %330 = vmatprep.subr.mxu0 0.0
    %331 = vmatpush2.msra.mxu0 0.0
    %332 = vmatprep.subr.mxu0 0.0
    %333 = vmatpush2.msra.mxu0 0.0
    %334 = vmatprep.subr.mxu0 0.0
    %335 = vmatpush2.msra.mxu0 0.0
    %336 = vmatprep.subr.mxu0 0.0
    %337 = vmatpush2.msra.mxu0 0.0
    %338 = vmatprep.subr.mxu0 0.0
    %339 = vmatpush2.msra.mxu0 0.0
    %340 = vmatprep.subr.mxu0 0.0
    %341 = vmatpush2.msra.mxu0 0.0
    %342 = vmatprep.subr.mxu0 0.0
    %343 = vmatpush2.msra.mxu0 0.0
    %344 = vmatprep.subr.mxu0 0.0
    %345 = vmatpush2.msra.mxu0 0.0
    %346 = vmatprep.subr.mxu0 0.0
    %347 = vmatpush2.msra.mxu0 0.0
    %348 = vmatprep.mubr.f32.mxu0 0.0
    %v349 = vand.u32 %v183, 4294901760
    %350 = vmatmul.mubr.f32.gmra.mxu0 %v349
    %v351 = vpop.f32.mrf.mxu0
    %v352 = vadd.f32 %v261, %v351
    %v353 = vpop.f32.mrf.mxu0
    %354 = vdwg.mxu0
    %355 = vmatprep.subr.mxu0 0.0
    %356 = vmatpush1.msra.mxu0 0.0
    %357 = vmatprep.subr.mxu0 0.0
    %358 = vmatpush1.msra.mxu0 0.0
    %359 = vmatprep.subr.mxu0 0.0
    %360 = vmatpush1.msra.mxu0 0.0
    %361 = vmatprep.subr.mxu0 0.0
    %362 = vmatpush1.msra.mxu0 0.0
    %363 = vmatprep.subr.mxu0 0.0
    %364 = vmatpush1.msra.mxu0 0.0
    %365 = vmatprep.subr.mxu0 0.0
    %366 = vmatpush1.msra.mxu0 0.0
    %367 = vmatprep.subr.mxu0 0.0
    %368 = vmatpush1.msra.mxu0 0.0
    %369 = vmatprep.subr.mxu0 0.0
    %370 = vmatpush1.msra.mxu0 0.0
    %371 = vmatprep.subr.mxu0 0.0
    %372 = vmatpush1.msra.mxu0 0.0
    %373 = vmatprep.subr.mxu0 0.0
    %374 = vmatpush1.msra.mxu0 0.0
    %375 = vmatprep.subr.mxu0 0.0
    %376 = vmatpush1.msra.mxu0 0.0
    %377 = vmatprep.subr.mxu0 0.0
    %378 = vmatpush1.msra.mxu0 0.0
    %379 = vmatprep.subr.mxu0 0.0
    %v380 = vand.u32 %v173, 4294901760
    %v381 = vsub.f32 %v173, %v380
    %382 = vmatpush1.msra.mxu0 %v381
    %383 = vmatprep.subr.mxu0 0.0
    %v384 = vand.u32 %v172, 4294901760
    %v385 = vsub.f32 %v172, %v384
    %386 = vmatpush1.msra.mxu0 %v385
    %387 = vmatprep.subr.mxu0 0.0
    %v388 = vand.u32 %v171, 4294901760
    %v389 = vsub.f32 %v171, %v388
    %390 = vmatpush1.msra.mxu0 %v389
    %391 = vmatprep.subr.mxu0 0.0
    %v392 = vand.u32 %v170, 4294901760
    %v393 = vsub.f32 %v170, %v392
    %394 = vmatpush1.msra.mxu0 %v393
    %395 = vmatprep.subr.mxu0 0.0
    %396 = vmatpush2.msra.mxu0 0.0
    %397 = vmatprep.subr.mxu0 0.0
    %398 = vmatpush2.msra.mxu0 0.0
    %399 = vmatprep.subr.mxu0 0.0
    %400 = vmatpush2.msra.mxu0 0.0
    %401 = vmatprep.subr.mxu0 0.0
    %402 = vmatpush2.msra.mxu0 0.0
    %403 = vmatprep.subr.mxu0 0.0
    %404 = vmatpush2.msra.mxu0 0.0
    %405 = vmatprep.subr.mxu0 0.0
    %406 = vmatpush2.msra.mxu0 0.0
    %407 = vmatprep.subr.mxu0 0.0
    %408 = vmatpush2.msra.mxu0 0.0
    %409 = vmatprep.subr.mxu0 0.0
    %410 = vmatpush2.msra.mxu0 0.0
    %411 = vmatprep.subr.mxu0 0.0
    %412 = vmatpush2.msra.mxu0 0.0
    %413 = vmatprep.subr.mxu0 0.0
    %414 = vmatpush2.msra.mxu0 0.0
    %415 = vmatprep.subr.mxu0 0.0
    %416 = vmatpush2.msra.mxu0 0.0
    %417 = vmatprep.subr.mxu0 0.0
    %418 = vmatpush2.msra.mxu0 0.0
    %419 = vmatprep.subr.mxu0 0.0
    %420 = vmatpush2.msra.mxu0 0.0
    %421 = vmatprep.subr.mxu0 0.0
    %422 = vmatpush2.msra.mxu0 0.0
    %423 = vmatprep.subr.mxu0 0.0
    %424 = vmatpush2.msra.mxu0 0.0
    %425 = vmatprep.subr.mxu0 0.0
    %426 = vmatpush2.msra.mxu0 0.0
    %427 = vmatprep.mubr.f32.mxu0 0.0
    %v428 = vand.u32 %v183, 4294901760
    %v429 = vsub.f32 %v183, %v428
    %430 = vmatmul.mubr.f32.gmra.mxu0 %v429
    %v431 = vpop.f32.mrf.mxu0
    %v432 = vadd.f32 %v352, %v431
    %v433 = vpop.f32.mrf.mxu0
    %434 = vdwg.mxu0
    %435 = vmatprep.subr.mxu0 0.0
    %436 = vmatpush1.msra.mxu0 0.0
    %437 = vmatprep.subr.mxu0 0.0
    %438 = vmatpush1.msra.mxu0 0.0
    %439 = vmatprep.subr.mxu0 0.0
    %440 = vmatpush1.msra.mxu0 0.0
    %441 = vmatprep.subr.mxu0 0.0
    %442 = vmatpush1.msra.mxu0 0.0
    %443 = vmatprep.subr.mxu0 0.0
    %444 = vmatpush1.msra.mxu0 0.0
    %445 = vmatprep.subr.mxu0 0.0
    %446 = vmatpush1.msra.mxu0 0.0
    %447 = vmatprep.subr.mxu0 0.0
    %448 = vmatpush1.msra.mxu0 0.0
    %449 = vmatprep.subr.mxu0 0.0
    %450 = vmatpush1.msra.mxu0 0.0
    %451 = vmatprep.subr.mxu0 0.0
    %452 = vmatpush1.msra.mxu0 0.0
    %453 = vmatprep.subr.mxu0 0.0
    %454 = vmatpush1.msra.mxu0 0.0
    %455 = vmatprep.subr.mxu0 0.0
    %456 = vmatpush1.msra.mxu0 0.0
    %457 = vmatprep.subr.mxu0 0.0
    %458 = vmatpush1.msra.mxu0 0.0
    %459 = vmatprep.subr.mxu0 0.0
    %v460 = vand.u32 %v173, 4294901760
    %461 = vmatpush1.msra.mxu0 %v460
    %462 = vmatprep.subr.mxu0 0.0
    %v463 = vand.u32 %v172, 4294901760
    %464 = vmatpush1.msra.mxu0 %v463
    %465 = vmatprep.subr.mxu0 0.0
    %v466 = vand.u32 %v171, 4294901760
    %467 = vmatpush1.msra.mxu0 %v466
    %468 = vmatprep.subr.mxu0 0.0
    %v469 = vand.u32 %v170, 4294901760
    %470 = vmatpush1.msra.mxu0 %v469
    %471 = vmatprep.subr.mxu0 0.0
    %472 = vmatpush2.msra.mxu0 0.0
    %473 = vmatprep.subr.mxu0 0.0
    %474 = vmatpush2.msra.mxu0 0.0
    %475 = vmatprep.subr.mxu0 0.0
    %476 = vmatpush2.msra.mxu0 0.0
    %477 = vmatprep.subr.mxu0 0.0
    %478 = vmatpush2.msra.mxu0 0.0
    %479 = vmatprep.subr.mxu0 0.0
    %480 = vmatpush2.msra.mxu0 0.0
    %481 = vmatprep.subr.mxu0 0.0
    %482 = vmatpush2.msra.mxu0 0.0
    %483 = vmatprep.subr.mxu0 0.0
    %484 = vmatpush2.msra.mxu0 0.0
    %485 = vmatprep.subr.mxu0 0.0
    %486 = vmatpush2.msra.mxu0 0.0
    %487 = vmatprep.subr.mxu0 0.0
    %488 = vmatpush2.msra.mxu0 0.0
    %489 = vmatprep.subr.mxu0 0.0
    %490 = vmatpush2.msra.mxu0 0.0
    %491 = vmatprep.subr.mxu0 0.0
    %492 = vmatpush2.msra.mxu0 0.0
    %493 = vmatprep.subr.mxu0 0.0
    %494 = vmatpush2.msra.mxu0 0.0
    %495 = vmatprep.subr.mxu0 0.0
    %496 = vmatpush2.msra.mxu0 0.0
    %497 = vmatprep.subr.mxu0 0.0
    %498 = vmatpush2.msra.mxu0 0.0
    %499 = vmatprep.subr.mxu0 0.0
    %500 = vmatpush2.msra.mxu0 0.0
    %501 = vmatprep.subr.mxu0 0.0
    %502 = vmatpush2.msra.mxu0 0.0
    %503 = vmatprep.mubr.f32.mxu0 0.0
    %v504 = vand.u32 %v183, 4294901760
    %v505 = vsub.f32 %v183, %v504
    %v506 = vand.u32 %v505, 4294901760
    %507 = vmatmul.mubr.f32.gmra.mxu0 %v506
    %v508 = vpop.f32.mrf.mxu0
    %v509 = vadd.f32 %v432, %v508
    %v510 = vpop.f32.mrf.mxu0
    %511 = vdwg.mxu0
    %512 = vmatprep.subr.mxu0 0.0
    %513 = vmatpush1.msra.mxu0 0.0
    %514 = vmatprep.subr.mxu0 0.0
    %515 = vmatpush1.msra.mxu0 0.0
    %516 = vmatprep.subr.mxu0 0.0
    %517 = vmatpush1.msra.mxu0 0.0
    %518 = vmatprep.subr.mxu0 0.0
    %519 = vmatpush1.msra.mxu0 0.0
    %520 = vmatprep.subr.mxu0 0.0
    %521 = vmatpush1.msra.mxu0 0.0
    %522 = vmatprep.subr.mxu0 0.0
    %523 = vmatpush1.msra.mxu0 0.0
    %524 = vmatprep.subr.mxu0 0.0
    %525 = vmatpush1.msra.mxu0 0.0
    %526 = vmatprep.subr.mxu0 0.0
    %527 = vmatpush1.msra.mxu0 0.0
    %528 = vmatprep.subr.mxu0 0.0
    %529 = vmatpush1.msra.mxu0 0.0
    %530 = vmatprep.subr.mxu0 0.0
    %531 = vmatpush1.msra.mxu0 0.0
    %532 = vmatprep.subr.mxu0 0.0
    %533 = vmatpush1.msra.mxu0 0.0
    %534 = vmatprep.subr.mxu0 0.0
    %535 = vmatpush1.msra.mxu0 0.0
    %536 = vmatprep.subr.mxu0 0.0
    %v537 = vand.u32 %v173, 4294901760
    %v538 = vsub.f32 %v173, %v537
    %v539 = vand.u32 %v538, 4294901760
    %540 = vmatpush1.msra.mxu0 %v539
    %541 = vmatprep.subr.mxu0 0.0
    %v542 = vand.u32 %v172, 4294901760
    %v543 = vsub.f32 %v172, %v542
    %v544 = vand.u32 %v543, 4294901760
    %545 = vmatpush1.msra.mxu0 %v544
    %546 = vmatprep.subr.mxu0 0.0
    %v547 = vand.u32 %v171, 4294901760
    %v548 = vsub.f32 %v171, %v547
    %v549 = vand.u32 %v548, 4294901760
    %550 = vmatpush1.msra.mxu0 %v549
    %551 = vmatprep.subr.mxu0 0.0
    %v552 = vand.u32 %v170, 4294901760
    %v553 = vsub.f32 %v170, %v552
    %v554 = vand.u32 %v553, 4294901760
    %555 = vmatpush1.msra.mxu0 %v554
    %556 = vmatprep.subr.mxu0 0.0
    %557 = vmatpush2.msra.mxu0 0.0
    %558 = vmatprep.subr.mxu0 0.0
    %559 = vmatpush2.msra.mxu0 0.0
    %560 = vmatprep.subr.mxu0 0.0
    %561 = vmatpush2.msra.mxu0 0.0
    %562 = vmatprep.subr.mxu0 0.0
    %563 = vmatpush2.msra.mxu0 0.0
    %564 = vmatprep.subr.mxu0 0.0
    %565 = vmatpush2.msra.mxu0 0.0
    %566 = vmatprep.subr.mxu0 0.0
    %567 = vmatpush2.msra.mxu0 0.0
    %568 = vmatprep.subr.mxu0 0.0
    %569 = vmatpush2.msra.mxu0 0.0
    %570 = vmatprep.subr.mxu0 0.0
    %571 = vmatpush2.msra.mxu0 0.0
    %572 = vmatprep.subr.mxu0 0.0
    %573 = vmatpush2.msra.mxu0 0.0
    %574 = vmatprep.subr.mxu0 0.0
    %575 = vmatpush2.msra.mxu0 0.0
    %576 = vmatprep.subr.mxu0 0.0
    %577 = vmatpush2.msra.mxu0 0.0
    %578 = vmatprep.subr.mxu0 0.0
    %579 = vmatpush2.msra.mxu0 0.0
    %580 = vmatprep.subr.mxu0 0.0
    %581 = vmatpush2.msra.mxu0 0.0
    %582 = vmatprep.subr.mxu0 0.0
    %583 = vmatpush2.msra.mxu0 0.0
    %584 = vmatprep.subr.mxu0 0.0
    %585 = vmatpush2.msra.mxu0 0.0
    %586 = vmatprep.subr.mxu0 0.0
    %587 = vmatpush2.msra.mxu0 0.0
    %588 = vmatprep.mubr.f32.mxu0 0.0
    %v589 = vand.u32 %v183, 4294901760
    %590 = vmatmul.mubr.f32.gmra.mxu0 %v589
    %v591 = vpop.f32.mrf.mxu0
    %v592 = vadd.f32 %v509, %v591
    %v593 = vpop.f32.mrf.mxu0
    %594 = vdwg.mxu0
    %595 = vmatprep.subr.mxu0 0.0
    %596 = vmatpush1.msra.mxu0 0.0
    %597 = vmatprep.subr.mxu0 0.0
    %598 = vmatpush1.msra.mxu0 0.0
    %599 = vmatprep.subr.mxu0 0.0
    %600 = vmatpush1.msra.mxu0 0.0
    %601 = vmatprep.subr.mxu0 0.0
    %602 = vmatpush1.msra.mxu0 0.0
    %603 = vmatprep.subr.mxu0 0.0
    %604 = vmatpush1.msra.mxu0 0.0
    %605 = vmatprep.subr.mxu0 0.0
    %606 = vmatpush1.msra.mxu0 0.0
    %607 = vmatprep.subr.mxu0 0.0
    %608 = vmatpush1.msra.mxu0 0.0
    %609 = vmatprep.subr.mxu0 0.0
    %610 = vmatpush1.msra.mxu0 0.0
    %611 = vmatprep.subr.mxu0 0.0
    %612 = vmatpush1.msra.mxu0 0.0
    %613 = vmatprep.subr.mxu0 0.0
    %614 = vmatpush1.msra.mxu0 0.0
    %615 = vmatprep.subr.mxu0 0.0
    %616 = vmatpush1.msra.mxu0 0.0
    %617 = vmatprep.subr.mxu0 0.0
    %618 = vmatpush1.msra.mxu0 0.0
    %619 = vmatprep.subr.mxu0 0.0
    %v620 = vand.u32 %v173, 4294901760
    %621 = vmatpush1.msra.mxu0 %v620
    %622 = vmatprep.subr.mxu0 0.0
    %v623 = vand.u32 %v172, 4294901760
    %624 = vmatpush1.msra.mxu0 %v623
    %625 = vmatprep.subr.mxu0 0.0
    %v626 = vand.u32 %v171, 4294901760
    %627 = vmatpush1.msra.mxu0 %v626
    %628 = vmatprep.subr.mxu0 0.0
    %v629 = vand.u32 %v170, 4294901760
    %630 = vmatpush1.msra.mxu0 %v629
    %631 = vmatprep.subr.mxu0 0.0
    %632 = vmatpush2.msra.mxu0 0.0
    %633 = vmatprep.subr.mxu0 0.0
    %634 = vmatpush2.msra.mxu0 0.0
    %635 = vmatprep.subr.mxu0 0.0
    %636 = vmatpush2.msra.mxu0 0.0
    %637 = vmatprep.subr.mxu0 0.0
    %638 = vmatpush2.msra.mxu0 0.0
    %639 = vmatprep.subr.mxu0 0.0
    %640 = vmatpush2.msra.mxu0 0.0
    %641 = vmatprep.subr.mxu0 0.0
    %642 = vmatpush2.msra.mxu0 0.0
    %643 = vmatprep.subr.mxu0 0.0
    %644 = vmatpush2.msra.mxu0 0.0
    %645 = vmatprep.subr.mxu0 0.0
    %646 = vmatpush2.msra.mxu0 0.0
    %647 = vmatprep.subr.mxu0 0.0
    %648 = vmatpush2.msra.mxu0 0.0
    %649 = vmatprep.subr.mxu0 0.0
    %650 = vmatpush2.msra.mxu0 0.0
    %651 = vmatprep.subr.mxu0 0.0
    %652 = vmatpush2.msra.mxu0 0.0
    %653 = vmatprep.subr.mxu0 0.0
    %654 = vmatpush2.msra.mxu0 0.0
    %655 = vmatprep.subr.mxu0 0.0
    %656 = vmatpush2.msra.mxu0 0.0
    %657 = vmatprep.subr.mxu0 0.0
    %658 = vmatpush2.msra.mxu0 0.0
    %659 = vmatprep.subr.mxu0 0.0
    %660 = vmatpush2.msra.mxu0 0.0
    %661 = vmatprep.subr.mxu0 0.0
    %662 = vmatpush2.msra.mxu0 0.0
    %663 = vmatprep.mubr.f32.mxu0 0.0
    %v664 = vand.u32 %v183, 4294901760
    %665 = vmatmul.mubr.f32.gmra.mxu0 %v664
    %v666 = vpop.f32.mrf.mxu0
    %v667 = vadd.f32 %v592, %v666
    %v668 = vpop.f32.mrf.mxu0
    %669 = vdwg.mxu0
    %v670 = vtanh.pop %v667
    %v671 = vxor.u32 %v667, 2147483648
    %v672 = vmul.f32 %v671, 1.442695
    %v673 = vpow.pop %v672
    %v674 = vadd.f32 %v673, 1.0
    %v675 = vrcp.pop %v674
    %v676 = vmul.f32 1.0, %v675
    %678 = vrot.lane.b32.xlu0 %v676, 64
    %v679 = vpop.permute.xlu0 %678
    %v681 = vmul.f32 %v670, %v679
    %v682 = vld [vmem:[#allocation8] sm:$0xff]
    %v683 = vld [vmem:[#allocation8 + $0x8] sm:$0xff]
    %v684 = vld [vmem:[#allocation8 + $0x10] sm:$0xff]
    %v685 = vld [vmem:[#allocation8 + $0x18] sm:$0xff]
    %v686 = vld [vmem:[#allocation8 + $0x20] sm:$0xff]
    %v687 = vld [vmem:[#allocation8 + $0x28] sm:$0xff]
    %v688 = vld [vmem:[#allocation8 + $0x30] sm:$0xff]
    %v689 = vld [vmem:[#allocation8 + $0x38] sm:$0xff]
    %v690 = vld [vmem:[#allocation10] sm:$0x1]
    %v692 = vlaneseq
    %v693 = vshrl.u32 %v692, 7
    %v694 = vsub.s32 0, %v693
    %v695 = vrot.slane %v690, %v694
    %vm697 = vcmask 523264
    %v699 = vsel %vm697, %v681, 0
    %701 = vmatprep.subr.mxu0 0.0
    %702 = vmatpush1.msra.mxu0 0.0
    %703 = vmatprep.subr.mxu0 0.0
    %704 = vmatpush1.msra.mxu0 0.0
    %705 = vmatprep.subr.mxu0 0.0
    %706 = vmatpush1.msra.mxu0 0.0
    %707 = vmatprep.subr.mxu0 0.0
    %708 = vmatpush1.msra.mxu0 0.0
    %709 = vmatprep.subr.mxu0 0.0
    %710 = vmatpush1.msra.mxu0 0.0
    %711 = vmatprep.subr.mxu0 0.0
    %712 = vmatpush1.msra.mxu0 0.0
    %713 = vmatprep.subr.mxu0 0.0
    %714 = vmatpush1.msra.mxu0 0.0
    %715 = vmatprep.subr.mxu0 0.0
    %716 = vmatpush1.msra.mxu0 0.0
    %717 = vmatprep.subr.mxu0 0.0
    %v718 = vand.u32 %v689, 4294901760
    %719 = vmatpush1.msra.mxu0 %v718
    %720 = vmatprep.subr.mxu0 0.0
    %v721 = vand.u32 %v688, 4294901760
    %722 = vmatpush1.msra.mxu0 %v721
    %723 = vmatprep.subr.mxu0 0.0
    %v724 = vand.u32 %v687, 4294901760
    %725 = vmatpush1.msra.mxu0 %v724
    %726 = vmatprep.subr.mxu0 0.0
    %v727 = vand.u32 %v686, 4294901760
    %728 = vmatpush1.msra.mxu0 %v727
    %729 = vmatprep.subr.mxu0 0.0
    %v730 = vand.u32 %v685, 4294901760
    %731 = vmatpush1.msra.mxu0 %v730
    %732 = vmatprep.subr.mxu0 0.0
    %v733 = vand.u32 %v684, 4294901760
    %734 = vmatpush1.msra.mxu0 %v733
    %735 = vmatprep.subr.mxu0 0.0
    %v736 = vand.u32 %v683, 4294901760
    %737 = vmatpush1.msra.mxu0 %v736
    %738 = vmatprep.subr.mxu0 0.0
    %v739 = vand.u32 %v682, 4294901760
    %740 = vmatpush1.msra.mxu0 %v739
    %741 = vmatprep.subr.mxu0 0.0
    %742 = vmatpush2.msra.mxu0 0.0
    %743 = vmatprep.subr.mxu0 0.0
    %744 = vmatpush2.msra.mxu0 0.0
    %745 = vmatprep.subr.mxu0 0.0
    %746 = vmatpush2.msra.mxu0 0.0
    %747 = vmatprep.subr.mxu0 0.0
    %748 = vmatpush2.msra.mxu0 0.0
    %749 = vmatprep.subr.mxu0 0.0
    %750 = vmatpush2.msra.mxu0 0.0
    %751 = vmatprep.subr.mxu0 0.0
    %752 = vmatpush2.msra.mxu0 0.0
    %753 = vmatprep.subr.mxu0 0.0
    %754 = vmatpush2.msra.mxu0 0.0
    %755 = vmatprep.subr.mxu0 0.0
    %756 = vmatpush2.msra.mxu0 0.0
    %757 = vmatprep.subr.mxu0 0.0
    %758 = vmatpush2.msra.mxu0 0.0
    %759 = vmatprep.subr.mxu0 0.0
    %760 = vmatpush2.msra.mxu0 0.0
    %761 = vmatprep.subr.mxu0 0.0
    %762 = vmatpush2.msra.mxu0 0.0
    %763 = vmatprep.subr.mxu0 0.0
    %764 = vmatpush2.msra.mxu0 0.0
    %765 = vmatprep.subr.mxu0 0.0
    %766 = vmatpush2.msra.mxu0 0.0
    %767 = vmatprep.subr.mxu0 0.0
    %768 = vmatpush2.msra.mxu0 0.0
    %769 = vmatprep.subr.mxu0 0.0
    %770 = vmatpush2.msra.mxu0 0.0
    %771 = vmatprep.subr.mxu0 0.0
    %772 = vmatpush2.msra.mxu0 0.0
    %773 = vmatprep.mubr.f32.mxu0 0.0
    %v774 = vand.u32 %v699, 4294901760
    %v775 = vsub.f32 %v699, %v774
    %v776 = vand.u32 %v775, 4294901760
    %v777 = vsub.f32 %v775, %v776
    %v778 = vand.u32 %v777, 4294901760
    %779 = vmatmul.mubr.f32.gmra.mxu0 %v778
    %v780 = vpop.f32.mrf.mxu0
    %v781 = vadd.f32 %v695, %v780
    %v782 = vpop.f32.mrf.mxu0
    %783 = vdwg.mxu0
    %784 = vmatprep.subr.mxu0 0.0
    %785 = vmatpush1.msra.mxu0 0.0
    %786 = vmatprep.subr.mxu0 0.0
    %787 = vmatpush1.msra.mxu0 0.0
    %788 = vmatprep.subr.mxu0 0.0
    %789 = vmatpush1.msra.mxu0 0.0
    %790 = vmatprep.subr.mxu0 0.0
    %791 = vmatpush1.msra.mxu0 0.0
    %792 = vmatprep.subr.mxu0 0.0
    %793 = vmatpush1.msra.mxu0 0.0
    %794 = vmatprep.subr.mxu0 0.0
    %795 = vmatpush1.msra.mxu0 0.0
    %796 = vmatprep.subr.mxu0 0.0
    %797 = vmatpush1.msra.mxu0 0.0
    %798 = vmatprep.subr.mxu0 0.0
    %799 = vmatpush1.msra.mxu0 0.0
    %800 = vmatprep.subr.mxu0 0.0
    %v801 = vand.u32 %v689, 4294901760
    %v802 = vsub.f32 %v689, %v801
    %v803 = vand.u32 %v802, 4294901760
    %v804 = vsub.f32 %v802, %v803
    %v805 = vand.u32 %v804, 4294901760
    %806 = vmatpush1.msra.mxu0 %v805
    %807 = vmatprep.subr.mxu0 0.0
    %v808 = vand.u32 %v688, 4294901760
    %v809 = vsub.f32 %v688, %v808
    %v810 = vand.u32 %v809, 4294901760
    %v811 = vsub.f32 %v809, %v810
    %v812 = vand.u32 %v811, 4294901760
    %813 = vmatpush1.msra.mxu0 %v812
    %814 = vmatprep.subr.mxu0 0.0
    %v815 = vand.u32 %v687, 4294901760
    %v816 = vsub.f32 %v687, %v815
    %v817 = vand.u32 %v816, 4294901760
    %v818 = vsub.f32 %v816, %v817
    %v819 = vand.u32 %v818, 4294901760
    %820 = vmatpush1.msra.mxu0 %v819
    %821 = vmatprep.subr.mxu0 0.0
    %v822 = vand.u32 %v686, 4294901760
    %v823 = vsub.f32 %v686, %v822
    %v824 = vand.u32 %v823, 4294901760
    %v825 = vsub.f32 %v823, %v824
    %v826 = vand.u32 %v825, 4294901760
    %827 = vmatpush1.msra.mxu0 %v826
    %828 = vmatprep.subr.mxu0 0.0
    %v829 = vand.u32 %v685, 4294901760
    %v830 = vsub.f32 %v685, %v829
    %v831 = vand.u32 %v830, 4294901760
    %v832 = vsub.f32 %v830, %v831
    %v833 = vand.u32 %v832, 4294901760
    %834 = vmatpush1.msra.mxu0 %v833
    %835 = vmatprep.subr.mxu0 0.0
    %v836 = vand.u32 %v684, 4294901760
    %v837 = vsub.f32 %v684, %v836
    %v838 = vand.u32 %v837, 4294901760
    %v839 = vsub.f32 %v837, %v838
    %v840 = vand.u32 %v839, 4294901760
    %841 = vmatpush1.msra.mxu0 %v840
    %842 = vmatprep.subr.mxu0 0.0
    %v843 = vand.u32 %v683, 4294901760
    %v844 = vsub.f32 %v683, %v843
    %v845 = vand.u32 %v844, 4294901760
    %v846 = vsub.f32 %v844, %v845
    %v847 = vand.u32 %v846, 4294901760
    %848 = vmatpush1.msra.mxu0 %v847
    %849 = vmatprep.subr.mxu0 0.0
    %v850 = vand.u32 %v682, 4294901760
    %v851 = vsub.f32 %v682, %v850
    %v852 = vand.u32 %v851, 4294901760
    %v853 = vsub.f32 %v851, %v852
    %v854 = vand.u32 %v853, 4294901760
    %855 = vmatpush1.msra.mxu0 %v854
    %856 = vmatprep.subr.mxu0 0.0
    %857 = vmatpush2.msra.mxu0 0.0
    %858 = vmatprep.subr.mxu0 0.0
    %859 = vmatpush2.msra.mxu0 0.0
    %860 = vmatprep.subr.mxu0 0.0
    %861 = vmatpush2.msra.mxu0 0.0
    %862 = vmatprep.subr.mxu0 0.0
    %863 = vmatpush2.msra.mxu0 0.0
    %864 = vmatprep.subr.mxu0 0.0
    %865 = vmatpush2.msra.mxu0 0.0
    %866 = vmatprep.subr.mxu0 0.0
    %867 = vmatpush2.msra.mxu0 0.0
    %868 = vmatprep.subr.mxu0 0.0
    %869 = vmatpush2.msra.mxu0 0.0
    %870 = vmatprep.subr.mxu0 0.0
    %871 = vmatpush2.msra.mxu0 0.0
    %872 = vmatprep.subr.mxu0 0.0
    %873 = vmatpush2.msra.mxu0 0.0
    %874 = vmatprep.subr.mxu0 0.0
    %875 = vmatpush2.msra.mxu0 0.0
    %876 = vmatprep.subr.mxu0 0.0
    %877 = vmatpush2.msra.mxu0 0.0
    %878 = vmatprep.subr.mxu0 0.0
    %879 = vmatpush2.msra.mxu0 0.0
    %880 = vmatprep.subr.mxu0 0.0
    %881 = vmatpush2.msra.mxu0 0.0
    %882 = vmatprep.subr.mxu0 0.0
    %883 = vmatpush2.msra.mxu0 0.0
    %884 = vmatprep.subr.mxu0 0.0
    %885 = vmatpush2.msra.mxu0 0.0
    %886 = vmatprep.subr.mxu0 0.0
    %887 = vmatpush2.msra.mxu0 0.0
    %888 = vmatprep.mubr.f32.mxu0 0.0
    %v889 = vand.u32 %v699, 4294901760
    %890 = vmatmul.mubr.f32.gmra.mxu0 %v889
    %v891 = vpop.f32.mrf.mxu0
    %v892 = vadd.f32 %v781, %v891
    %v893 = vpop.f32.mrf.mxu0
    %894 = vdwg.mxu0
    %895 = vmatprep.subr.mxu0 0.0
    %896 = vmatpush1.msra.mxu0 0.0
    %897 = vmatprep.subr.mxu0 0.0
    %898 = vmatpush1.msra.mxu0 0.0
    %899 = vmatprep.subr.mxu0 0.0
    %900 = vmatpush1.msra.mxu0 0.0
    %901 = vmatprep.subr.mxu0 0.0
    %902 = vmatpush1.msra.mxu0 0.0
    %903 = vmatprep.subr.mxu0 0.0
    %904 = vmatpush1.msra.mxu0 0.0
    %905 = vmatprep.subr.mxu0 0.0
    %906 = vmatpush1.msra.mxu0 0.0
    %907 = vmatprep.subr.mxu0 0.0
    %908 = vmatpush1.msra.mxu0 0.0
    %909 = vmatprep.subr.mxu0 0.0
    %910 = vmatpush1.msra.mxu0 0.0
    %911 = vmatprep.subr.mxu0 0.0
    %v912 = vand.u32 %v689, 4294901760
    %v913 = vsub.f32 %v689, %v912
    %914 = vmatpush1.msra.mxu0 %v913
    %915 = vmatprep.subr.mxu0 0.0
    %v916 = vand.u32 %v688, 4294901760
    %v917 = vsub.f32 %v688, %v916
    %918 = vmatpush1.msra.mxu0 %v917
    %919 = vmatprep.subr.mxu0 0.0
    %v920 = vand.u32 %v687, 4294901760
    %v921 = vsub.f32 %v687, %v920
    %922 = vmatpush1.msra.mxu0 %v921
    %923 = vmatprep.subr.mxu0 0.0
    %v924 = vand.u32 %v686, 4294901760
    %v925 = vsub.f32 %v686, %v924
    %926 = vmatpush1.msra.mxu0 %v925
    %927 = vmatprep.subr.mxu0 0.0
    %v928 = vand.u32 %v685, 4294901760
    %v929 = vsub.f32 %v685, %v928
    %930 = vmatpush1.msra.mxu0 %v929
    %931 = vmatprep.subr.mxu0 0.0
    %v932 = vand.u32 %v684, 4294901760
    %v933 = vsub.f32 %v684, %v932
    %934 = vmatpush1.msra.mxu0 %v933
    %935 = vmatprep.subr.mxu0 0.0
    %v936 = vand.u32 %v683, 4294901760
    %v937 = vsub.f32 %v683, %v936
    %938 = vmatpush1.msra.mxu0 %v937
    %939 = vmatprep.subr.mxu0 0.0
    %v940 = vand.u32 %v682, 4294901760
    %v941 = vsub.f32 %v682, %v940
    %942 = vmatpush1.msra.mxu0 %v941
    %943 = vmatprep.subr.mxu0 0.0
    %944 = vmatpush2.msra.mxu0 0.0
    %945 = vmatprep.subr.mxu0 0.0
    %946 = vmatpush2.msra.mxu0 0.0
    %947 = vmatprep.subr.mxu0 0.0
    %948 = vmatpush2.msra.mxu0 0.0
    %949 = vmatprep.subr.mxu0 0.0
    %950 = vmatpush2.msra.mxu0 0.0
    %951 = vmatprep.subr.mxu0 0.0
    %952 = vmatpush2.msra.mxu0 0.0
    %953 = vmatprep.subr.mxu0 0.0
    %954 = vmatpush2.msra.mxu0 0.0
    %955 = vmatprep.subr.mxu0 0.0
    %956 = vmatpush2.msra.mxu0 0.0
    %957 = vmatprep.subr.mxu0 0.0
    %958 = vmatpush2.msra.mxu0 0.0
    %959 = vmatprep.subr.mxu0 0.0
    %960 = vmatpush2.msra.mxu0 0.0
    %961 = vmatprep.subr.mxu0 0.0
    %962 = vmatpush2.msra.mxu0 0.0
    %963 = vmatprep.subr.mxu0 0.0
    %964 = vmatpush2.msra.mxu0 0.0
    %965 = vmatprep.subr.mxu0 0.0
    %966 = vmatpush2.msra.mxu0 0.0
    %967 = vmatprep.subr.mxu0 0.0
    %968 = vmatpush2.msra.mxu0 0.0
    %969 = vmatprep.subr.mxu0 0.0
    %970 = vmatpush2.msra.mxu0 0.0
    %971 = vmatprep.subr.mxu0 0.0
    %972 = vmatpush2.msra.mxu0 0.0
    %973 = vmatprep.subr.mxu0 0.0
    %974 = vmatpush2.msra.mxu0 0.0
    %975 = vmatprep.mubr.f32.mxu0 0.0
    %v976 = vand.u32 %v699, 4294901760
    %v977 = vsub.f32 %v699, %v976
    %978 = vmatmul.mubr.f32.gmra.mxu0 %v977
    %v979 = vpop.f32.mrf.mxu0
    %v980 = vadd.f32 %v892, %v979
    %v981 = vpop.f32.mrf.mxu0
    %982 = vdwg.mxu0
    %983 = vmatprep.subr.mxu0 0.0
    %984 = vmatpush1.msra.mxu0 0.0
    %985 = vmatprep.subr.mxu0 0.0
    %986 = vmatpush1.msra.mxu0 0.0
    %987 = vmatprep.subr.mxu0 0.0
    %988 = vmatpush1.msra.mxu0 0.0
    %989 = vmatprep.subr.mxu0 0.0
    %990 = vmatpush1.msra.mxu0 0.0
    %991 = vmatprep.subr.mxu0 0.0
    %992 = vmatpush1.msra.mxu0 0.0
    %993 = vmatprep.subr.mxu0 0.0
    %994 = vmatpush1.msra.mxu0 0.0
    %995 = vmatprep.subr.mxu0 0.0
    %996 = vmatpush1.msra.mxu0 0.0
    %997 = vmatprep.subr.mxu0 0.0
    %998 = vmatpush1.msra.mxu0 0.0
    %999 = vmatprep.subr.mxu0 0.0
    %v1000 = vand.u32 %v689, 4294901760
    %1001 = vmatpush1.msra.mxu0 %v1000
    %1002 = vmatprep.subr.mxu0 0.0
    %v1003 = vand.u32 %v688, 4294901760
    %1004 = vmatpush1.msra.mxu0 %v1003
    %1005 = vmatprep.subr.mxu0 0.0
    %v1006 = vand.u32 %v687, 4294901760
    %1007 = vmatpush1.msra.mxu0 %v1006
    %1008 = vmatprep.subr.mxu0 0.0
    %v1009 = vand.u32 %v686, 4294901760
    %1010 = vmatpush1.msra.mxu0 %v1009
    %1011 = vmatprep.subr.mxu0 0.0
    %v1012 = vand.u32 %v685, 4294901760
    %1013 = vmatpush1.msra.mxu0 %v1012
    %1014 = vmatprep.subr.mxu0 0.0
    %v1015 = vand.u32 %v684, 4294901760
    %1016 = vmatpush1.msra.mxu0 %v1015
    %1017 = vmatprep.subr.mxu0 0.0
    %v1018 = vand.u32 %v683, 4294901760
    %1019 = vmatpush1.msra.mxu0 %v1018
    %1020 = vmatprep.subr.mxu0 0.0
    %v1021 = vand.u32 %v682, 4294901760
    %1022 = vmatpush1.msra.mxu0 %v1021
    %1023 = vmatprep.subr.mxu0 0.0
    %1024 = vmatpush2.msra.mxu0 0.0
    %1025 = vmatprep.subr.mxu0 0.0
    %1026 = vmatpush2.msra.mxu0 0.0
    %1027 = vmatprep.subr.mxu0 0.0
    %1028 = vmatpush2.msra.mxu0 0.0
    %1029 = vmatprep.subr.mxu0 0.0
    %1030 = vmatpush2.msra.mxu0 0.0
    %1031 = vmatprep.subr.mxu0 0.0
    %1032 = vmatpush2.msra.mxu0 0.0
    %1033 = vmatprep.subr.mxu0 0.0
    %1034 = vmatpush2.msra.mxu0 0.0
    %1035 = vmatprep.subr.mxu0 0.0
    %1036 = vmatpush2.msra.mxu0 0.0
    %1037 = vmatprep.subr.mxu0 0.0
    %1038 = vmatpush2.msra.mxu0 0.0
    %1039 = vmatprep.subr.mxu0 0.0
    %1040 = vmatpush2.msra.mxu0 0.0
    %1041 = vmatprep.subr.mxu0 0.0
    %1042 = vmatpush2.msra.mxu0 0.0
    %1043 = vmatprep.subr.mxu0 0.0
    %1044 = vmatpush2.msra.mxu0 0.0
    %1045 = vmatprep.subr.mxu0 0.0
    %1046 = vmatpush2.msra.mxu0 0.0
    %1047 = vmatprep.subr.mxu0 0.0
    %1048 = vmatpush2.msra.mxu0 0.0
    %1049 = vmatprep.subr.mxu0 0.0
    %1050 = vmatpush2.msra.mxu0 0.0
    %1051 = vmatprep.subr.mxu0 0.0
    %1052 = vmatpush2.msra.mxu0 0.0
    %1053 = vmatprep.subr.mxu0 0.0
    %1054 = vmatpush2.msra.mxu0 0.0
    %1055 = vmatprep.mubr.f32.mxu0 0.0
    %v1056 = vand.u32 %v699, 4294901760
    %v1057 = vsub.f32 %v699, %v1056
    %v1058 = vand.u32 %v1057, 4294901760
    %1059 = vmatmul.mubr.f32.gmra.mxu0 %v1058
    %v1060 = vpop.f32.mrf.mxu0
    %v1061 = vadd.f32 %v980, %v1060
    %v1062 = vpop.f32.mrf.mxu0
    %1063 = vdwg.mxu0
    %1064 = vmatprep.subr.mxu0 0.0
    %1065 = vmatpush1.msra.mxu0 0.0
    %1066 = vmatprep.subr.mxu0 0.0
    %1067 = vmatpush1.msra.mxu0 0.0
    %1068 = vmatprep.subr.mxu0 0.0
    %1069 = vmatpush1.msra.mxu0 0.0
    %1070 = vmatprep.subr.mxu0 0.0
    %1071 = vmatpush1.msra.mxu0 0.0
    %1072 = vmatprep.subr.mxu0 0.0
    %1073 = vmatpush1.msra.mxu0 0.0
    %1074 = vmatprep.subr.mxu0 0.0
    %1075 = vmatpush1.msra.mxu0 0.0
    %1076 = vmatprep.subr.mxu0 0.0
    %1077 = vmatpush1.msra.mxu0 0.0
    %1078 = vmatprep.subr.mxu0 0.0
    %1079 = vmatpush1.msra.mxu0 0.0
    %1080 = vmatprep.subr.mxu0 0.0
    %v1081 = vand.u32 %v689, 4294901760
    %v1082 = vsub.f32 %v689, %v1081
    %v1083 = vand.u32 %v1082, 4294901760
    %1084 = vmatpush1.msra.mxu0 %v1083
    %1085 = vmatprep.subr.mxu0 0.0
    %v1086 = vand.u32 %v688, 4294901760
    %v1087 = vsub.f32 %v688, %v1086
    %v1088 = vand.u32 %v1087, 4294901760
    %1089 = vmatpush1.msra.mxu0 %v1088
    %1090 = vmatprep.subr.mxu0 0.0
    %v1091 = vand.u32 %v687, 4294901760
    %v1092 = vsub.f32 %v687, %v1091
    %v1093 = vand.u32 %v1092, 4294901760
    %1094 = vmatpush1.msra.mxu0 %v1093
    %1095 = vmatprep.subr.mxu0 0.0
    %v1096 = vand.u32 %v686, 4294901760
    %v1097 = vsub.f32 %v686, %v1096
    %v1098 = vand.u32 %v1097, 4294901760
    %1099 = vmatpush1.msra.mxu0 %v1098
    %1100 = vmatprep.subr.mxu0 0.0
    %v1101 = vand.u32 %v685, 4294901760
    %v1102 = vsub.f32 %v685, %v1101
    %v1103 = vand.u32 %v1102, 4294901760
    %1104 = vmatpush1.msra.mxu0 %v1103
    %1105 = vmatprep.subr.mxu0 0.0
    %v1106 = vand.u32 %v684, 4294901760
    %v1107 = vsub.f32 %v684, %v1106
    %v1108 = vand.u32 %v1107, 4294901760
    %1109 = vmatpush1.msra.mxu0 %v1108
    %1110 = vmatprep.subr.mxu0 0.0
    %v1111 = vand.u32 %v683, 4294901760
    %v1112 = vsub.f32 %v683, %v1111
    %v1113 = vand.u32 %v1112, 4294901760
    %1114 = vmatpush1.msra.mxu0 %v1113
    %1115 = vmatprep.subr.mxu0 0.0
    %v1116 = vand.u32 %v682, 4294901760
    %v1117 = vsub.f32 %v682, %v1116
    %v1118 = vand.u32 %v1117, 4294901760
    %1119 = vmatpush1.msra.mxu0 %v1118
    %1120 = vmatprep.subr.mxu0 0.0
    %1121 = vmatpush2.msra.mxu0 0.0
    %1122 = vmatprep.subr.mxu0 0.0
    %1123 = vmatpush2.msra.mxu0 0.0
    %1124 = vmatprep.subr.mxu0 0.0
    %1125 = vmatpush2.msra.mxu0 0.0
    %1126 = vmatprep.subr.mxu0 0.0
    %1127 = vmatpush2.msra.mxu0 0.0
    %1128 = vmatprep.subr.mxu0 0.0
    %1129 = vmatpush2.msra.mxu0 0.0
    %1130 = vmatprep.subr.mxu0 0.0
    %1131 = vmatpush2.msra.mxu0 0.0
    %1132 = vmatprep.subr.mxu0 0.0
    %1133 = vmatpush2.msra.mxu0 0.0
    %1134 = vmatprep.subr.mxu0 0.0
    %1135 = vmatpush2.msra.mxu0 0.0
    %1136 = vmatprep.subr.mxu0 0.0
    %1137 = vmatpush2.msra.mxu0 0.0
    %1138 = vmatprep.subr.mxu0 0.0
    %1139 = vmatpush2.msra.mxu0 0.0
    %1140 = vmatprep.subr.mxu0 0.0
    %1141 = vmatpush2.msra.mxu0 0.0
    %1142 = vmatprep.subr.mxu0 0.0
    %1143 = vmatpush2.msra.mxu0 0.0
    %1144 = vmatprep.subr.mxu0 0.0
    %1145 = vmatpush2.msra.mxu0 0.0
    %1146 = vmatprep.subr.mxu0 0.0
    %1147 = vmatpush2.msra.mxu0 0.0
    %1148 = vmatprep.subr.mxu0 0.0
    %1149 = vmatpush2.msra.mxu0 0.0
    %1150 = vmatprep.subr.mxu0 0.0
    %1151 = vmatpush2.msra.mxu0 0.0
    %1152 = vmatprep.mubr.f32.mxu0 0.0
    %v1153 = vand.u32 %v699, 4294901760
    %1154 = vmatmul.mubr.f32.gmra.mxu0 %v1153
    %v1155 = vpop.f32.mrf.mxu0
    %v1156 = vadd.f32 %v1061, %v1155
    %v1157 = vpop.f32.mrf.mxu0
    %1158 = vdwg.mxu0
    %1159 = vmatprep.subr.mxu0 0.0
    %1160 = vmatpush1.msra.mxu0 0.0
    %1161 = vmatprep.subr.mxu0 0.0
    %1162 = vmatpush1.msra.mxu0 0.0
    %1163 = vmatprep.subr.mxu0 0.0
    %1164 = vmatpush1.msra.mxu0 0.0
    %1165 = vmatprep.subr.mxu0 0.0
    %1166 = vmatpush1.msra.mxu0 0.0
    %1167 = vmatprep.subr.mxu0 0.0
    %1168 = vmatpush1.msra.mxu0 0.0
    %1169 = vmatprep.subr.mxu0 0.0
    %1170 = vmatpush1.msra.mxu0 0.0
    %1171 = vmatprep.subr.mxu0 0.0
    %1172 = vmatpush1.msra.mxu0 0.0
    %1173 = vmatprep.subr.mxu0 0.0
    %1174 = vmatpush1.msra.mxu0 0.0
    %1175 = vmatprep.subr.mxu0 0.0
    %v1176 = vand.u32 %v689, 4294901760
    %1177 = vmatpush1.msra.mxu0 %v1176
    %1178 = vmatprep.subr.mxu0 0.0
    %v1179 = vand.u32 %v688, 4294901760
    %1180 = vmatpush1.msra.mxu0 %v1179
    %1181 = vmatprep.subr.mxu0 0.0
    %v1182 = vand.u32 %v687, 4294901760
    %1183 = vmatpush1.msra.mxu0 %v1182
    %1184 = vmatprep.subr.mxu0 0.0
    %v1185 = vand.u32 %v686, 4294901760
    %1186 = vmatpush1.msra.mxu0 %v1185
    %1187 = vmatprep.subr.mxu0 0.0
    %v1188 = vand.u32 %v685, 4294901760
    %1189 = vmatpush1.msra.mxu0 %v1188
    %1190 = vmatprep.subr.mxu0 0.0
    %v1191 = vand.u32 %v684, 4294901760
    %1192 = vmatpush1.msra.mxu0 %v1191
    %1193 = vmatprep.subr.mxu0 0.0
    %v1194 = vand.u32 %v683, 4294901760
    %1195 = vmatpush1.msra.mxu0 %v1194
    %1196 = vmatprep.subr.mxu0 0.0
    %v1197 = vand.u32 %v682, 4294901760
    %1198 = vmatpush1.msra.mxu0 %v1197
    %1199 = vmatprep.subr.mxu0 0.0
    %1200 = vmatpush2.msra.mxu0 0.0
    %1201 = vmatprep.subr.mxu0 0.0
    %1202 = vmatpush2.msra.mxu0 0.0
    %1203 = vmatprep.subr.mxu0 0.0
    %1204 = vmatpush2.msra.mxu0 0.0
    %1205 = vmatprep.subr.mxu0 0.0
    %1206 = vmatpush2.msra.mxu0 0.0
    %1207 = vmatprep.subr.mxu0 0.0
    %1208 = vmatpush2.msra.mxu0 0.0
    %1209 = vmatprep.subr.mxu0 0.0
    %1210 = vmatpush2.msra.mxu0 0.0
    %1211 = vmatprep.subr.mxu0 0.0
    %1212 = vmatpush2.msra.mxu0 0.0
    %1213 = vmatprep.subr.mxu0 0.0
    %1214 = vmatpush2.msra.mxu0 0.0
    %1215 = vmatprep.subr.mxu0 0.0
    %1216 = vmatpush2.msra.mxu0 0.0
    %1217 = vmatprep.subr.mxu0 0.0
    %1218 = vmatpush2.msra.mxu0 0.0
    %1219 = vmatprep.subr.mxu0 0.0
    %1220 = vmatpush2.msra.mxu0 0.0
    %1221 = vmatprep.subr.mxu0 0.0
    %1222 = vmatpush2.msra.mxu0 0.0
    %1223 = vmatprep.subr.mxu0 0.0
    %1224 = vmatpush2.msra.mxu0 0.0
    %1225 = vmatprep.subr.mxu0 0.0
    %1226 = vmatpush2.msra.mxu0 0.0
    %1227 = vmatprep.subr.mxu0 0.0
    %1228 = vmatpush2.msra.mxu0 0.0
    %1229 = vmatprep.subr.mxu0 0.0
    %1230 = vmatpush2.msra.mxu0 0.0
    %1231 = vmatprep.mubr.f32.mxu0 0.0
    %v1232 = vand.u32 %v699, 4294901760
    %1233 = vmatmul.mubr.f32.gmra.mxu0 %v1232
    %v1234 = vpop.f32.mrf.mxu0
    %v1235 = vadd.f32 %v1156, %v1234
    %v1236 = vpop.f32.mrf.mxu0
    %1237 = vdwg.mxu0
    %v1238 = vld [vmem:[#allocation11] sm:$0xff]
    %v1239 = vld [vmem:[#allocation11 + $0x8] sm:$0xff]
    %v1240 = vld [vmem:[#allocation11 + $0x10] sm:$0xff]
    %v1241 = vld [vmem:[#allocation11 + $0x18] sm:$0xff]
    %v1242 = vld [vmem:[%s6] sm:$0xff]
    %vm1243 = vcmask 64512
    %v1245 = vsel %vm1243, %v1235, 0
    %1247 = vmatprep.subr.mxu0 0.0
    %1248 = vmatpush1.msra.mxu0 0.0
    %1249 = vmatprep.subr.mxu0 0.0
    %1250 = vmatpush1.msra.mxu0 0.0
    %1251 = vmatprep.subr.mxu0 0.0
    %1252 = vmatpush1.msra.mxu0 0.0
    %1253 = vmatprep.subr.mxu0 0.0
    %1254 = vmatpush1.msra.mxu0 0.0
    %1255 = vmatprep.subr.mxu0 0.0
    %1256 = vmatpush1.msra.mxu0 0.0
    %1257 = vmatprep.subr.mxu0 0.0
    %1258 = vmatpush1.msra.mxu0 0.0
    %1259 = vmatprep.subr.mxu0 0.0
    %1260 = vmatpush1.msra.mxu0 0.0
    %1261 = vmatprep.subr.mxu0 0.0
    %1262 = vmatpush1.msra.mxu0 0.0
    %1263 = vmatprep.subr.mxu0 0.0
    %1264 = vmatpush1.msra.mxu0 0.0
    %1265 = vmatprep.subr.mxu0 0.0
    %1266 = vmatpush1.msra.mxu0 0.0
    %1267 = vmatprep.subr.mxu0 0.0
    %1268 = vmatpush1.msra.mxu0 0.0
    %1269 = vmatprep.subr.mxu0 0.0
    %1270 = vmatpush1.msra.mxu0 0.0
    %1271 = vmatprep.subr.mxu0 0.0
    %1272 = vmatpush1.msra.mxu0 0.0
    %1273 = vmatprep.subr.mxu0 0.0
    %1274 = vmatpush1.msra.mxu0 0.0
    %1275 = vmatprep.subr.mxu0 0.0
    %1276 = vmatpush1.msra.mxu0 0.0
    %1277 = vmatprep.subr.mxu0 0.0
    %v1278 = vand.u32 %v1242, 4294901760
    %1279 = vmatpush1.msra.mxu0 %v1278
    %1280 = vmatprep.subr.mxu0 0.0
    %1281 = vmatpush2.msra.mxu0 0.0
    %1282 = vmatprep.subr.mxu0 0.0
    %1283 = vmatpush2.msra.mxu0 0.0
    %1284 = vmatprep.subr.mxu0 0.0
    %1285 = vmatpush2.msra.mxu0 0.0
    %1286 = vmatprep.subr.mxu0 0.0
    %1287 = vmatpush2.msra.mxu0 0.0
    %1288 = vmatprep.subr.mxu0 0.0
    %1289 = vmatpush2.msra.mxu0 0.0
    %1290 = vmatprep.subr.mxu0 0.0
    %1291 = vmatpush2.msra.mxu0 0.0
    %1292 = vmatprep.subr.mxu0 0.0
    %1293 = vmatpush2.msra.mxu0 0.0
    %1294 = vmatprep.subr.mxu0 0.0
    %1295 = vmatpush2.msra.mxu0 0.0
    %1296 = vmatprep.subr.mxu0 0.0
    %1297 = vmatpush2.msra.mxu0 0.0
    %1298 = vmatprep.subr.mxu0 0.0
    %1299 = vmatpush2.msra.mxu0 0.0
    %1300 = vmatprep.subr.mxu0 0.0
    %1301 = vmatpush2.msra.mxu0 0.0
    %1302 = vmatprep.subr.mxu0 0.0
    %1303 = vmatpush2.msra.mxu0 0.0
    %1304 = vmatprep.subr.mxu0 0.0
    %1305 = vmatpush2.msra.mxu0 0.0
    %1306 = vmatprep.subr.mxu0 0.0
    %1307 = vmatpush2.msra.mxu0 0.0
    %1308 = vmatprep.subr.mxu0 0.0
    %1309 = vmatpush2.msra.mxu0 0.0
    %1310 = vmatprep.subr.mxu0 0.0
    %1311 = vmatpush2.msra.mxu0 0.0
    %1312 = vmatprep.mubr.f32.mxu0 0.0
    %v1313 = vand.u32 %v1245, 4294901760
    %v1314 = vsub.f32 %v1245, %v1313
    %v1315 = vand.u32 %v1314, 4294901760
    %v1316 = vsub.f32 %v1314, %v1315
    %v1317 = vand.u32 %v1316, 4294901760
    %1318 = vmatmul.mubr.f32.gmra.mxu0 %v1317
    %v1319 = vpop.f32.mrf.mxu0
    %v1320 = vadd.f32 0.0, %v1319
    %v1321 = vpop.f32.mrf.mxu0
    %1322 = vdwg.mxu0
    %1323 = vmatprep.subr.mxu0 0.0
    %1324 = vmatpush1.msra.mxu0 0.0
    %1325 = vmatprep.subr.mxu0 0.0
    %1326 = vmatpush1.msra.mxu0 0.0
    %1327 = vmatprep.subr.mxu0 0.0
    %1328 = vmatpush1.msra.mxu0 0.0
    %1329 = vmatprep.subr.mxu0 0.0
    %1330 = vmatpush1.msra.mxu0 0.0
    %1331 = vmatprep.subr.mxu0 0.0
    %1332 = vmatpush1.msra.mxu0 0.0
    %1333 = vmatprep.subr.mxu0 0.0
    %1334 = vmatpush1.msra.mxu0 0.0
    %1335 = vmatprep.subr.mxu0 0.0
    %1336 = vmatpush1.msra.mxu0 0.0
    %1337 = vmatprep.subr.mxu0 0.0
    %1338 = vmatpush1.msra.mxu0 0.0
    %1339 = vmatprep.subr.mxu0 0.0
    %1340 = vmatpush1.msra.mxu0 0.0
    %1341 = vmatprep.subr.mxu0 0.0
    %1342 = vmatpush1.msra.mxu0 0.0
    %1343 = vmatprep.subr.mxu0 0.0
    %1344 = vmatpush1.msra.mxu0 0.0
    %1345 = vmatprep.subr.mxu0 0.0
    %1346 = vmatpush1.msra.mxu0 0.0
    %1347 = vmatprep.subr.mxu0 0.0
    %1348 = vmatpush1.msra.mxu0 0.0
    %1349 = vmatprep.subr.mxu0 0.0
    %1350 = vmatpush1.msra.mxu0 0.0
    %1351 = vmatprep.subr.mxu0 0.0
    %1352 = vmatpush1.msra.mxu0 0.0
    %1353 = vmatprep.subr.mxu0 0.0
    %v1354 = vand.u32 %v1242, 4294901760
    %v1355 = vsub.f32 %v1242, %v1354
    %v1356 = vand.u32 %v1355, 4294901760
    %v1357 = vsub.f32 %v1355, %v1356
    %v1358 = vand.u32 %v1357, 4294901760
    %1359 = vmatpush1.msra.mxu0 %v1358
    %1360 = vmatprep.subr.mxu0 0.0
    %1361 = vmatpush2.msra.mxu0 0.0
    %1362 = vmatprep.subr.mxu0 0.0
    %1363 = vmatpush2.msra.mxu0 0.0
    %1364 = vmatprep.subr.mxu0 0.0
    %1365 = vmatpush2.msra.mxu0 0.0
    %1366 = vmatprep.subr.mxu0 0.0
    %1367 = vmatpush2.msra.mxu0 0.0
    %1368 = vmatprep.subr.mxu0 0.0
    %1369 = vmatpush2.msra.mxu0 0.0
    %1370 = vmatprep.subr.mxu0 0.0
    %1371 = vmatpush2.msra.mxu0 0.0
    %1372 = vmatprep.subr.mxu0 0.0
    %1373 = vmatpush2.msra.mxu0 0.0
    %1374 = vmatprep.subr.mxu0 0.0
    %1375 = vmatpush2.msra.mxu0 0.0
    %1376 = vmatprep.subr.mxu0 0.0
    %1377 = vmatpush2.msra.mxu0 0.0
    %1378 = vmatprep.subr.mxu0 0.0
    %1379 = vmatpush2.msra.mxu0 0.0
    %1380 = vmatprep.subr.mxu0 0.0
    %1381 = vmatpush2.msra.mxu0 0.0
    %1382 = vmatprep.subr.mxu0 0.0
    %1383 = vmatpush2.msra.mxu0 0.0
    %1384 = vmatprep.subr.mxu0 0.0
    %1385 = vmatpush2.msra.mxu0 0.0
    %1386 = vmatprep.subr.mxu0 0.0
    %1387 = vmatpush2.msra.mxu0 0.0
    %1388 = vmatprep.subr.mxu0 0.0
    %1389 = vmatpush2.msra.mxu0 0.0
    %1390 = vmatprep.subr.mxu0 0.0
    %1391 = vmatpush2.msra.mxu0 0.0
    %1392 = vmatprep.mubr.f32.mxu0 0.0
    %v1393 = vand.u32 %v1245, 4294901760
    %1394 = vmatmul.mubr.f32.gmra.mxu0 %v1393
    %v1395 = vpop.f32.mrf.mxu0
    %v1396 = vadd.f32 %v1320, %v1395
    %v1397 = vpop.f32.mrf.mxu0
    %1398 = vdwg.mxu0
    %1399 = vmatprep.subr.mxu0 0.0
    %1400 = vmatpush1.msra.mxu0 0.0
    %1401 = vmatprep.subr.mxu0 0.0
    %1402 = vmatpush1.msra.mxu0 0.0
    %1403 = vmatprep.subr.mxu0 0.0
    %1404 = vmatpush1.msra.mxu0 0.0
    %1405 = vmatprep.subr.mxu0 0.0
    %1406 = vmatpush1.msra.mxu0 0.0
    %1407 = vmatprep.subr.mxu0 0.0
    %1408 = vmatpush1.msra.mxu0 0.0
    %1409 = vmatprep.subr.mxu0 0.0
    %1410 = vmatpush1.msra.mxu0 0.0
    %1411 = vmatprep.subr.mxu0 0.0
    %1412 = vmatpush1.msra.mxu0 0.0
    %1413 = vmatprep.subr.mxu0 0.0
    %1414 = vmatpush1.msra.mxu0 0.0
    %1415 = vmatprep.subr.mxu0 0.0
    %1416 = vmatpush1.msra.mxu0 0.0
    %1417 = vmatprep.subr.mxu0 0.0
    %1418 = vmatpush1.msra.mxu0 0.0
    %1419 = vmatprep.subr.mxu0 0.0
    %1420 = vmatpush1.msra.mxu0 0.0
    %1421 = vmatprep.subr.mxu0 0.0
    %1422 = vmatpush1.msra.mxu0 0.0
    %1423 = vmatprep.subr.mxu0 0.0
    %1424 = vmatpush1.msra.mxu0 0.0
    %1425 = vmatprep.subr.mxu0 0.0
    %1426 = vmatpush1.msra.mxu0 0.0
    %1427 = vmatprep.subr.mxu0 0.0
    %1428 = vmatpush1.msra.mxu0 0.0
    %1429 = vmatprep.subr.mxu0 0.0
    %v1430 = vand.u32 %v1242, 4294901760
    %v1431 = vsub.f32 %v1242, %v1430
    %1432 = vmatpush1.msra.mxu0 %v1431
    %1433 = vmatprep.subr.mxu0 0.0
    %1434 = vmatpush2.msra.mxu0 0.0
    %1435 = vmatprep.subr.mxu0 0.0
    %1436 = vmatpush2.msra.mxu0 0.0
    %1437 = vmatprep.subr.mxu0 0.0
    %1438 = vmatpush2.msra.mxu0 0.0
    %1439 = vmatprep.subr.mxu0 0.0
    %1440 = vmatpush2.msra.mxu0 0.0
    %1441 = vmatprep.subr.mxu0 0.0
    %1442 = vmatpush2.msra.mxu0 0.0
    %1443 = vmatprep.subr.mxu0 0.0
    %1444 = vmatpush2.msra.mxu0 0.0
    %1445 = vmatprep.subr.mxu0 0.0
    %1446 = vmatpush2.msra.mxu0 0.0
    %1447 = vmatprep.subr.mxu0 0.0
    %1448 = vmatpush2.msra.mxu0 0.0
    %1449 = vmatprep.subr.mxu0 0.0
    %1450 = vmatpush2.msra.mxu0 0.0
    %1451 = vmatprep.subr.mxu0 0.0
    %1452 = vmatpush2.msra.mxu0 0.0
    %1453 = vmatprep.subr.mxu0 0.0
    %1454 = vmatpush2.msra.mxu0 0.0
    %1455 = vmatprep.subr.mxu0 0.0
    %1456 = vmatpush2.msra.mxu0 0.0
    %1457 = vmatprep.subr.mxu0 0.0
    %1458 = vmatpush2.msra.mxu0 0.0
    %1459 = vmatprep.subr.mxu0 0.0
    %1460 = vmatpush2.msra.mxu0 0.0
    %1461 = vmatprep.subr.mxu0 0.0
    %1462 = vmatpush2.msra.mxu0 0.0
    %1463 = vmatprep.subr.mxu0 0.0
    %1464 = vmatpush2.msra.mxu0 0.0
    %1465 = vmatprep.mubr.f32.mxu0 0.0
    %v1466 = vand.u32 %v1245, 4294901760
    %v1467 = vsub.f32 %v1245, %v1466
    %1468 = vmatmul.mubr.f32.gmra.mxu0 %v1467
    %v1469 = vpop.f32.mrf.mxu0
    %v1470 = vadd.f32 %v1396, %v1469
    %v1471 = vpop.f32.mrf.mxu0
    %1472 = vdwg.mxu0
    %1473 = vmatprep.subr.mxu0 0.0
    %1474 = vmatpush1.msra.mxu0 0.0
    %1475 = vmatprep.subr.mxu0 0.0
    %1476 = vmatpush1.msra.mxu0 0.0
    %1477 = vmatprep.subr.mxu0 0.0
    %1478 = vmatpush1.msra.mxu0 0.0
    %1479 = vmatprep.subr.mxu0 0.0
    %1480 = vmatpush1.msra.mxu0 0.0
    %1481 = vmatprep.subr.mxu0 0.0
    %1482 = vmatpush1.msra.mxu0 0.0
    %1483 = vmatprep.subr.mxu0 0.0
    %1484 = vmatpush1.msra.mxu0 0.0
    %1485 = vmatprep.subr.mxu0 0.0
    %1486 = vmatpush1.msra.mxu0 0.0
    %1487 = vmatprep.subr.mxu0 0.0
    %1488 = vmatpush1.msra.mxu0 0.0
    %1489 = vmatprep.subr.mxu0 0.0
    %1490 = vmatpush1.msra.mxu0 0.0
    %1491 = vmatprep.subr.mxu0 0.0
    %1492 = vmatpush1.msra.mxu0 0.0
    %1493 = vmatprep.subr.mxu0 0.0
    %1494 = vmatpush1.msra.mxu0 0.0
    %1495 = vmatprep.subr.mxu0 0.0
    %1496 = vmatpush1.msra.mxu0 0.0
    %1497 = vmatprep.subr.mxu0 0.0
    %1498 = vmatpush1.msra.mxu0 0.0
    %1499 = vmatprep.subr.mxu0 0.0
    %1500 = vmatpush1.msra.mxu0 0.0
    %1501 = vmatprep.subr.mxu0 0.0
    %1502 = vmatpush1.msra.mxu0 0.0
    %1503 = vmatprep.subr.mxu0 0.0
    %v1504 = vand.u32 %v1242, 4294901760
    %1505 = vmatpush1.msra.mxu0 %v1504
    %1506 = vmatprep.subr.mxu0 0.0
    %1507 = vmatpush2.msra.mxu0 0.0
    %1508 = vmatprep.subr.mxu0 0.0
    %1509 = vmatpush2.msra.mxu0 0.0
    %1510 = vmatprep.subr.mxu0 0.0
    %1511 = vmatpush2.msra.mxu0 0.0
    %1512 = vmatprep.subr.mxu0 0.0
    %1513 = vmatpush2.msra.mxu0 0.0
    %1514 = vmatprep.subr.mxu0 0.0
    %1515 = vmatpush2.msra.mxu0 0.0
    %1516 = vmatprep.subr.mxu0 0.0
    %1517 = vmatpush2.msra.mxu0 0.0
    %1518 = vmatprep.subr.mxu0 0.0
    %1519 = vmatpush2.msra.mxu0 0.0
    %1520 = vmatprep.subr.mxu0 0.0
    %1521 = vmatpush2.msra.mxu0 0.0
    %1522 = vmatprep.subr.mxu0 0.0
    %1523 = vmatpush2.msra.mxu0 0.0
    %1524 = vmatprep.subr.mxu0 0.0
    %1525 = vmatpush2.msra.mxu0 0.0
    %1526 = vmatprep.subr.mxu0 0.0
    %1527 = vmatpush2.msra.mxu0 0.0
    %1528 = vmatprep.subr.mxu0 0.0
    %1529 = vmatpush2.msra.mxu0 0.0
    %1530 = vmatprep.subr.mxu0 0.0
    %1531 = vmatpush2.msra.mxu0 0.0
    %1532 = vmatprep.subr.mxu0 0.0
    %1533 = vmatpush2.msra.mxu0 0.0
    %1534 = vmatprep.subr.mxu0 0.0
    %1535 = vmatpush2.msra.mxu0 0.0
    %1536 = vmatprep.subr.mxu0 0.0
    %1537 = vmatpush2.msra.mxu0 0.0
    %1538 = vmatprep.mubr.f32.mxu0 0.0
    %v1539 = vand.u32 %v1245, 4294901760
    %v1540 = vsub.f32 %v1245, %v1539
    %v1541 = vand.u32 %v1540, 4294901760
    %1542 = vmatmul.mubr.f32.gmra.mxu0 %v1541
    %v1543 = vpop.f32.mrf.mxu0
    %v1544 = vadd.f32 %v1470, %v1543
    %v1545 = vpop.f32.mrf.mxu0
    %1546 = vdwg.mxu0
    %1547 = vmatprep.subr.mxu0 0.0
    %1548 = vmatpush1.msra.mxu0 0.0
    %1549 = vmatprep.subr.mxu0 0.0
    %1550 = vmatpush1.msra.mxu0 0.0
    %1551 = vmatprep.subr.mxu0 0.0
    %1552 = vmatpush1.msra.mxu0 0.0
    %1553 = vmatprep.subr.mxu0 0.0
    %1554 = vmatpush1.msra.mxu0 0.0
    %1555 = vmatprep.subr.mxu0 0.0
    %1556 = vmatpush1.msra.mxu0 0.0
    %1557 = vmatprep.subr.mxu0 0.0
    %1558 = vmatpush1.msra.mxu0 0.0
    %1559 = vmatprep.subr.mxu0 0.0
    %1560 = vmatpush1.msra.mxu0 0.0
    %1561 = vmatprep.subr.mxu0 0.0
    %1562 = vmatpush1.msra.mxu0 0.0
    %1563 = vmatprep.subr.mxu0 0.0
    %1564 = vmatpush1.msra.mxu0 0.0
    %1565 = vmatprep.subr.mxu0 0.0
    %1566 = vmatpush1.msra.mxu0 0.0
    %1567 = vmatprep.subr.mxu0 0.0
    %1568 = vmatpush1.msra.mxu0 0.0
    %1569 = vmatprep.subr.mxu0 0.0
    %1570 = vmatpush1.msra.mxu0 0.0
    %1571 = vmatprep.subr.mxu0 0.0
    %1572 = vmatpush1.msra.mxu0 0.0
    %1573 = vmatprep.subr.mxu0 0.0
    %1574 = vmatpush1.msra.mxu0 0.0
    %1575 = vmatprep.subr.mxu0 0.0
    %1576 = vmatpush1.msra.mxu0 0.0
    %1577 = vmatprep.subr.mxu0 0.0
    %v1578 = vand.u32 %v1242, 4294901760
    %v1579 = vsub.f32 %v1242, %v1578
    %v1580 = vand.u32 %v1579, 4294901760
    %1581 = vmatpush1.msra.mxu0 %v1580
    %1582 = vmatprep.subr.mxu0 0.0
    %1583 = vmatpush2.msra.mxu0 0.0
    %1584 = vmatprep.subr.mxu0 0.0
    %1585 = vmatpush2.msra.mxu0 0.0
    %1586 = vmatprep.subr.mxu0 0.0
    %1587 = vmatpush2.msra.mxu0 0.0
    %1588 = vmatprep.subr.mxu0 0.0
    %1589 = vmatpush2.msra.mxu0 0.0
    %1590 = vmatprep.subr.mxu0 0.0
    %1591 = vmatpush2.msra.mxu0 0.0
    %1592 = vmatprep.subr.mxu0 0.0
    %1593 = vmatpush2.msra.mxu0 0.0
    %1594 = vmatprep.subr.mxu0 0.0
    %1595 = vmatpush2.msra.mxu0 0.0
    %1596 = vmatprep.subr.mxu0 0.0
    %1597 = vmatpush2.msra.mxu0 0.0
    %1598 = vmatprep.subr.mxu0 0.0
    %1599 = vmatpush2.msra.mxu0 0.0
    %1600 = vmatprep.subr.mxu0 0.0
    %1601 = vmatpush2.msra.mxu0 0.0
    %1602 = vmatprep.subr.mxu0 0.0
    %1603 = vmatpush2.msra.mxu0 0.0
    %1604 = vmatprep.subr.mxu0 0.0
    %1605 = vmatpush2.msra.mxu0 0.0
    %1606 = vmatprep.subr.mxu0 0.0
    %1607 = vmatpush2.msra.mxu0 0.0
    %1608 = vmatprep.subr.mxu0 0.0
    %1609 = vmatpush2.msra.mxu0 0.0
    %1610 = vmatprep.subr.mxu0 0.0
    %1611 = vmatpush2.msra.mxu0 0.0
    %1612 = vmatprep.subr.mxu0 0.0
    %1613 = vmatpush2.msra.mxu0 0.0
    %1614 = vmatprep.mubr.f32.mxu0 0.0
    %v1615 = vand.u32 %v1245, 4294901760
    %1616 = vmatmul.mubr.f32.gmra.mxu0 %v1615
    %v1617 = vpop.f32.mrf.mxu0
    %v1618 = vadd.f32 %v1544, %v1617
    %v1619 = vpop.f32.mrf.mxu0
    %1620 = vdwg.mxu0
    %1621 = vmatprep.subr.mxu0 0.0
    %1622 = vmatpush1.msra.mxu0 0.0
    %1623 = vmatprep.subr.mxu0 0.0
    %1624 = vmatpush1.msra.mxu0 0.0
    %1625 = vmatprep.subr.mxu0 0.0
    %1626 = vmatpush1.msra.mxu0 0.0
    %1627 = vmatprep.subr.mxu0 0.0
    %1628 = vmatpush1.msra.mxu0 0.0
    %1629 = vmatprep.subr.mxu0 0.0
    %1630 = vmatpush1.msra.mxu0 0.0
    %1631 = vmatprep.subr.mxu0 0.0
    %1632 = vmatpush1.msra.mxu0 0.0
    %1633 = vmatprep.subr.mxu0 0.0
    %1634 = vmatpush1.msra.mxu0 0.0
    %1635 = vmatprep.subr.mxu0 0.0
    %1636 = vmatpush1.msra.mxu0 0.0
    %1637 = vmatprep.subr.mxu0 0.0
    %1638 = vmatpush1.msra.mxu0 0.0
    %1639 = vmatprep.subr.mxu0 0.0
    %1640 = vmatpush1.msra.mxu0 0.0
    %1641 = vmatprep.subr.mxu0 0.0
    %1642 = vmatpush1.msra.mxu0 0.0
    %1643 = vmatprep.subr.mxu0 0.0
    %1644 = vmatpush1.msra.mxu0 0.0
    %1645 = vmatprep.subr.mxu0 0.0
    %1646 = vmatpush1.msra.mxu0 0.0
    %1647 = vmatprep.subr.mxu0 0.0
    %1648 = vmatpush1.msra.mxu0 0.0
    %1649 = vmatprep.subr.mxu0 0.0
    %1650 = vmatpush1.msra.mxu0 0.0
    %1651 = vmatprep.subr.mxu0 0.0
    %v1652 = vand.u32 %v1242, 4294901760
    %1653 = vmatpush1.msra.mxu0 %v1652
    %1654 = vmatprep.subr.mxu0 0.0
    %1655 = vmatpush2.msra.mxu0 0.0
    %1656 = vmatprep.subr.mxu0 0.0
    %1657 = vmatpush2.msra.mxu0 0.0
    %1658 = vmatprep.subr.mxu0 0.0
    %1659 = vmatpush2.msra.mxu0 0.0
    %1660 = vmatprep.subr.mxu0 0.0
    %1661 = vmatpush2.msra.mxu0 0.0
    %1662 = vmatprep.subr.mxu0 0.0
    %1663 = vmatpush2.msra.mxu0 0.0
    %1664 = vmatprep.subr.mxu0 0.0
    %1665 = vmatpush2.msra.mxu0 0.0
    %1666 = vmatprep.subr.mxu0 0.0
    %1667 = vmatpush2.msra.mxu0 0.0
    %1668 = vmatprep.subr.mxu0 0.0
    %1669 = vmatpush2.msra.mxu0 0.0
    %1670 = vmatprep.subr.mxu0 0.0
    %1671 = vmatpush2.msra.mxu0 0.0
    %1672 = vmatprep.subr.mxu0 0.0
    %1673 = vmatpush2.msra.mxu0 0.0
    %1674 = vmatprep.subr.mxu0 0.0
    %1675 = vmatpush2.msra.mxu0 0.0
    %1676 = vmatprep.subr.mxu0 0.0
    %1677 = vmatpush2.msra.mxu0 0.0
    %1678 = vmatprep.subr.mxu0 0.0
    %1679 = vmatpush2.msra.mxu0 0.0
    %1680 = vmatprep.subr.mxu0 0.0
    %1681 = vmatpush2.msra.mxu0 0.0
    %1682 = vmatprep.subr.mxu0 0.0
    %1683 = vmatpush2.msra.mxu0 0.0
    %1684 = vmatprep.subr.mxu0 0.0
    %1685 = vmatpush2.msra.mxu0 0.0
    %1686 = vmatprep.mubr.f32.mxu0 0.0
    %v1687 = vand.u32 %v1245, 4294901760
    %1688 = vmatmul.mubr.f32.gmra.mxu0 %v1687
    %v1689 = vpop.f32.mrf.mxu0
    %v1690 = vadd.f32 %v1618, %v1689
    %v1691 = vpop.f32.mrf.mxu0
    %1692 = vdwg.mxu0
    %1693 = vmatprep.subr.mxu0 0.0
    %1694 = vmatpush1.msra.mxu0 0.0
    %1695 = vmatprep.subr.mxu0 0.0
    %1696 = vmatpush1.msra.mxu0 0.0
    %1697 = vmatprep.subr.mxu0 0.0
    %1698 = vmatpush1.msra.mxu0 0.0
    %1699 = vmatprep.subr.mxu0 0.0
    %1700 = vmatpush1.msra.mxu0 0.0
    %1701 = vmatprep.subr.mxu0 0.0
    %1702 = vmatpush1.msra.mxu0 0.0
    %1703 = vmatprep.subr.mxu0 0.0
    %1704 = vmatpush1.msra.mxu0 0.0
    %1705 = vmatprep.subr.mxu0 0.0
    %1706 = vmatpush1.msra.mxu0 0.0
    %1707 = vmatprep.subr.mxu0 0.0
    %1708 = vmatpush1.msra.mxu0 0.0
    %1709 = vmatprep.subr.mxu0 0.0
    %1710 = vmatpush1.msra.mxu0 0.0
    %1711 = vmatprep.subr.mxu0 0.0
    %1712 = vmatpush1.msra.mxu0 0.0
    %1713 = vmatprep.subr.mxu0 0.0
    %1714 = vmatpush1.msra.mxu0 0.0
    %1715 = vmatprep.subr.mxu0 0.0
    %1716 = vmatpush1.msra.mxu0 0.0
    %1717 = vmatprep.subr.mxu0 0.0
    %v1718 = vand.u32 %v1241, 4294901760
    %1719 = vmatpush1.msra.mxu0 %v1718
    %1720 = vmatprep.subr.mxu0 0.0
    %v1721 = vand.u32 %v1240, 4294901760
    %1722 = vmatpush1.msra.mxu0 %v1721
    %1723 = vmatprep.subr.mxu0 0.0
    %v1724 = vand.u32 %v1239, 4294901760
    %1725 = vmatpush1.msra.mxu0 %v1724
    %1726 = vmatprep.subr.mxu0 0.0
    %v1727 = vand.u32 %v1238, 4294901760
    %1728 = vmatpush1.msra.mxu0 %v1727
    %1729 = vmatprep.subr.mxu0 0.0
    %1730 = vmatpush2.msra.mxu0 0.0
    %1731 = vmatprep.subr.mxu0 0.0
    %1732 = vmatpush2.msra.mxu0 0.0
    %1733 = vmatprep.subr.mxu0 0.0
    %1734 = vmatpush2.msra.mxu0 0.0
    %1735 = vmatprep.subr.mxu0 0.0
    %1736 = vmatpush2.msra.mxu0 0.0
    %1737 = vmatprep.subr.mxu0 0.0
    %1738 = vmatpush2.msra.mxu0 0.0
    %1739 = vmatprep.subr.mxu0 0.0
    %1740 = vmatpush2.msra.mxu0 0.0
    %1741 = vmatprep.subr.mxu0 0.0
    %1742 = vmatpush2.msra.mxu0 0.0
    %1743 = vmatprep.subr.mxu0 0.0
    %1744 = vmatpush2.msra.mxu0 0.0
    %1745 = vmatprep.subr.mxu0 0.0
    %1746 = vmatpush2.msra.mxu0 0.0
    %1747 = vmatprep.subr.mxu0 0.0
    %1748 = vmatpush2.msra.mxu0 0.0
    %1749 = vmatprep.subr.mxu0 0.0
    %1750 = vmatpush2.msra.mxu0 0.0
    %1751 = vmatprep.subr.mxu0 0.0
    %1752 = vmatpush2.msra.mxu0 0.0
    %1753 = vmatprep.subr.mxu0 0.0
    %1754 = vmatpush2.msra.mxu0 0.0
    %1755 = vmatprep.subr.mxu0 0.0
    %1756 = vmatpush2.msra.mxu0 0.0
    %1757 = vmatprep.subr.mxu0 0.0
    %1758 = vmatpush2.msra.mxu0 0.0
    %1759 = vmatprep.subr.mxu0 0.0
    %1760 = vmatpush2.msra.mxu0 0.0
    %1761 = vmatprep.mubr.f32.mxu0 0.0
    %v1762 = vand.u32 %v183, 4294901760
    %v1763 = vsub.f32 %v183, %v1762
    %v1764 = vand.u32 %v1763, 4294901760
    %v1765 = vsub.f32 %v1763, %v1764
    %v1766 = vand.u32 %v1765, 4294901760
    %1767 = vmatmul.mubr.f32.gmra.mxu0 %v1766
    %v1768 = vpop.f32.mrf.mxu0
    %v1769 = vadd.f32 %v1690, %v1768
    %v1770 = vpop.f32.mrf.mxu0
    %1771 = vdwg.mxu0
    %1772 = vmatprep.subr.mxu0 0.0
    %1773 = vmatpush1.msra.mxu0 0.0
    %1774 = vmatprep.subr.mxu0 0.0
    %1775 = vmatpush1.msra.mxu0 0.0
    %1776 = vmatprep.subr.mxu0 0.0
    %1777 = vmatpush1.msra.mxu0 0.0
    %1778 = vmatprep.subr.mxu0 0.0
    %1779 = vmatpush1.msra.mxu0 0.0
    %1780 = vmatprep.subr.mxu0 0.0
    %1781 = vmatpush1.msra.mxu0 0.0
    %1782 = vmatprep.subr.mxu0 0.0
    %1783 = vmatpush1.msra.mxu0 0.0
    %1784 = vmatprep.subr.mxu0 0.0
    %1785 = vmatpush1.msra.mxu0 0.0
    %1786 = vmatprep.subr.mxu0 0.0
    %1787 = vmatpush1.msra.mxu0 0.0
    %1788 = vmatprep.subr.mxu0 0.0
    %1789 = vmatpush1.msra.mxu0 0.0
    %1790 = vmatprep.subr.mxu0 0.0
    %1791 = vmatpush1.msra.mxu0 0.0
    %1792 = vmatprep.subr.mxu0 0.0
    %1793 = vmatpush1.msra.mxu0 0.0
    %1794 = vmatprep.subr.mxu0 0.0
    %1795 = vmatpush1.msra.mxu0 0.0
    %1796 = vmatprep.subr.mxu0 0.0
    %v1797 = vand.u32 %v1241, 4294901760
    %v1798 = vsub.f32 %v1241, %v1797
    %v1799 = vand.u32 %v1798, 4294901760
    %v1800 = vsub.f32 %v1798, %v1799
    %v1801 = vand.u32 %v1800, 4294901760
    %1802 = vmatpush1.msra.mxu0 %v1801
    %1803 = vmatprep.subr.mxu0 0.0
    %v1804 = vand.u32 %v1240, 4294901760
    %v1805 = vsub.f32 %v1240, %v1804
    %v1806 = vand.u32 %v1805, 4294901760
    %v1807 = vsub.f32 %v1805, %v1806
    %v1808 = vand.u32 %v1807, 4294901760
    %1809 = vmatpush1.msra.mxu0 %v1808
    %1810 = vmatprep.subr.mxu0 0.0
    %v1811 = vand.u32 %v1239, 4294901760
    %v1812 = vsub.f32 %v1239, %v1811
    %v1813 = vand.u32 %v1812, 4294901760
    %v1814 = vsub.f32 %v1812, %v1813
    %v1815 = vand.u32 %v1814, 4294901760
    %1816 = vmatpush1.msra.mxu0 %v1815
    %1817 = vmatprep.subr.mxu0 0.0
    %v1818 = vand.u32 %v1238, 4294901760
    %v1819 = vsub.f32 %v1238, %v1818
    %v1820 = vand.u32 %v1819, 4294901760
    %v1821 = vsub.f32 %v1819, %v1820
    %v1822 = vand.u32 %v1821, 4294901760
    %1823 = vmatpush1.msra.mxu0 %v1822
    %1824 = vmatprep.subr.mxu0 0.0
    %1825 = vmatpush2.msra.mxu0 0.0
    %1826 = vmatprep.subr.mxu0 0.0
    %1827 = vmatpush2.msra.mxu0 0.0
    %1828 = vmatprep.subr.mxu0 0.0
    %1829 = vmatpush2.msra.mxu0 0.0
    %1830 = vmatprep.subr.mxu0 0.0
    %1831 = vmatpush2.msra.mxu0 0.0
    %1832 = vmatprep.subr.mxu0 0.0
    %1833 = vmatpush2.msra.mxu0 0.0
    %1834 = vmatprep.subr.mxu0 0.0
    %1835 = vmatpush2.msra.mxu0 0.0
    %1836 = vmatprep.subr.mxu0 0.0
    %1837 = vmatpush2.msra.mxu0 0.0
    %1838 = vmatprep.subr.mxu0 0.0
    %1839 = vmatpush2.msra.mxu0 0.0
    %1840 = vmatprep.subr.mxu0 0.0
    %1841 = vmatpush2.msra.mxu0 0.0
    %1842 = vmatprep.subr.mxu0 0.0
    %1843 = vmatpush2.msra.mxu0 0.0
    %1844 = vmatprep.subr.mxu0 0.0
    %1845 = vmatpush2.msra.mxu0 0.0
    %1846 = vmatprep.subr.mxu0 0.0
    %1847 = vmatpush2.msra.mxu0 0.0
    %1848 = vmatprep.subr.mxu0 0.0
    %1849 = vmatpush2.msra.mxu0 0.0
    %1850 = vmatprep.subr.mxu0 0.0
    %1851 = vmatpush2.msra.mxu0 0.0
    %1852 = vmatprep.subr.mxu0 0.0
    %1853 = vmatpush2.msra.mxu0 0.0
    %1854 = vmatprep.subr.mxu0 0.0
    %1855 = vmatpush2.msra.mxu0 0.0
    %1856 = vmatprep.mubr.f32.mxu0 0.0
    %v1857 = vand.u32 %v183, 4294901760
    %1858 = vmatmul.mubr.f32.gmra.mxu0 %v1857
    %v1859 = vpop.f32.mrf.mxu0
    %v1860 = vadd.f32 %v1769, %v1859
    %v1861 = vpop.f32.mrf.mxu0
    %1862 = vdwg.mxu0
    %1863 = vmatprep.subr.mxu0 0.0
    %1864 = vmatpush1.msra.mxu0 0.0
    %1865 = vmatprep.subr.mxu0 0.0
    %1866 = vmatpush1.msra.mxu0 0.0
    %1867 = vmatprep.subr.mxu0 0.0
    %1868 = vmatpush1.msra.mxu0 0.0
    %1869 = vmatprep.subr.mxu0 0.0
    %1870 = vmatpush1.msra.mxu0 0.0
    %1871 = vmatprep.subr.mxu0 0.0
    %1872 = vmatpush1.msra.mxu0 0.0
    %1873 = vmatprep.subr.mxu0 0.0
    %1874 = vmatpush1.msra.mxu0 0.0
    %1875 = vmatprep.subr.mxu0 0.0
    %1876 = vmatpush1.msra.mxu0 0.0
    %1877 = vmatprep.subr.mxu0 0.0
    %1878 = vmatpush1.msra.mxu0 0.0
    %1879 = vmatprep.subr.mxu0 0.0
    %1880 = vmatpush1.msra.mxu0 0.0
    %1881 = vmatprep.subr.mxu0 0.0
    %1882 = vmatpush1.msra.mxu0 0.0
    %1883 = vmatprep.subr.mxu0 0.0
    %1884 = vmatpush1.msra.mxu0 0.0
    %1885 = vmatprep.subr.mxu0 0.0
    %1886 = vmatpush1.msra.mxu0 0.0
    %1887 = vmatprep.subr.mxu0 0.0
    %v1888 = vand.u32 %v1241, 4294901760
    %v1889 = vsub.f32 %v1241, %v1888
    %1890 = vmatpush1.msra.mxu0 %v1889
    %1891 = vmatprep.subr.mxu0 0.0
    %v1892 = vand.u32 %v1240, 4294901760
    %v1893 = vsub.f32 %v1240, %v1892
    %1894 = vmatpush1.msra.mxu0 %v1893
    %1895 = vmatprep.subr.mxu0 0.0
    %v1896 = vand.u32 %v1239, 4294901760
    %v1897 = vsub.f32 %v1239, %v1896
    %1898 = vmatpush1.msra.mxu0 %v1897
    %1899 = vmatprep.subr.mxu0 0.0
    %v1900 = vand.u32 %v1238, 4294901760
    %v1901 = vsub.f32 %v1238, %v1900
    %1902 = vmatpush1.msra.mxu0 %v1901
    %1903 = vmatprep.subr.mxu0 0.0
    %1904 = vmatpush2.msra.mxu0 0.0
    %1905 = vmatprep.subr.mxu0 0.0
    %1906 = vmatpush2.msra.mxu0 0.0
    %1907 = vmatprep.subr.mxu0 0.0
    %1908 = vmatpush2.msra.mxu0 0.0
    %1909 = vmatprep.subr.mxu0 0.0
    %1910 = vmatpush2.msra.mxu0 0.0
    %1911 = vmatprep.subr.mxu0 0.0
    %1912 = vmatpush2.msra.mxu0 0.0
    %1913 = vmatprep.subr.mxu0 0.0
    %1914 = vmatpush2.msra.mxu0 0.0
    %1915 = vmatprep.subr.mxu0 0.0
    %1916 = vmatpush2.msra.mxu0 0.0
    %1917 = vmatprep.subr.mxu0 0.0
    %1918 = vmatpush2.msra.mxu0 0.0
    %1919 = vmatprep.subr.mxu0 0.0
    %1920 = vmatpush2.msra.mxu0 0.0
    %1921 = vmatprep.subr.mxu0 0.0
    %1922 = vmatpush2.msra.mxu0 0.0
    %1923 = vmatprep.subr.mxu0 0.0
    %1924 = vmatpush2.msra.mxu0 0.0
    %1925 = vmatprep.subr.mxu0 0.0
    %1926 = vmatpush2.msra.mxu0 0.0
    %1927 = vmatprep.subr.mxu0 0.0
    %1928 = vmatpush2.msra.mxu0 0.0
    %1929 = vmatprep.subr.mxu0 0.0
    %1930 = vmatpush2.msra.mxu0 0.0
    %1931 = vmatprep.subr.mxu0 0.0
    %1932 = vmatpush2.msra.mxu0 0.0
    %1933 = vmatprep.subr.mxu0 0.0
    %1934 = vmatpush2.msra.mxu0 0.0
    %1935 = vmatprep.mubr.f32.mxu0 0.0
    %v1936 = vand.u32 %v183, 4294901760
    %v1937 = vsub.f32 %v183, %v1936
    %1938 = vmatmul.mubr.f32.gmra.mxu0 %v1937
    %v1939 = vpop.f32.mrf.mxu0
    %v1940 = vadd.f32 %v1860, %v1939
    %v1941 = vpop.f32.mrf.mxu0
    %1942 = vdwg.mxu0
    %1943 = vmatprep.subr.mxu0 0.0
    %1944 = vmatpush1.msra.mxu0 0.0
    %1945 = vmatprep.subr.mxu0 0.0
    %1946 = vmatpush1.msra.mxu0 0.0
    %1947 = vmatprep.subr.mxu0 0.0
    %1948 = vmatpush1.msra.mxu0 0.0
    %1949 = vmatprep.subr.mxu0 0.0
    %1950 = vmatpush1.msra.mxu0 0.0
    %1951 = vmatprep.subr.mxu0 0.0
    %1952 = vmatpush1.msra.mxu0 0.0
    %1953 = vmatprep.subr.mxu0 0.0
    %1954 = vmatpush1.msra.mxu0 0.0
    %1955 = vmatprep.subr.mxu0 0.0
    %1956 = vmatpush1.msra.mxu0 0.0
    %1957 = vmatprep.subr.mxu0 0.0
    %1958 = vmatpush1.msra.mxu0 0.0
    %1959 = vmatprep.subr.mxu0 0.0
    %1960 = vmatpush1.msra.mxu0 0.0
    %1961 = vmatprep.subr.mxu0 0.0
    %1962 = vmatpush1.msra.mxu0 0.0
    %1963 = vmatprep.subr.mxu0 0.0
    %1964 = vmatpush1.msra.mxu0 0.0
    %1965 = vmatprep.subr.mxu0 0.0
    %1966 = vmatpush1.msra.mxu0 0.0
    %1967 = vmatprep.subr.mxu0 0.0
    %v1968 = vand.u32 %v1241, 4294901760
    %1969 = vmatpush1.msra.mxu0 %v1968
    %1970 = vmatprep.subr.mxu0 0.0
    %v1971 = vand.u32 %v1240, 4294901760
    %1972 = vmatpush1.msra.mxu0 %v1971
    %1973 = vmatprep.subr.mxu0 0.0
    %v1974 = vand.u32 %v1239, 4294901760
    %1975 = vmatpush1.msra.mxu0 %v1974
    %1976 = vmatprep.subr.mxu0 0.0
    %v1977 = vand.u32 %v1238, 4294901760
    %1978 = vmatpush1.msra.mxu0 %v1977
    %1979 = vmatprep.subr.mxu0 0.0
    %1980 = vmatpush2.msra.mxu0 0.0
    %1981 = vmatprep.subr.mxu0 0.0
    %1982 = vmatpush2.msra.mxu0 0.0
    %1983 = vmatprep.subr.mxu0 0.0
    %1984 = vmatpush2.msra.mxu0 0.0
    %1985 = vmatprep.subr.mxu0 0.0
    %1986 = vmatpush2.msra.mxu0 0.0
    %1987 = vmatprep.subr.mxu0 0.0
    %1988 = vmatpush2.msra.mxu0 0.0
    %1989 = vmatprep.subr.mxu0 0.0
    %1990 = vmatpush2.msra.mxu0 0.0
    %1991 = vmatprep.subr.mxu0 0.0
    %1992 = vmatpush2.msra.mxu0 0.0
    %1993 = vmatprep.subr.mxu0 0.0
    %1994 = vmatpush2.msra.mxu0 0.0
    %1995 = vmatprep.subr.mxu0 0.0
    %1996 = vmatpush2.msra.mxu0 0.0
    %1997 = vmatprep.subr.mxu0 0.0
    %1998 = vmatpush2.msra.mxu0 0.0
    %1999 = vmatprep.subr.mxu0 0.0
    %2000 = vmatpush2.msra.mxu0 0.0
    %2001 = vmatprep.subr.mxu0 0.0
    %2002 = vmatpush2.msra.mxu0 0.0
    %2003 = vmatprep.subr.mxu0 0.0
    %2004 = vmatpush2.msra.mxu0 0.0
    %2005 = vmatprep.subr.mxu0 0.0
    %2006 = vmatpush2.msra.mxu0 0.0
    %2007 = vmatprep.subr.mxu0 0.0
    %2008 = vmatpush2.msra.mxu0 0.0
    %2009 = vmatprep.subr.mxu0 0.0
    %2010 = vmatpush2.msra.mxu0 0.0
    %2011 = vmatprep.mubr.f32.mxu0 0.0
    %v2012 = vand.u32 %v183, 4294901760
    %v2013 = vsub.f32 %v183, %v2012
    %v2014 = vand.u32 %v2013, 4294901760
    %2015 = vmatmul.mubr.f32.gmra.mxu0 %v2014
    %v2016 = vpop.f32.mrf.mxu0
    %v2017 = vadd.f32 %v1940, %v2016
    %v2018 = vpop.f32.mrf.mxu0
    %2019 = vdwg.mxu0
    %2020 = vmatprep.subr.mxu0 0.0
    %2021 = vmatpush1.msra.mxu0 0.0
    %2022 = vmatprep.subr.mxu0 0.0
    %2023 = vmatpush1.msra.mxu0 0.0
    %2024 = vmatprep.subr.mxu0 0.0
    %2025 = vmatpush1.msra.mxu0 0.0
    %2026 = vmatprep.subr.mxu0 0.0
    %2027 = vmatpush1.msra.mxu0 0.0
    %2028 = vmatprep.subr.mxu0 0.0
    %2029 = vmatpush1.msra.mxu0 0.0
    %2030 = vmatprep.subr.mxu0 0.0
    %2031 = vmatpush1.msra.mxu0 0.0
    %2032 = vmatprep.subr.mxu0 0.0
    %2033 = vmatpush1.msra.mxu0 0.0
    %2034 = vmatprep.subr.mxu0 0.0
    %2035 = vmatpush1.msra.mxu0 0.0
    %2036 = vmatprep.subr.mxu0 0.0
    %2037 = vmatpush1.msra.mxu0 0.0
    %2038 = vmatprep.subr.mxu0 0.0
    %2039 = vmatpush1.msra.mxu0 0.0
    %2040 = vmatprep.subr.mxu0 0.0
    %2041 = vmatpush1.msra.mxu0 0.0
    %2042 = vmatprep.subr.mxu0 0.0
    %2043 = vmatpush1.msra.mxu0 0.0
    %2044 = vmatprep.subr.mxu0 0.0
    %v2045 = vand.u32 %v1241, 4294901760
    %v2046 = vsub.f32 %v1241, %v2045
    %v2047 = vand.u32 %v2046, 4294901760
    %2048 = vmatpush1.msra.mxu0 %v2047
    %2049 = vmatprep.subr.mxu0 0.0
    %v2050 = vand.u32 %v1240, 4294901760
    %v2051 = vsub.f32 %v1240, %v2050
    %v2052 = vand.u32 %v2051, 4294901760
    %2053 = vmatpush1.msra.mxu0 %v2052
    %2054 = vmatprep.subr.mxu0 0.0
    %v2055 = vand.u32 %v1239, 4294901760
    %v2056 = vsub.f32 %v1239, %v2055
    %v2057 = vand.u32 %v2056, 4294901760
    %2058 = vmatpush1.msra.mxu0 %v2057
    %2059 = vmatprep.subr.mxu0 0.0
    %v2060 = vand.u32 %v1238, 4294901760
    %v2061 = vsub.f32 %v1238, %v2060
    %v2062 = vand.u32 %v2061, 4294901760
    %2063 = vmatpush1.msra.mxu0 %v2062
    %2064 = vmatprep.subr.mxu0 0.0
    %2065 = vmatpush2.msra.mxu0 0.0
    %2066 = vmatprep.subr.mxu0 0.0
    %2067 = vmatpush2.msra.mxu0 0.0
    %2068 = vmatprep.subr.mxu0 0.0
    %2069 = vmatpush2.msra.mxu0 0.0
    %2070 = vmatprep.subr.mxu0 0.0
    %2071 = vmatpush2.msra.mxu0 0.0
    %2072 = vmatprep.subr.mxu0 0.0
    %2073 = vmatpush2.msra.mxu0 0.0
    %2074 = vmatprep.subr.mxu0 0.0
    %2075 = vmatpush2.msra.mxu0 0.0
    %2076 = vmatprep.subr.mxu0 0.0
    %2077 = vmatpush2.msra.mxu0 0.0
    %2078 = vmatprep.subr.mxu0 0.0
    %2079 = vmatpush2.msra.mxu0 0.0
    %2080 = vmatprep.subr.mxu0 0.0
    %2081 = vmatpush2.msra.mxu0 0.0
    %2082 = vmatprep.subr.mxu0 0.0
    %2083 = vmatpush2.msra.mxu0 0.0
    %2084 = vmatprep.subr.mxu0 0.0
    %2085 = vmatpush2.msra.mxu0 0.0
    %2086 = vmatprep.subr.mxu0 0.0
    %2087 = vmatpush2.msra.mxu0 0.0
    %2088 = vmatprep.subr.mxu0 0.0
    %2089 = vmatpush2.msra.mxu0 0.0
    %2090 = vmatprep.subr.mxu0 0.0
    %2091 = vmatpush2.msra.mxu0 0.0
    %2092 = vmatprep.subr.mxu0 0.0
    %2093 = vmatpush2.msra.mxu0 0.0
    %2094 = vmatprep.subr.mxu0 0.0
    %2095 = vmatpush2.msra.mxu0 0.0
    %2096 = vmatprep.mubr.f32.mxu0 0.0
    %v2097 = vand.u32 %v183, 4294901760
    %2098 = vmatmul.mubr.f32.gmra.mxu0 %v2097
    %v2099 = vpop.f32.mrf.mxu0
    %v2100 = vadd.f32 %v2017, %v2099
    %v2101 = vpop.f32.mrf.mxu0
    %2102 = vdwg.mxu0
    %2103 = vmatprep.subr.mxu0 0.0
    %2104 = vmatpush1.msra.mxu0 0.0
    %2105 = vmatprep.subr.mxu0 0.0
    %2106 = vmatpush1.msra.mxu0 0.0
    %2107 = vmatprep.subr.mxu0 0.0
    %2108 = vmatpush1.msra.mxu0 0.0
    %2109 = vmatprep.subr.mxu0 0.0
    %2110 = vmatpush1.msra.mxu0 0.0
    %2111 = vmatprep.subr.mxu0 0.0
    %2112 = vmatpush1.msra.mxu0 0.0
    %2113 = vmatprep.subr.mxu0 0.0
    %2114 = vmatpush1.msra.mxu0 0.0
    %2115 = vmatprep.subr.mxu0 0.0
    %2116 = vmatpush1.msra.mxu0 0.0
    %2117 = vmatprep.subr.mxu0 0.0
    %2118 = vmatpush1.msra.mxu0 0.0
    %2119 = vmatprep.subr.mxu0 0.0
    %2120 = vmatpush1.msra.mxu0 0.0
    %2121 = vmatprep.subr.mxu0 0.0
    %2122 = vmatpush1.msra.mxu0 0.0
    %2123 = vmatprep.subr.mxu0 0.0
    %2124 = vmatpush1.msra.mxu0 0.0
    %2125 = vmatprep.subr.mxu0 0.0
    %2126 = vmatpush1.msra.mxu0 0.0
    %2127 = vmatprep.subr.mxu0 0.0
    %v2128 = vand.u32 %v1241, 4294901760
    %2129 = vmatpush1.msra.mxu0 %v2128
    %2130 = vmatprep.subr.mxu0 0.0
    %v2131 = vand.u32 %v1240, 4294901760
    %2132 = vmatpush1.msra.mxu0 %v2131
    %2133 = vmatprep.subr.mxu0 0.0
    %v2134 = vand.u32 %v1239, 4294901760
    %2135 = vmatpush1.msra.mxu0 %v2134
    %2136 = vmatprep.subr.mxu0 0.0
    %v2137 = vand.u32 %v1238, 4294901760
    %2138 = vmatpush1.msra.mxu0 %v2137
    %2139 = vmatprep.subr.mxu0 0.0
    %2140 = vmatpush2.msra.mxu0 0.0
    %2141 = vmatprep.subr.mxu0 0.0
    %2142 = vmatpush2.msra.mxu0 0.0
    %2143 = vmatprep.subr.mxu0 0.0
    %2144 = vmatpush2.msra.mxu0 0.0
    %2145 = vmatprep.subr.mxu0 0.0
    %2146 = vmatpush2.msra.mxu0 0.0
    %2147 = vmatprep.subr.mxu0 0.0
    %2148 = vmatpush2.msra.mxu0 0.0
    %2149 = vmatprep.subr.mxu0 0.0
    %2150 = vmatpush2.msra.mxu0 0.0
    %2151 = vmatprep.subr.mxu0 0.0
    %2152 = vmatpush2.msra.mxu0 0.0
    %2153 = vmatprep.subr.mxu0 0.0
    %2154 = vmatpush2.msra.mxu0 0.0
    %2155 = vmatprep.subr.mxu0 0.0
    %2156 = vmatpush2.msra.mxu0 0.0
    %2157 = vmatprep.subr.mxu0 0.0
    %2158 = vmatpush2.msra.mxu0 0.0
    %2159 = vmatprep.subr.mxu0 0.0
    %2160 = vmatpush2.msra.mxu0 0.0
    %2161 = vmatprep.subr.mxu0 0.0
    %2162 = vmatpush2.msra.mxu0 0.0
    %2163 = vmatprep.subr.mxu0 0.0
    %2164 = vmatpush2.msra.mxu0 0.0
    %2165 = vmatprep.subr.mxu0 0.0
    %2166 = vmatpush2.msra.mxu0 0.0
    %2167 = vmatprep.subr.mxu0 0.0
    %2168 = vmatpush2.msra.mxu0 0.0
    %2169 = vmatprep.subr.mxu0 0.0
    %2170 = vmatpush2.msra.mxu0 0.0
    %2171 = vmatprep.mubr.f32.mxu0 0.0
    %v2172 = vand.u32 %v183, 4294901760
    %2173 = vmatmul.mubr.f32.gmra.mxu0 %v2172
    %v2174 = vpop.f32.mrf.mxu0
    %v2175 = vadd.f32 %v2100, %v2174
    %v2176 = vpop.f32.mrf.mxu0
    %2177 = vdwg.mxu0
    %v2178 = vld [vmem:[#allocation13] sm:$0x1]
    %v2180 = vlaneseq
    %v2181 = vshrl.u32 %v2180, 7
    %v2182 = vsub.s32 0, %v2181
    %v2183 = vrot.slane %v2178, %v2182
    %v2185 = vadd.f32 %v2175, %v2183
    %v2186 = vtanh.pop %v2185
    %v2187 = vxor.u32 %v2185, 2147483648
    %v2188 = vmul.f32 %v2187, 1.442695
    %v2189 = vpow.pop %v2188
    %v2190 = vadd.f32 %v2189, 1.0
    %v2191 = vrcp.pop %v2190
    %v2192 = vmul.f32 1.0, %v2191
    %2194 = vrot.lane.b32.xlu0 %v2192, 64
    %v2195 = vpop.permute.xlu0 %2194
    %v2197 = vmul.f32 %v2186, %v2195
    %v2198 = vld [vmem:[#allocation14] sm:$0xff]
    %v2199 = vld [vmem:[#allocation14 + $0x8] sm:$0xff]
    %v2200 = vld [vmem:[#allocation14 + $0x10] sm:$0xff]
    %v2201 = vld [vmem:[#allocation14 + $0x18] sm:$0xff]
    %v2202 = vld [vmem:[#allocation14 + $0x20] sm:$0xff]
    %v2203 = vld [vmem:[#allocation14 + $0x28] sm:$0xff]
    %v2204 = vld [vmem:[#allocation14 + $0x30] sm:$0xff]
    %v2205 = vld [vmem:[#allocation14 + $0x38] sm:$0xff]
    %v2206 = vld [vmem:[#allocation16] sm:$0x1]
    %v2208 = vlaneseq
    %v2209 = vshrl.u32 %v2208, 7
    %v2210 = vsub.s32 0, %v2209
    %v2211 = vrot.slane %v2206, %v2210
    %v2214 = vsel %vm697, %v2197, 0
    %2216 = vmatprep.subr.mxu0 0.0
    %2217 = vmatpush1.msra.mxu0 0.0
    %2218 = vmatprep.subr.mxu0 0.0
    %2219 = vmatpush1.msra.mxu0 0.0
    %2220 = vmatprep.subr.mxu0 0.0
    %2221 = vmatpush1.msra.mxu0 0.0
    %2222 = vmatprep.subr.mxu0 0.0
    %2223 = vmatpush1.msra.mxu0 0.0
    %2224 = vmatprep.subr.mxu0 0.0
    %2225 = vmatpush1.msra.mxu0 0.0
    %2226 = vmatprep.subr.mxu0 0.0
    %2227 = vmatpush1.msra.mxu0 0.0
    %2228 = vmatprep.subr.mxu0 0.0
    %2229 = vmatpush1.msra.mxu0 0.0
    %2230 = vmatprep.subr.mxu0 0.0
    %2231 = vmatpush1.msra.mxu0 0.0
    %2232 = vmatprep.subr.mxu0 0.0
    %v2233 = vand.u32 %v2205, 4294901760
    %2234 = vmatpush1.msra.mxu0 %v2233
    %2235 = vmatprep.subr.mxu0 0.0
    %v2236 = vand.u32 %v2204, 4294901760
    %2237 = vmatpush1.msra.mxu0 %v2236
    %2238 = vmatprep.subr.mxu0 0.0
    %v2239 = vand.u32 %v2203, 4294901760
    %2240 = vmatpush1.msra.mxu0 %v2239
    %2241 = vmatprep.subr.mxu0 0.0
    %v2242 = vand.u32 %v2202, 4294901760
    %2243 = vmatpush1.msra.mxu0 %v2242
    %2244 = vmatprep.subr.mxu0 0.0
    %v2245 = vand.u32 %v2201, 4294901760
    %2246 = vmatpush1.msra.mxu0 %v2245
    %2247 = vmatprep.subr.mxu0 0.0
    %v2248 = vand.u32 %v2200, 4294901760
    %2249 = vmatpush1.msra.mxu0 %v2248
    %2250 = vmatprep.subr.mxu0 0.0
    %v2251 = vand.u32 %v2199, 4294901760
    %2252 = vmatpush1.msra.mxu0 %v2251
    %2253 = vmatprep.subr.mxu0 0.0
    %v2254 = vand.u32 %v2198, 4294901760
    %2255 = vmatpush1.msra.mxu0 %v2254
    %2256 = vmatprep.subr.mxu0 0.0
    %2257 = vmatpush2.msra.mxu0 0.0
    %2258 = vmatprep.subr.mxu0 0.0
    %2259 = vmatpush2.msra.mxu0 0.0
    %2260 = vmatprep.subr.mxu0 0.0
    %2261 = vmatpush2.msra.mxu0 0.0
    %2262 = vmatprep.subr.mxu0 0.0
    %2263 = vmatpush2.msra.mxu0 0.0
    %2264 = vmatprep.subr.mxu0 0.0
    %2265 = vmatpush2.msra.mxu0 0.0
    %2266 = vmatprep.subr.mxu0 0.0
    %2267 = vmatpush2.msra.mxu0 0.0
    %2268 = vmatprep.subr.mxu0 0.0
    %2269 = vmatpush2.msra.mxu0 0.0
    %2270 = vmatprep.subr.mxu0 0.0
    %2271 = vmatpush2.msra.mxu0 0.0
    %2272 = vmatprep.subr.mxu0 0.0
    %2273 = vmatpush2.msra.mxu0 0.0
    %2274 = vmatprep.subr.mxu0 0.0
    %2275 = vmatpush2.msra.mxu0 0.0
    %2276 = vmatprep.subr.mxu0 0.0
    %2277 = vmatpush2.msra.mxu0 0.0
    %2278 = vmatprep.subr.mxu0 0.0
    %2279 = vmatpush2.msra.mxu0 0.0
    %2280 = vmatprep.subr.mxu0 0.0
    %2281 = vmatpush2.msra.mxu0 0.0
    %2282 = vmatprep.subr.mxu0 0.0
    %2283 = vmatpush2.msra.mxu0 0.0
    %2284 = vmatprep.subr.mxu0 0.0
    %2285 = vmatpush2.msra.mxu0 0.0
    %2286 = vmatprep.subr.mxu0 0.0
    %2287 = vmatpush2.msra.mxu0 0.0
    %2288 = vmatprep.mubr.f32.mxu0 0.0
    %v2289 = vand.u32 %v2214, 4294901760
    %v2290 = vsub.f32 %v2214, %v2289
    %v2291 = vand.u32 %v2290, 4294901760
    %v2292 = vsub.f32 %v2290, %v2291
    %v2293 = vand.u32 %v2292, 4294901760
    %2294 = vmatmul.mubr.f32.gmra.mxu0 %v2293
    %v2295 = vpop.f32.mrf.mxu0
    %v2296 = vadd.f32 %v2211, %v2295
    %v2297 = vpop.f32.mrf.mxu0
    %2298 = vdwg.mxu0
    %2299 = vmatprep.subr.mxu0 0.0
    %2300 = vmatpush1.msra.mxu0 0.0
    %2301 = vmatprep.subr.mxu0 0.0
    %2302 = vmatpush1.msra.mxu0 0.0
    %2303 = vmatprep.subr.mxu0 0.0
    %2304 = vmatpush1.msra.mxu0 0.0
    %2305 = vmatprep.subr.mxu0 0.0
    %2306 = vmatpush1.msra.mxu0 0.0
    %2307 = vmatprep.subr.mxu0 0.0
    %2308 = vmatpush1.msra.mxu0 0.0
    %2309 = vmatprep.subr.mxu0 0.0
    %2310 = vmatpush1.msra.mxu0 0.0
    %2311 = vmatprep.subr.mxu0 0.0
    %2312 = vmatpush1.msra.mxu0 0.0
    %2313 = vmatprep.subr.mxu0 0.0
    %2314 = vmatpush1.msra.mxu0 0.0
    %2315 = vmatprep.subr.mxu0 0.0
    %v2316 = vand.u32 %v2205, 4294901760
    %v2317 = vsub.f32 %v2205, %v2316
    %v2318 = vand.u32 %v2317, 4294901760
    %v2319 = vsub.f32 %v2317, %v2318
    %v2320 = vand.u32 %v2319, 4294901760
    %2321 = vmatpush1.msra.mxu0 %v2320
    %2322 = vmatprep.subr.mxu0 0.0
    %v2323 = vand.u32 %v2204, 4294901760
    %v2324 = vsub.f32 %v2204, %v2323
    %v2325 = vand.u32 %v2324, 4294901760
    %v2326 = vsub.f32 %v2324, %v2325
    %v2327 = vand.u32 %v2326, 4294901760
    %2328 = vmatpush1.msra.mxu0 %v2327
    %2329 = vmatprep.subr.mxu0 0.0
    %v2330 = vand.u32 %v2203, 4294901760
    %v2331 = vsub.f32 %v2203, %v2330
    %v2332 = vand.u32 %v2331, 4294901760
    %v2333 = vsub.f32 %v2331, %v2332
    %v2334 = vand.u32 %v2333, 4294901760
    %2335 = vmatpush1.msra.mxu0 %v2334
    %2336 = vmatprep.subr.mxu0 0.0
    %v2337 = vand.u32 %v2202, 4294901760
    %v2338 = vsub.f32 %v2202, %v2337
    %v2339 = vand.u32 %v2338, 4294901760
    %v2340 = vsub.f32 %v2338, %v2339
    %v2341 = vand.u32 %v2340, 4294901760
    %2342 = vmatpush1.msra.mxu0 %v2341
    %2343 = vmatprep.subr.mxu0 0.0
    %v2344 = vand.u32 %v2201, 4294901760
    %v2345 = vsub.f32 %v2201, %v2344
    %v2346 = vand.u32 %v2345, 4294901760
    %v2347 = vsub.f32 %v2345, %v2346
    %v2348 = vand.u32 %v2347, 4294901760
    %2349 = vmatpush1.msra.mxu0 %v2348
    %2350 = vmatprep.subr.mxu0 0.0
    %v2351 = vand.u32 %v2200, 4294901760
    %v2352 = vsub.f32 %v2200, %v2351
    %v2353 = vand.u32 %v2352, 4294901760
    %v2354 = vsub.f32 %v2352, %v2353
    %v2355 = vand.u32 %v2354, 4294901760
    %2356 = vmatpush1.msra.mxu0 %v2355
    %2357 = vmatprep.subr.mxu0 0.0
    %v2358 = vand.u32 %v2199, 4294901760
    %v2359 = vsub.f32 %v2199, %v2358
    %v2360 = vand.u32 %v2359, 4294901760
    %v2361 = vsub.f32 %v2359, %v2360
    %v2362 = vand.u32 %v2361, 4294901760
    %2363 = vmatpush1.msra.mxu0 %v2362
    %2364 = vmatprep.subr.mxu0 0.0
    %v2365 = vand.u32 %v2198, 4294901760
    %v2366 = vsub.f32 %v2198, %v2365
    %v2367 = vand.u32 %v2366, 4294901760
    %v2368 = vsub.f32 %v2366, %v2367
    %v2369 = vand.u32 %v2368, 4294901760
    %2370 = vmatpush1.msra.mxu0 %v2369
    %2371 = vmatprep.subr.mxu0 0.0
    %2372 = vmatpush2.msra.mxu0 0.0
    %2373 = vmatprep.subr.mxu0 0.0
    %2374 = vmatpush2.msra.mxu0 0.0
    %2375 = vmatprep.subr.mxu0 0.0
    %2376 = vmatpush2.msra.mxu0 0.0
    %2377 = vmatprep.subr.mxu0 0.0
    %2378 = vmatpush2.msra.mxu0 0.0
    %2379 = vmatprep.subr.mxu0 0.0
    %2380 = vmatpush2.msra.mxu0 0.0
    %2381 = vmatprep.subr.mxu0 0.0
    %2382 = vmatpush2.msra.mxu0 0.0
    %2383 = vmatprep.subr.mxu0 0.0
    %2384 = vmatpush2.msra.mxu0 0.0
    %2385 = vmatprep.subr.mxu0 0.0
    %2386 = vmatpush2.msra.mxu0 0.0
    %2387 = vmatprep.subr.mxu0 0.0
    %2388 = vmatpush2.msra.mxu0 0.0
    %2389 = vmatprep.subr.mxu0 0.0
    %2390 = vmatpush2.msra.mxu0 0.0
    %2391 = vmatprep.subr.mxu0 0.0
    %2392 = vmatpush2.msra.mxu0 0.0
    %2393 = vmatprep.subr.mxu0 0.0
    %2394 = vmatpush2.msra.mxu0 0.0
    %2395 = vmatprep.subr.mxu0 0.0
    %2396 = vmatpush2.msra.mxu0 0.0
    %2397 = vmatprep.subr.mxu0 0.0
    %2398 = vmatpush2.msra.mxu0 0.0
    %2399 = vmatprep.subr.mxu0 0.0
    %2400 = vmatpush2.msra.mxu0 0.0
    %2401 = vmatprep.subr.mxu0 0.0
    %2402 = vmatpush2.msra.mxu0 0.0
    %2403 = vmatprep.mubr.f32.mxu0 0.0
    %v2404 = vand.u32 %v2214, 4294901760
    %2405 = vmatmul.mubr.f32.gmra.mxu0 %v2404
    %v2406 = vpop.f32.mrf.mxu0
    %v2407 = vadd.f32 %v2296, %v2406
    %v2408 = vpop.f32.mrf.mxu0
    %2409 = vdwg.mxu0
    %2410 = vmatprep.subr.mxu0 0.0
    %2411 = vmatpush1.msra.mxu0 0.0
    %2412 = vmatprep.subr.mxu0 0.0
    %2413 = vmatpush1.msra.mxu0 0.0
    %2414 = vmatprep.subr.mxu0 0.0
    %2415 = vmatpush1.msra.mxu0 0.0
    %2416 = vmatprep.subr.mxu0 0.0
    %2417 = vmatpush1.msra.mxu0 0.0
    %2418 = vmatprep.subr.mxu0 0.0
    %2419 = vmatpush1.msra.mxu0 0.0
    %2420 = vmatprep.subr.mxu0 0.0
    %2421 = vmatpush1.msra.mxu0 0.0
    %2422 = vmatprep.subr.mxu0 0.0
    %2423 = vmatpush1.msra.mxu0 0.0
    %2424 = vmatprep.subr.mxu0 0.0
    %2425 = vmatpush1.msra.mxu0 0.0
    %2426 = vmatprep.subr.mxu0 0.0
    %v2427 = vand.u32 %v2205, 4294901760
    %v2428 = vsub.f32 %v2205, %v2427
    %2429 = vmatpush1.msra.mxu0 %v2428
    %2430 = vmatprep.subr.mxu0 0.0
    %v2431 = vand.u32 %v2204, 4294901760
    %v2432 = vsub.f32 %v2204, %v2431
    %2433 = vmatpush1.msra.mxu0 %v2432
    %2434 = vmatprep.subr.mxu0 0.0
    %v2435 = vand.u32 %v2203, 4294901760
    %v2436 = vsub.f32 %v2203, %v2435
    %2437 = vmatpush1.msra.mxu0 %v2436
    %2438 = vmatprep.subr.mxu0 0.0
    %v2439 = vand.u32 %v2202, 4294901760
    %v2440 = vsub.f32 %v2202, %v2439
    %2441 = vmatpush1.msra.mxu0 %v2440
    %2442 = vmatprep.subr.mxu0 0.0
    %v2443 = vand.u32 %v2201, 4294901760
    %v2444 = vsub.f32 %v2201, %v2443
    %2445 = vmatpush1.msra.mxu0 %v2444
    %2446 = vmatprep.subr.mxu0 0.0
    %v2447 = vand.u32 %v2200, 4294901760
    %v2448 = vsub.f32 %v2200, %v2447
    %2449 = vmatpush1.msra.mxu0 %v2448
    %2450 = vmatprep.subr.mxu0 0.0
    %v2451 = vand.u32 %v2199, 4294901760
    %v2452 = vsub.f32 %v2199, %v2451
    %2453 = vmatpush1.msra.mxu0 %v2452
    %2454 = vmatprep.subr.mxu0 0.0
    %v2455 = vand.u32 %v2198, 4294901760
    %v2456 = vsub.f32 %v2198, %v2455
    %2457 = vmatpush1.msra.mxu0 %v2456
    %2458 = vmatprep.subr.mxu0 0.0
    %2459 = vmatpush2.msra.mxu0 0.0
    %2460 = vmatprep.subr.mxu0 0.0
    %2461 = vmatpush2.msra.mxu0 0.0
    %2462 = vmatprep.subr.mxu0 0.0
    %2463 = vmatpush2.msra.mxu0 0.0
    %2464 = vmatprep.subr.mxu0 0.0
    %2465 = vmatpush2.msra.mxu0 0.0
    %2466 = vmatprep.subr.mxu0 0.0
    %2467 = vmatpush2.msra.mxu0 0.0
    %2468 = vmatprep.subr.mxu0 0.0
    %2469 = vmatpush2.msra.mxu0 0.0
    %2470 = vmatprep.subr.mxu0 0.0
    %2471 = vmatpush2.msra.mxu0 0.0
    %2472 = vmatprep.subr.mxu0 0.0
    %2473 = vmatpush2.msra.mxu0 0.0
    %2474 = vmatprep.subr.mxu0 0.0
    %2475 = vmatpush2.msra.mxu0 0.0
    %2476 = vmatprep.subr.mxu0 0.0
    %2477 = vmatpush2.msra.mxu0 0.0
    %2478 = vmatprep.subr.mxu0 0.0
    %2479 = vmatpush2.msra.mxu0 0.0
    %2480 = vmatprep.subr.mxu0 0.0
    %2481 = vmatpush2.msra.mxu0 0.0
    %2482 = vmatprep.subr.mxu0 0.0
    %2483 = vmatpush2.msra.mxu0 0.0
    %2484 = vmatprep.subr.mxu0 0.0
    %2485 = vmatpush2.msra.mxu0 0.0
    %2486 = vmatprep.subr.mxu0 0.0
    %2487 = vmatpush2.msra.mxu0 0.0
    %2488 = vmatprep.subr.mxu0 0.0
    %2489 = vmatpush2.msra.mxu0 0.0
    %2490 = vmatprep.mubr.f32.mxu0 0.0
    %v2491 = vand.u32 %v2214, 4294901760
    %v2492 = vsub.f32 %v2214, %v2491
    %2493 = vmatmul.mubr.f32.gmra.mxu0 %v2492
    %v2494 = vpop.f32.mrf.mxu0
    %v2495 = vadd.f32 %v2407, %v2494
    %v2496 = vpop.f32.mrf.mxu0
    %2497 = vdwg.mxu0
    %2498 = vmatprep.subr.mxu0 0.0
    %2499 = vmatpush1.msra.mxu0 0.0
    %2500 = vmatprep.subr.mxu0 0.0
    %2501 = vmatpush1.msra.mxu0 0.0
    %2502 = vmatprep.subr.mxu0 0.0
    %2503 = vmatpush1.msra.mxu0 0.0
    %2504 = vmatprep.subr.mxu0 0.0
    %2505 = vmatpush1.msra.mxu0 0.0
    %2506 = vmatprep.subr.mxu0 0.0
    %2507 = vmatpush1.msra.mxu0 0.0
    %2508 = vmatprep.subr.mxu0 0.0
    %2509 = vmatpush1.msra.mxu0 0.0
    %2510 = vmatprep.subr.mxu0 0.0
    %2511 = vmatpush1.msra.mxu0 0.0
    %2512 = vmatprep.subr.mxu0 0.0
    %2513 = vmatpush1.msra.mxu0 0.0
    %2514 = vmatprep.subr.mxu0 0.0
    %v2515 = vand.u32 %v2205, 4294901760
    %2516 = vmatpush1.msra.mxu0 %v2515
    %2517 = vmatprep.subr.mxu0 0.0
    %v2518 = vand.u32 %v2204, 4294901760
    %2519 = vmatpush1.msra.mxu0 %v2518
    %2520 = vmatprep.subr.mxu0 0.0
    %v2521 = vand.u32 %v2203, 4294901760
    %2522 = vmatpush1.msra.mxu0 %v2521
    %2523 = vmatprep.subr.mxu0 0.0
    %v2524 = vand.u32 %v2202, 4294901760
    %2525 = vmatpush1.msra.mxu0 %v2524
    %2526 = vmatprep.subr.mxu0 0.0
    %v2527 = vand.u32 %v2201, 4294901760
    %2528 = vmatpush1.msra.mxu0 %v2527
    %2529 = vmatprep.subr.mxu0 0.0
    %v2530 = vand.u32 %v2200, 4294901760
    %2531 = vmatpush1.msra.mxu0 %v2530
    %2532 = vmatprep.subr.mxu0 0.0
    %v2533 = vand.u32 %v2199, 4294901760
    %2534 = vmatpush1.msra.mxu0 %v2533
    %2535 = vmatprep.subr.mxu0 0.0
    %v2536 = vand.u32 %v2198, 4294901760
    %2537 = vmatpush1.msra.mxu0 %v2536
    %2538 = vmatprep.subr.mxu0 0.0
    %2539 = vmatpush2.msra.mxu0 0.0
    %2540 = vmatprep.subr.mxu0 0.0
    %2541 = vmatpush2.msra.mxu0 0.0
    %2542 = vmatprep.subr.mxu0 0.0
    %2543 = vmatpush2.msra.mxu0 0.0
    %2544 = vmatprep.subr.mxu0 0.0
    %2545 = vmatpush2.msra.mxu0 0.0
    %2546 = vmatprep.subr.mxu0 0.0
    %2547 = vmatpush2.msra.mxu0 0.0
    %2548 = vmatprep.subr.mxu0 0.0
    %2549 = vmatpush2.msra.mxu0 0.0
    %2550 = vmatprep.subr.mxu0 0.0
    %2551 = vmatpush2.msra.mxu0 0.0
    %2552 = vmatprep.subr.mxu0 0.0
    %2553 = vmatpush2.msra.mxu0 0.0
    %2554 = vmatprep.subr.mxu0 0.0
    %2555 = vmatpush2.msra.mxu0 0.0
    %2556 = vmatprep.subr.mxu0 0.0
    %2557 = vmatpush2.msra.mxu0 0.0
    %2558 = vmatprep.subr.mxu0 0.0
    %2559 = vmatpush2.msra.mxu0 0.0
    %2560 = vmatprep.subr.mxu0 0.0
    %2561 = vmatpush2.msra.mxu0 0.0
    %2562 = vmatprep.subr.mxu0 0.0
    %2563 = vmatpush2.msra.mxu0 0.0
    %2564 = vmatprep.subr.mxu0 0.0
    %2565 = vmatpush2.msra.mxu0 0.0
    %2566 = vmatprep.subr.mxu0 0.0
    %2567 = vmatpush2.msra.mxu0 0.0
    %2568 = vmatprep.subr.mxu0 0.0
    %2569 = vmatpush2.msra.mxu0 0.0
    %2570 = vmatprep.mubr.f32.mxu0 0.0
    %v2571 = vand.u32 %v2214, 4294901760
    %v2572 = vsub.f32 %v2214, %v2571
    %v2573 = vand.u32 %v2572, 4294901760
    %2574 = vmatmul.mubr.f32.gmra.mxu0 %v2573
    %v2575 = vpop.f32.mrf.mxu0
    %v2576 = vadd.f32 %v2495, %v2575
    %v2577 = vpop.f32.mrf.mxu0
    %2578 = vdwg.mxu0
    %2579 = vmatprep.subr.mxu0 0.0
    %2580 = vmatpush1.msra.mxu0 0.0
    %2581 = vmatprep.subr.mxu0 0.0
    %2582 = vmatpush1.msra.mxu0 0.0
    %2583 = vmatprep.subr.mxu0 0.0
    %2584 = vmatpush1.msra.mxu0 0.0
    %2585 = vmatprep.subr.mxu0 0.0
    %2586 = vmatpush1.msra.mxu0 0.0
    %2587 = vmatprep.subr.mxu0 0.0
    %2588 = vmatpush1.msra.mxu0 0.0
    %2589 = vmatprep.subr.mxu0 0.0
    %2590 = vmatpush1.msra.mxu0 0.0
    %2591 = vmatprep.subr.mxu0 0.0
    %2592 = vmatpush1.msra.mxu0 0.0
    %2593 = vmatprep.subr.mxu0 0.0
    %2594 = vmatpush1.msra.mxu0 0.0
    %2595 = vmatprep.subr.mxu0 0.0
    %v2596 = vand.u32 %v2205, 4294901760
    %v2597 = vsub.f32 %v2205, %v2596
    %v2598 = vand.u32 %v2597, 4294901760
    %2599 = vmatpush1.msra.mxu0 %v2598
    %2600 = vmatprep.subr.mxu0 0.0
    %v2601 = vand.u32 %v2204, 4294901760
    %v2602 = vsub.f32 %v2204, %v2601
    %v2603 = vand.u32 %v2602, 4294901760
    %2604 = vmatpush1.msra.mxu0 %v2603
    %2605 = vmatprep.subr.mxu0 0.0
    %v2606 = vand.u32 %v2203, 4294901760
    %v2607 = vsub.f32 %v2203, %v2606
    %v2608 = vand.u32 %v2607, 4294901760
    %2609 = vmatpush1.msra.mxu0 %v2608
    %2610 = vmatprep.subr.mxu0 0.0
    %v2611 = vand.u32 %v2202, 4294901760
    %v2612 = vsub.f32 %v2202, %v2611
    %v2613 = vand.u32 %v2612, 4294901760
    %2614 = vmatpush1.msra.mxu0 %v2613
    %2615 = vmatprep.subr.mxu0 0.0
    %v2616 = vand.u32 %v2201, 4294901760
    %v2617 = vsub.f32 %v2201, %v2616
    %v2618 = vand.u32 %v2617, 4294901760
    %2619 = vmatpush1.msra.mxu0 %v2618
    %2620 = vmatprep.subr.mxu0 0.0
    %v2621 = vand.u32 %v2200, 4294901760
    %v2622 = vsub.f32 %v2200, %v2621
    %v2623 = vand.u32 %v2622, 4294901760
    %2624 = vmatpush1.msra.mxu0 %v2623
    %2625 = vmatprep.subr.mxu0 0.0
    %v2626 = vand.u32 %v2199, 4294901760
    %v2627 = vsub.f32 %v2199, %v2626
    %v2628 = vand.u32 %v2627, 4294901760
    %2629 = vmatpush1.msra.mxu0 %v2628
    %2630 = vmatprep.subr.mxu0 0.0
    %v2631 = vand.u32 %v2198, 4294901760
    %v2632 = vsub.f32 %v2198, %v2631
    %v2633 = vand.u32 %v2632, 4294901760
    %2634 = vmatpush1.msra.mxu0 %v2633
    %2635 = vmatprep.subr.mxu0 0.0
    %2636 = vmatpush2.msra.mxu0 0.0
    %2637 = vmatprep.subr.mxu0 0.0
    %2638 = vmatpush2.msra.mxu0 0.0
    %2639 = vmatprep.subr.mxu0 0.0
    %2640 = vmatpush2.msra.mxu0 0.0
    %2641 = vmatprep.subr.mxu0 0.0
    %2642 = vmatpush2.msra.mxu0 0.0
    %2643 = vmatprep.subr.mxu0 0.0
    %2644 = vmatpush2.msra.mxu0 0.0
    %2645 = vmatprep.subr.mxu0 0.0
    %2646 = vmatpush2.msra.mxu0 0.0
    %2647 = vmatprep.subr.mxu0 0.0
    %2648 = vmatpush2.msra.mxu0 0.0
    %2649 = vmatprep.subr.mxu0 0.0
    %2650 = vmatpush2.msra.mxu0 0.0
    %2651 = vmatprep.subr.mxu0 0.0
    %2652 = vmatpush2.msra.mxu0 0.0
    %2653 = vmatprep.subr.mxu0 0.0
    %2654 = vmatpush2.msra.mxu0 0.0
    %2655 = vmatprep.subr.mxu0 0.0
    %2656 = vmatpush2.msra.mxu0 0.0
    %2657 = vmatprep.subr.mxu0 0.0
    %2658 = vmatpush2.msra.mxu0 0.0
    %2659 = vmatprep.subr.mxu0 0.0
    %2660 = vmatpush2.msra.mxu0 0.0
    %2661 = vmatprep.subr.mxu0 0.0
    %2662 = vmatpush2.msra.mxu0 0.0
    %2663 = vmatprep.subr.mxu0 0.0
    %2664 = vmatpush2.msra.mxu0 0.0
    %2665 = vmatprep.subr.mxu0 0.0
    %2666 = vmatpush2.msra.mxu0 0.0
    %2667 = vmatprep.mubr.f32.mxu0 0.0
    %v2668 = vand.u32 %v2214, 4294901760
    %2669 = vmatmul.mubr.f32.gmra.mxu0 %v2668
    %v2670 = vpop.f32.mrf.mxu0
    %v2671 = vadd.f32 %v2576, %v2670
    %v2672 = vpop.f32.mrf.mxu0
    %2673 = vdwg.mxu0
    %2674 = vmatprep.subr.mxu0 0.0
    %2675 = vmatpush1.msra.mxu0 0.0
    %2676 = vmatprep.subr.mxu0 0.0
    %2677 = vmatpush1.msra.mxu0 0.0
    %2678 = vmatprep.subr.mxu0 0.0
    %2679 = vmatpush1.msra.mxu0 0.0
    %2680 = vmatprep.subr.mxu0 0.0
    %2681 = vmatpush1.msra.mxu0 0.0
    %2682 = vmatprep.subr.mxu0 0.0
    %2683 = vmatpush1.msra.mxu0 0.0
    %2684 = vmatprep.subr.mxu0 0.0
    %2685 = vmatpush1.msra.mxu0 0.0
    %2686 = vmatprep.subr.mxu0 0.0
    %2687 = vmatpush1.msra.mxu0 0.0
    %2688 = vmatprep.subr.mxu0 0.0
    %2689 = vmatpush1.msra.mxu0 0.0
    %2690 = vmatprep.subr.mxu0 0.0
    %v2691 = vand.u32 %v2205, 4294901760
    %2692 = vmatpush1.msra.mxu0 %v2691
    %2693 = vmatprep.subr.mxu0 0.0
    %v2694 = vand.u32 %v2204, 4294901760
    %2695 = vmatpush1.msra.mxu0 %v2694
    %2696 = vmatprep.subr.mxu0 0.0
    %v2697 = vand.u32 %v2203, 4294901760
    %2698 = vmatpush1.msra.mxu0 %v2697
    %2699 = vmatprep.subr.mxu0 0.0
    %v2700 = vand.u32 %v2202, 4294901760
    %2701 = vmatpush1.msra.mxu0 %v2700
    %2702 = vmatprep.subr.mxu0 0.0
    %v2703 = vand.u32 %v2201, 4294901760
    %2704 = vmatpush1.msra.mxu0 %v2703
    %2705 = vmatprep.subr.mxu0 0.0
    %v2706 = vand.u32 %v2200, 4294901760
    %2707 = vmatpush1.msra.mxu0 %v2706
    %2708 = vmatprep.subr.mxu0 0.0
    %v2709 = vand.u32 %v2199, 4294901760
    %2710 = vmatpush1.msra.mxu0 %v2709
    %2711 = vmatprep.subr.mxu0 0.0
    %v2712 = vand.u32 %v2198, 4294901760
    %2713 = vmatpush1.msra.mxu0 %v2712
    %2714 = vmatprep.subr.mxu0 0.0
    %2715 = vmatpush2.msra.mxu0 0.0
    %2716 = vmatprep.subr.mxu0 0.0
    %2717 = vmatpush2.msra.mxu0 0.0
    %2718 = vmatprep.subr.mxu0 0.0
    %2719 = vmatpush2.msra.mxu0 0.0
    %2720 = vmatprep.subr.mxu0 0.0
    %2721 = vmatpush2.msra.mxu0 0.0
    %2722 = vmatprep.subr.mxu0 0.0
    %2723 = vmatpush2.msra.mxu0 0.0
    %2724 = vmatprep.subr.mxu0 0.0
    %2725 = vmatpush2.msra.mxu0 0.0
    %2726 = vmatprep.subr.mxu0 0.0
    %2727 = vmatpush2.msra.mxu0 0.0
    %2728 = vmatprep.subr.mxu0 0.0
    %2729 = vmatpush2.msra.mxu0 0.0
    %2730 = vmatprep.subr.mxu0 0.0
    %2731 = vmatpush2.msra.mxu0 0.0
    %2732 = vmatprep.subr.mxu0 0.0
    %2733 = vmatpush2.msra.mxu0 0.0
    %2734 = vmatprep.subr.mxu0 0.0
    %2735 = vmatpush2.msra.mxu0 0.0
    %2736 = vmatprep.subr.mxu0 0.0
    %2737 = vmatpush2.msra.mxu0 0.0
    %2738 = vmatprep.subr.mxu0 0.0
    %2739 = vmatpush2.msra.mxu0 0.0
    %2740 = vmatprep.subr.mxu0 0.0
    %2741 = vmatpush2.msra.mxu0 0.0
    %2742 = vmatprep.subr.mxu0 0.0
    %2743 = vmatpush2.msra.mxu0 0.0
    %2744 = vmatprep.subr.mxu0 0.0
    %2745 = vmatpush2.msra.mxu0 0.0
    %2746 = vmatprep.mubr.f32.mxu0 0.0
    %v2747 = vand.u32 %v2214, 4294901760
    %2748 = vmatmul.mubr.f32.gmra.mxu0 %v2747
    %v2749 = vpop.f32.mrf.mxu0
    %v2750 = vadd.f32 %v2671, %v2749
    %v2751 = vpop.f32.mrf.mxu0
    %2752 = vdwg.mxu0
    %v2753 = vld [vmem:[%s10] sm:$0xff]
    %v2754 = vld [vmem:[#allocation17] sm:$0xff]
    %2755 = vmatprep.subr.mxu0 0.0
    %2756 = vmatpush1.msra.mxu0 0.0
    %2757 = vmatprep.subr.mxu0 0.0
    %2758 = vmatpush1.msra.mxu0 0.0
    %2759 = vmatprep.subr.mxu0 0.0
    %2760 = vmatpush1.msra.mxu0 0.0
    %2761 = vmatprep.subr.mxu0 0.0
    %2762 = vmatpush1.msra.mxu0 0.0
    %2763 = vmatprep.subr.mxu0 0.0
    %2764 = vmatpush1.msra.mxu0 0.0
    %2765 = vmatprep.subr.mxu0 0.0
    %2766 = vmatpush1.msra.mxu0 0.0
    %2767 = vmatprep.subr.mxu0 0.0
    %2768 = vmatpush1.msra.mxu0 0.0
    %2769 = vmatprep.subr.mxu0 0.0
    %2770 = vmatpush1.msra.mxu0 0.0
    %2771 = vmatprep.subr.mxu0 0.0
    %2772 = vmatpush1.msra.mxu0 0.0
    %2773 = vmatprep.subr.mxu0 0.0
    %2774 = vmatpush1.msra.mxu0 0.0
    %2775 = vmatprep.subr.mxu0 0.0
    %2776 = vmatpush1.msra.mxu0 0.0
    %2777 = vmatprep.subr.mxu0 0.0
    %2778 = vmatpush1.msra.mxu0 0.0
    %2779 = vmatprep.subr.mxu0 0.0
    %2780 = vmatpush1.msra.mxu0 0.0
    %2781 = vmatprep.subr.mxu0 0.0
    %2782 = vmatpush1.msra.mxu0 0.0
    %2783 = vmatprep.subr.mxu0 0.0
    %2784 = vmatpush1.msra.mxu0 0.0
    %2785 = vmatprep.subr.mxu0 0.0
    %v2786 = vand.u32 %v2754, 4294901760
    %2787 = vmatpush1.msra.mxu0 %v2786
    %2788 = vmatprep.subr.mxu0 0.0
    %2789 = vmatpush2.msra.mxu0 0.0
    %2790 = vmatprep.subr.mxu0 0.0
    %2791 = vmatpush2.msra.mxu0 0.0
    %2792 = vmatprep.subr.mxu0 0.0
    %2793 = vmatpush2.msra.mxu0 0.0
    %2794 = vmatprep.subr.mxu0 0.0
    %2795 = vmatpush2.msra.mxu0 0.0
    %2796 = vmatprep.subr.mxu0 0.0
    %2797 = vmatpush2.msra.mxu0 0.0
    %2798 = vmatprep.subr.mxu0 0.0
    %2799 = vmatpush2.msra.mxu0 0.0
    %2800 = vmatprep.subr.mxu0 0.0
    %2801 = vmatpush2.msra.mxu0 0.0
    %2802 = vmatprep.subr.mxu0 0.0
    %2803 = vmatpush2.msra.mxu0 0.0
    %2804 = vmatprep.subr.mxu0 0.0
    %2805 = vmatpush2.msra.mxu0 0.0
    %2806 = vmatprep.subr.mxu0 0.0
    %2807 = vmatpush2.msra.mxu0 0.0
    %2808 = vmatprep.subr.mxu0 0.0
    %2809 = vmatpush2.msra.mxu0 0.0
    %2810 = vmatprep.subr.mxu0 0.0
    %2811 = vmatpush2.msra.mxu0 0.0
    %2812 = vmatprep.subr.mxu0 0.0
    %2813 = vmatpush2.msra.mxu0 0.0
    %2814 = vmatprep.subr.mxu0 0.0
    %2815 = vmatpush2.msra.mxu0 0.0
    %2816 = vmatprep.subr.mxu0 0.0
    %2817 = vmatpush2.msra.mxu0 0.0
    %2818 = vmatprep.subr.mxu0 0.0
    %2819 = vmatpush2.msra.mxu0 0.0
    %2820 = vmatprep.mubr.f32.mxu0 0.0
    %v2821 = vand.u32 %v1245, 4294901760
    %v2822 = vsub.f32 %v1245, %v2821
    %v2823 = vand.u32 %v2822, 4294901760
    %v2824 = vsub.f32 %v2822, %v2823
    %v2825 = vand.u32 %v2824, 4294901760
    %2826 = vmatmul.mubr.f32.gmra.mxu0 %v2825
    %v2827 = vpop.f32.mrf.mxu0
    %v2828 = vadd.f32 0.0, %v2827
    %v2829 = vpop.f32.mrf.mxu0
    %2830 = vdwg.mxu0
    %2831 = vmatprep.subr.mxu0 0.0
    %2832 = vmatpush1.msra.mxu0 0.0
    %2833 = vmatprep.subr.mxu0 0.0
    %2834 = vmatpush1.msra.mxu0 0.0
    %2835 = vmatprep.subr.mxu0 0.0
    %2836 = vmatpush1.msra.mxu0 0.0
    %2837 = vmatprep.subr.mxu0 0.0
    %2838 = vmatpush1.msra.mxu0 0.0
    %2839 = vmatprep.subr.mxu0 0.0
    %2840 = vmatpush1.msra.mxu0 0.0
    %2841 = vmatprep.subr.mxu0 0.0
    %2842 = vmatpush1.msra.mxu0 0.0
    %2843 = vmatprep.subr.mxu0 0.0
    %2844 = vmatpush1.msra.mxu0 0.0
    %2845 = vmatprep.subr.mxu0 0.0
    %2846 = vmatpush1.msra.mxu0 0.0
    %2847 = vmatprep.subr.mxu0 0.0
    %2848 = vmatpush1.msra.mxu0 0.0
    %2849 = vmatprep.subr.mxu0 0.0
    %2850 = vmatpush1.msra.mxu0 0.0
    %2851 = vmatprep.subr.mxu0 0.0
    %2852 = vmatpush1.msra.mxu0 0.0
    %2853 = vmatprep.subr.mxu0 0.0
    %2854 = vmatpush1.msra.mxu0 0.0
    %2855 = vmatprep.subr.mxu0 0.0
    %2856 = vmatpush1.msra.mxu0 0.0
    %2857 = vmatprep.subr.mxu0 0.0
    %2858 = vmatpush1.msra.mxu0 0.0
    %2859 = vmatprep.subr.mxu0 0.0
    %2860 = vmatpush1.msra.mxu0 0.0
    %2861 = vmatprep.subr.mxu0 0.0
    %v2862 = vand.u32 %v2754, 4294901760
    %v2863 = vsub.f32 %v2754, %v2862
    %v2864 = vand.u32 %v2863, 4294901760
    %v2865 = vsub.f32 %v2863, %v2864
    %v2866 = vand.u32 %v2865, 4294901760
    %2867 = vmatpush1.msra.mxu0 %v2866
    %2868 = vmatprep.subr.mxu0 0.0
    %2869 = vmatpush2.msra.mxu0 0.0
    %2870 = vmatprep.subr.mxu0 0.0
    %2871 = vmatpush2.msra.mxu0 0.0
    %2872 = vmatprep.subr.mxu0 0.0
    %2873 = vmatpush2.msra.mxu0 0.0
    %2874 = vmatprep.subr.mxu0 0.0
    %2875 = vmatpush2.msra.mxu0 0.0
    %2876 = vmatprep.subr.mxu0 0.0
    %2877 = vmatpush2.msra.mxu0 0.0
    %2878 = vmatprep.subr.mxu0 0.0
    %2879 = vmatpush2.msra.mxu0 0.0
    %2880 = vmatprep.subr.mxu0 0.0
    %2881 = vmatpush2.msra.mxu0 0.0
    %2882 = vmatprep.subr.mxu0 0.0
    %2883 = vmatpush2.msra.mxu0 0.0
    %2884 = vmatprep.subr.mxu0 0.0
    %2885 = vmatpush2.msra.mxu0 0.0
    %2886 = vmatprep.subr.mxu0 0.0
    %2887 = vmatpush2.msra.mxu0 0.0
    %2888 = vmatprep.subr.mxu0 0.0
    %2889 = vmatpush2.msra.mxu0 0.0
    %2890 = vmatprep.subr.mxu0 0.0
    %2891 = vmatpush2.msra.mxu0 0.0
    %2892 = vmatprep.subr.mxu0 0.0
    %2893 = vmatpush2.msra.mxu0 0.0
    %2894 = vmatprep.subr.mxu0 0.0
    %2895 = vmatpush2.msra.mxu0 0.0
    %2896 = vmatprep.subr.mxu0 0.0
    %2897 = vmatpush2.msra.mxu0 0.0
    %2898 = vmatprep.subr.mxu0 0.0
    %2899 = vmatpush2.msra.mxu0 0.0
    %2900 = vmatprep.mubr.f32.mxu0 0.0
    %v2901 = vand.u32 %v1245, 4294901760
    %2902 = vmatmul.mubr.f32.gmra.mxu0 %v2901
    %v2903 = vpop.f32.mrf.mxu0
    %v2904 = vadd.f32 %v2828, %v2903
    %v2905 = vpop.f32.mrf.mxu0
    %2906 = vdwg.mxu0
    %2907 = vmatprep.subr.mxu0 0.0
    %2908 = vmatpush1.msra.mxu0 0.0
    %2909 = vmatprep.subr.mxu0 0.0
    %2910 = vmatpush1.msra.mxu0 0.0
    %2911 = vmatprep.subr.mxu0 0.0
    %2912 = vmatpush1.msra.mxu0 0.0
    %2913 = vmatprep.subr.mxu0 0.0
    %2914 = vmatpush1.msra.mxu0 0.0
    %2915 = vmatprep.subr.mxu0 0.0
    %2916 = vmatpush1.msra.mxu0 0.0
    %2917 = vmatprep.subr.mxu0 0.0
    %2918 = vmatpush1.msra.mxu0 0.0
    %2919 = vmatprep.subr.mxu0 0.0
    %2920 = vmatpush1.msra.mxu0 0.0
    %2921 = vmatprep.subr.mxu0 0.0
    %2922 = vmatpush1.msra.mxu0 0.0
    %2923 = vmatprep.subr.mxu0 0.0
    %2924 = vmatpush1.msra.mxu0 0.0
    %2925 = vmatprep.subr.mxu0 0.0
    %2926 = vmatpush1.msra.mxu0 0.0
    %2927 = vmatprep.subr.mxu0 0.0
    %2928 = vmatpush1.msra.mxu0 0.0
    %2929 = vmatprep.subr.mxu0 0.0
    %2930 = vmatpush1.msra.mxu0 0.0
    %2931 = vmatprep.subr.mxu0 0.0
    %2932 = vmatpush1.msra.mxu0 0.0
    %2933 = vmatprep.subr.mxu0 0.0
    %2934 = vmatpush1.msra.mxu0 0.0
    %2935 = vmatprep.subr.mxu0 0.0
    %2936 = vmatpush1.msra.mxu0 0.0
    %2937 = vmatprep.subr.mxu0 0.0
    %v2938 = vand.u32 %v2754, 4294901760
    %v2939 = vsub.f32 %v2754, %v2938
    %2940 = vmatpush1.msra.mxu0 %v2939
    %2941 = vmatprep.subr.mxu0 0.0
    %2942 = vmatpush2.msra.mxu0 0.0
    %2943 = vmatprep.subr.mxu0 0.0
    %2944 = vmatpush2.msra.mxu0 0.0
    %2945 = vmatprep.subr.mxu0 0.0
    %2946 = vmatpush2.msra.mxu0 0.0
    %2947 = vmatprep.subr.mxu0 0.0
    %2948 = vmatpush2.msra.mxu0 0.0
    %2949 = vmatprep.subr.mxu0 0.0
    %2950 = vmatpush2.msra.mxu0 0.0
    %2951 = vmatprep.subr.mxu0 0.0
    %2952 = vmatpush2.msra.mxu0 0.0
    %2953 = vmatprep.subr.mxu0 0.0
    %2954 = vmatpush2.msra.mxu0 0.0
    %2955 = vmatprep.subr.mxu0 0.0
    %2956 = vmatpush2.msra.mxu0 0.0
    %2957 = vmatprep.subr.mxu0 0.0
    %2958 = vmatpush2.msra.mxu0 0.0
    %2959 = vmatprep.subr.mxu0 0.0
    %2960 = vmatpush2.msra.mxu0 0.0
    %2961 = vmatprep.subr.mxu0 0.0
    %2962 = vmatpush2.msra.mxu0 0.0
    %2963 = vmatprep.subr.mxu0 0.0
    %2964 = vmatpush2.msra.mxu0 0.0
    %2965 = vmatprep.subr.mxu0 0.0
    %2966 = vmatpush2.msra.mxu0 0.0
    %2967 = vmatprep.subr.mxu0 0.0
    %2968 = vmatpush2.msra.mxu0 0.0
    %2969 = vmatprep.subr.mxu0 0.0
    %2970 = vmatpush2.msra.mxu0 0.0
    %2971 = vmatprep.subr.mxu0 0.0
    %2972 = vmatpush2.msra.mxu0 0.0
    %2973 = vmatprep.mubr.f32.mxu0 0.0
    %v2974 = vand.u32 %v1245, 4294901760
    %v2975 = vsub.f32 %v1245, %v2974
    %2976 = vmatmul.mubr.f32.gmra.mxu0 %v2975
    %v2977 = vpop.f32.mrf.mxu0
    %v2978 = vadd.f32 %v2904, %v2977
    %v2979 = vpop.f32.mrf.mxu0
    %2980 = vdwg.mxu0
    %2981 = vmatprep.subr.mxu0 0.0
    %2982 = vmatpush1.msra.mxu0 0.0
    %2983 = vmatprep.subr.mxu0 0.0
    %2984 = vmatpush1.msra.mxu0 0.0
    %2985 = vmatprep.subr.mxu0 0.0
    %2986 = vmatpush1.msra.mxu0 0.0
    %2987 = vmatprep.subr.mxu0 0.0
    %2988 = vmatpush1.msra.mxu0 0.0
    %2989 = vmatprep.subr.mxu0 0.0
    %2990 = vmatpush1.msra.mxu0 0.0
    %2991 = vmatprep.subr.mxu0 0.0
    %2992 = vmatpush1.msra.mxu0 0.0
    %2993 = vmatprep.subr.mxu0 0.0
    %2994 = vmatpush1.msra.mxu0 0.0
    %2995 = vmatprep.subr.mxu0 0.0
    %2996 = vmatpush1.msra.mxu0 0.0
    %2997 = vmatprep.subr.mxu0 0.0
    %2998 = vmatpush1.msra.mxu0 0.0
    %2999 = vmatprep.subr.mxu0 0.0
    %3000 = vmatpush1.msra.mxu0 0.0
    %3001 = vmatprep.subr.mxu0 0.0
    %3002 = vmatpush1.msra.mxu0 0.0
    %3003 = vmatprep.subr.mxu0 0.0
    %3004 = vmatpush1.msra.mxu0 0.0
    %3005 = vmatprep.subr.mxu0 0.0
    %3006 = vmatpush1.msra.mxu0 0.0
    %3007 = vmatprep.subr.mxu0 0.0
    %3008 = vmatpush1.msra.mxu0 0.0
    %3009 = vmatprep.subr.mxu0 0.0
    %3010 = vmatpush1.msra.mxu0 0.0
    %3011 = vmatprep.subr.mxu0 0.0
    %v3012 = vand.u32 %v2754, 4294901760
    %3013 = vmatpush1.msra.mxu0 %v3012
    %3014 = vmatprep.subr.mxu0 0.0
    %3015 = vmatpush2.msra.mxu0 0.0
    %3016 = vmatprep.subr.mxu0 0.0
    %3017 = vmatpush2.msra.mxu0 0.0
    %3018 = vmatprep.subr.mxu0 0.0
    %3019 = vmatpush2.msra.mxu0 0.0
    %3020 = vmatprep.subr.mxu0 0.0
    %3021 = vmatpush2.msra.mxu0 0.0
    %3022 = vmatprep.subr.mxu0 0.0
    %3023 = vmatpush2.msra.mxu0 0.0
    %3024 = vmatprep.subr.mxu0 0.0
    %3025 = vmatpush2.msra.mxu0 0.0
    %3026 = vmatprep.subr.mxu0 0.0
    %3027 = vmatpush2.msra.mxu0 0.0
    %3028 = vmatprep.subr.mxu0 0.0
    %3029 = vmatpush2.msra.mxu0 0.0
    %3030 = vmatprep.subr.mxu0 0.0
    %3031 = vmatpush2.msra.mxu0 0.0
    %3032 = vmatprep.subr.mxu0 0.0
    %3033 = vmatpush2.msra.mxu0 0.0
    %3034 = vmatprep.subr.mxu0 0.0
    %3035 = vmatpush2.msra.mxu0 0.0
    %3036 = vmatprep.subr.mxu0 0.0
    %3037 = vmatpush2.msra.mxu0 0.0
    %3038 = vmatprep.subr.mxu0 0.0
    %3039 = vmatpush2.msra.mxu0 0.0
    %3040 = vmatprep.subr.mxu0 0.0
    %3041 = vmatpush2.msra.mxu0 0.0
    %3042 = vmatprep.subr.mxu0 0.0
    %3043 = vmatpush2.msra.mxu0 0.0
    %3044 = vmatprep.subr.mxu0 0.0
    %3045 = vmatpush2.msra.mxu0 0.0
    %3046 = vmatprep.mubr.f32.mxu0 0.0
    %v3047 = vand.u32 %v1245, 4294901760
    %v3048 = vsub.f32 %v1245, %v3047
    %v3049 = vand.u32 %v3048, 4294901760
    %3050 = vmatmul.mubr.f32.gmra.mxu0 %v3049
    %v3051 = vpop.f32.mrf.mxu0
    %v3052 = vadd.f32 %v2978, %v3051
    %v3053 = vpop.f32.mrf.mxu0
    %3054 = vdwg.mxu0
    %3055 = vmatprep.subr.mxu0 0.0
    %3056 = vmatpush1.msra.mxu0 0.0
    %3057 = vmatprep.subr.mxu0 0.0
    %3058 = vmatpush1.msra.mxu0 0.0
    %3059 = vmatprep.subr.mxu0 0.0
    %3060 = vmatpush1.msra.mxu0 0.0
    %3061 = vmatprep.subr.mxu0 0.0
    %3062 = vmatpush1.msra.mxu0 0.0
    %3063 = vmatprep.subr.mxu0 0.0
    %3064 = vmatpush1.msra.mxu0 0.0
    %3065 = vmatprep.subr.mxu0 0.0
    %3066 = vmatpush1.msra.mxu0 0.0
    %3067 = vmatprep.subr.mxu0 0.0
    %3068 = vmatpush1.msra.mxu0 0.0
    %3069 = vmatprep.subr.mxu0 0.0
    %3070 = vmatpush1.msra.mxu0 0.0
    %3071 = vmatprep.subr.mxu0 0.0
    %3072 = vmatpush1.msra.mxu0 0.0
    %3073 = vmatprep.subr.mxu0 0.0
    %3074 = vmatpush1.msra.mxu0 0.0
    %3075 = vmatprep.subr.mxu0 0.0
    %3076 = vmatpush1.msra.mxu0 0.0
    %3077 = vmatprep.subr.mxu0 0.0
    %3078 = vmatpush1.msra.mxu0 0.0
    %3079 = vmatprep.subr.mxu0 0.0
    %3080 = vmatpush1.msra.mxu0 0.0
    %3081 = vmatprep.subr.mxu0 0.0
    %3082 = vmatpush1.msra.mxu0 0.0
    %3083 = vmatprep.subr.mxu0 0.0
    %3084 = vmatpush1.msra.mxu0 0.0
    %3085 = vmatprep.subr.mxu0 0.0
    %v3086 = vand.u32 %v2754, 4294901760
    %v3087 = vsub.f32 %v2754, %v3086
    %v3088 = vand.u32 %v3087, 4294901760
    %3089 = vmatpush1.msra.mxu0 %v3088
    %3090 = vmatprep.subr.mxu0 0.0
    %3091 = vmatpush2.msra.mxu0 0.0
    %3092 = vmatprep.subr.mxu0 0.0
    %3093 = vmatpush2.msra.mxu0 0.0
    %3094 = vmatprep.subr.mxu0 0.0
    %3095 = vmatpush2.msra.mxu0 0.0
    %3096 = vmatprep.subr.mxu0 0.0
    %3097 = vmatpush2.msra.mxu0 0.0
    %3098 = vmatprep.subr.mxu0 0.0
    %3099 = vmatpush2.msra.mxu0 0.0
    %3100 = vmatprep.subr.mxu0 0.0
    %3101 = vmatpush2.msra.mxu0 0.0
    %3102 = vmatprep.subr.mxu0 0.0
    %3103 = vmatpush2.msra.mxu0 0.0
    %3104 = vmatprep.subr.mxu0 0.0
    %3105 = vmatpush2.msra.mxu0 0.0
    %3106 = vmatprep.subr.mxu0 0.0
    %3107 = vmatpush2.msra.mxu0 0.0
    %3108 = vmatprep.subr.mxu0 0.0
    %3109 = vmatpush2.msra.mxu0 0.0
    %3110 = vmatprep.subr.mxu0 0.0
    %3111 = vmatpush2.msra.mxu0 0.0
    %3112 = vmatprep.subr.mxu0 0.0
    %3113 = vmatpush2.msra.mxu0 0.0
    %3114 = vmatprep.subr.mxu0 0.0
    %3115 = vmatpush2.msra.mxu0 0.0
    %3116 = vmatprep.subr.mxu0 0.0
    %3117 = vmatpush2.msra.mxu0 0.0
    %3118 = vmatprep.subr.mxu0 0.0
    %3119 = vmatpush2.msra.mxu0 0.0
    %3120 = vmatprep.subr.mxu0 0.0
    %3121 = vmatpush2.msra.mxu0 0.0
    %3122 = vmatprep.mubr.f32.mxu0 0.0
    %v3123 = vand.u32 %v1245, 4294901760
    %3124 = vmatmul.mubr.f32.gmra.mxu0 %v3123
    %v3125 = vpop.f32.mrf.mxu0
    %v3126 = vadd.f32 %v3052, %v3125
    %v3127 = vpop.f32.mrf.mxu0
    %3128 = vdwg.mxu0
    %3129 = vmatprep.subr.mxu0 0.0
    %3130 = vmatpush1.msra.mxu0 0.0
    %3131 = vmatprep.subr.mxu0 0.0
    %3132 = vmatpush1.msra.mxu0 0.0
    %3133 = vmatprep.subr.mxu0 0.0
    %3134 = vmatpush1.msra.mxu0 0.0
    %3135 = vmatprep.subr.mxu0 0.0
    %3136 = vmatpush1.msra.mxu0 0.0
    %3137 = vmatprep.subr.mxu0 0.0
    %3138 = vmatpush1.msra.mxu0 0.0
    %3139 = vmatprep.subr.mxu0 0.0
    %3140 = vmatpush1.msra.mxu0 0.0
    %3141 = vmatprep.subr.mxu0 0.0
    %3142 = vmatpush1.msra.mxu0 0.0
    %3143 = vmatprep.subr.mxu0 0.0
    %3144 = vmatpush1.msra.mxu0 0.0
    %3145 = vmatprep.subr.mxu0 0.0
    %3146 = vmatpush1.msra.mxu0 0.0
    %3147 = vmatprep.subr.mxu0 0.0
    %3148 = vmatpush1.msra.mxu0 0.0
    %3149 = vmatprep.subr.mxu0 0.0
    %3150 = vmatpush1.msra.mxu0 0.0
    %3151 = vmatprep.subr.mxu0 0.0
    %3152 = vmatpush1.msra.mxu0 0.0
    %3153 = vmatprep.subr.mxu0 0.0
    %3154 = vmatpush1.msra.mxu0 0.0
    %3155 = vmatprep.subr.mxu0 0.0
    %3156 = vmatpush1.msra.mxu0 0.0
    %3157 = vmatprep.subr.mxu0 0.0
    %3158 = vmatpush1.msra.mxu0 0.0
    %3159 = vmatprep.subr.mxu0 0.0
    %v3160 = vand.u32 %v2754, 4294901760
    %3161 = vmatpush1.msra.mxu0 %v3160
    %3162 = vmatprep.subr.mxu0 0.0
    %3163 = vmatpush2.msra.mxu0 0.0
    %3164 = vmatprep.subr.mxu0 0.0
    %3165 = vmatpush2.msra.mxu0 0.0
    %3166 = vmatprep.subr.mxu0 0.0
    %3167 = vmatpush2.msra.mxu0 0.0
    %3168 = vmatprep.subr.mxu0 0.0
    %3169 = vmatpush2.msra.mxu0 0.0
    %3170 = vmatprep.subr.mxu0 0.0
    %3171 = vmatpush2.msra.mxu0 0.0
    %3172 = vmatprep.subr.mxu0 0.0
    %3173 = vmatpush2.msra.mxu0 0.0
    %3174 = vmatprep.subr.mxu0 0.0
    %3175 = vmatpush2.msra.mxu0 0.0
    %3176 = vmatprep.subr.mxu0 0.0
    %3177 = vmatpush2.msra.mxu0 0.0
    %3178 = vmatprep.subr.mxu0 0.0
    %3179 = vmatpush2.msra.mxu0 0.0
    %3180 = vmatprep.subr.mxu0 0.0
    %3181 = vmatpush2.msra.mxu0 0.0
    %3182 = vmatprep.subr.mxu0 0.0
    %3183 = vmatpush2.msra.mxu0 0.0
    %3184 = vmatprep.subr.mxu0 0.0
    %3185 = vmatpush2.msra.mxu0 0.0
    %3186 = vmatprep.subr.mxu0 0.0
    %3187 = vmatpush2.msra.mxu0 0.0
    %3188 = vmatprep.subr.mxu0 0.0
    %3189 = vmatpush2.msra.mxu0 0.0
    %3190 = vmatprep.subr.mxu0 0.0
    %3191 = vmatpush2.msra.mxu0 0.0
    %3192 = vmatprep.subr.mxu0 0.0
    %3193 = vmatpush2.msra.mxu0 0.0
    %3194 = vmatprep.mubr.f32.mxu0 0.0
    %v3195 = vand.u32 %v1245, 4294901760
    %3196 = vmatmul.mubr.f32.gmra.mxu0 %v3195
    %v3197 = vpop.f32.mrf.mxu0
    %v3198 = vadd.f32 %v3126, %v3197
    %v3199 = vpop.f32.mrf.mxu0
    %3200 = vdwg.mxu0
    %3202 = vrot.lane.b32.xlu0 %v2750, 112
    %v3203 = vpop.permute.xlu0 %3202
    %v3204 = vsel %vm1243, %v3203, 0
    %3206 = vmatprep.subr.mxu0 0.0
    %3207 = vmatpush1.msra.mxu0 0.0
    %3208 = vmatprep.subr.mxu0 0.0
    %3209 = vmatpush1.msra.mxu0 0.0
    %3210 = vmatprep.subr.mxu0 0.0
    %3211 = vmatpush1.msra.mxu0 0.0
    %3212 = vmatprep.subr.mxu0 0.0
    %3213 = vmatpush1.msra.mxu0 0.0
    %3214 = vmatprep.subr.mxu0 0.0
    %3215 = vmatpush1.msra.mxu0 0.0
    %3216 = vmatprep.subr.mxu0 0.0
    %3217 = vmatpush1.msra.mxu0 0.0
    %3218 = vmatprep.subr.mxu0 0.0
    %3219 = vmatpush1.msra.mxu0 0.0
    %3220 = vmatprep.subr.mxu0 0.0
    %3221 = vmatpush1.msra.mxu0 0.0
    %3222 = vmatprep.subr.mxu0 0.0
    %3223 = vmatpush1.msra.mxu0 0.0
    %3224 = vmatprep.subr.mxu0 0.0
    %3225 = vmatpush1.msra.mxu0 0.0
    %3226 = vmatprep.subr.mxu0 0.0
    %3227 = vmatpush1.msra.mxu0 0.0
    %3228 = vmatprep.subr.mxu0 0.0
    %3229 = vmatpush1.msra.mxu0 0.0
    %3230 = vmatprep.subr.mxu0 0.0
    %3231 = vmatpush1.msra.mxu0 0.0
    %3232 = vmatprep.subr.mxu0 0.0
    %3233 = vmatpush1.msra.mxu0 0.0
    %3234 = vmatprep.subr.mxu0 0.0
    %3235 = vmatpush1.msra.mxu0 0.0
    %3236 = vmatprep.subr.mxu0 0.0
    %v3237 = vand.u32 %v2753, 4294901760
    %3238 = vmatpush1.msra.mxu0 %v3237
    %3239 = vmatprep.subr.mxu0 0.0
    %3240 = vmatpush2.msra.mxu0 0.0
    %3241 = vmatprep.subr.mxu0 0.0
    %3242 = vmatpush2.msra.mxu0 0.0
    %3243 = vmatprep.subr.mxu0 0.0
    %3244 = vmatpush2.msra.mxu0 0.0
    %3245 = vmatprep.subr.mxu0 0.0
    %3246 = vmatpush2.msra.mxu0 0.0
    %3247 = vmatprep.subr.mxu0 0.0
    %3248 = vmatpush2.msra.mxu0 0.0
    %3249 = vmatprep.subr.mxu0 0.0
    %3250 = vmatpush2.msra.mxu0 0.0
    %3251 = vmatprep.subr.mxu0 0.0
    %3252 = vmatpush2.msra.mxu0 0.0
    %3253 = vmatprep.subr.mxu0 0.0
    %3254 = vmatpush2.msra.mxu0 0.0
    %3255 = vmatprep.subr.mxu0 0.0
    %3256 = vmatpush2.msra.mxu0 0.0
    %3257 = vmatprep.subr.mxu0 0.0
    %3258 = vmatpush2.msra.mxu0 0.0
    %3259 = vmatprep.subr.mxu0 0.0
    %3260 = vmatpush2.msra.mxu0 0.0
    %3261 = vmatprep.subr.mxu0 0.0
    %3262 = vmatpush2.msra.mxu0 0.0
    %3263 = vmatprep.subr.mxu0 0.0
    %3264 = vmatpush2.msra.mxu0 0.0
    %3265 = vmatprep.subr.mxu0 0.0
    %3266 = vmatpush2.msra.mxu0 0.0
    %3267 = vmatprep.subr.mxu0 0.0
    %3268 = vmatpush2.msra.mxu0 0.0
    %3269 = vmatprep.subr.mxu0 0.0
    %3270 = vmatpush2.msra.mxu0 0.0
    %3271 = vmatprep.mubr.f32.mxu0 0.0
    %v3272 = vand.u32 %v3204, 4294901760
    %v3273 = vsub.f32 %v3204, %v3272
    %v3274 = vand.u32 %v3273, 4294901760
    %v3275 = vsub.f32 %v3273, %v3274
    %v3276 = vand.u32 %v3275, 4294901760
    %3277 = vmatmul.mubr.f32.gmra.mxu0 %v3276
    %v3278 = vpop.f32.mrf.mxu0
    %v3279 = vadd.f32 %v3198, %v3278
    %v3280 = vpop.f32.mrf.mxu0
    %3281 = vdwg.mxu0
    %3282 = vmatprep.subr.mxu0 0.0
    %3283 = vmatpush1.msra.mxu0 0.0
    %3284 = vmatprep.subr.mxu0 0.0
    %3285 = vmatpush1.msra.mxu0 0.0
    %3286 = vmatprep.subr.mxu0 0.0
    %3287 = vmatpush1.msra.mxu0 0.0
    %3288 = vmatprep.subr.mxu0 0.0
    %3289 = vmatpush1.msra.mxu0 0.0
    %3290 = vmatprep.subr.mxu0 0.0
    %3291 = vmatpush1.msra.mxu0 0.0
    %3292 = vmatprep.subr.mxu0 0.0
    %3293 = vmatpush1.msra.mxu0 0.0
    %3294 = vmatprep.subr.mxu0 0.0
    %3295 = vmatpush1.msra.mxu0 0.0
    %3296 = vmatprep.subr.mxu0 0.0
    %3297 = vmatpush1.msra.mxu0 0.0
    %3298 = vmatprep.subr.mxu0 0.0
    %3299 = vmatpush1.msra.mxu0 0.0
    %3300 = vmatprep.subr.mxu0 0.0
    %3301 = vmatpush1.msra.mxu0 0.0
    %3302 = vmatprep.subr.mxu0 0.0
    %3303 = vmatpush1.msra.mxu0 0.0
    %3304 = vmatprep.subr.mxu0 0.0
    %3305 = vmatpush1.msra.mxu0 0.0
    %3306 = vmatprep.subr.mxu0 0.0
    %3307 = vmatpush1.msra.mxu0 0.0
    %3308 = vmatprep.subr.mxu0 0.0
    %3309 = vmatpush1.msra.mxu0 0.0
    %3310 = vmatprep.subr.mxu0 0.0
    %3311 = vmatpush1.msra.mxu0 0.0
    %3312 = vmatprep.subr.mxu0 0.0
    %v3313 = vand.u32 %v2753, 4294901760
    %v3314 = vsub.f32 %v2753, %v3313
    %v3315 = vand.u32 %v3314, 4294901760
    %v3316 = vsub.f32 %v3314, %v3315
    %v3317 = vand.u32 %v3316, 4294901760
    %3318 = vmatpush1.msra.mxu0 %v3317
    %3319 = vmatprep.subr.mxu0 0.0
    %3320 = vmatpush2.msra.mxu0 0.0
    %3321 = vmatprep.subr.mxu0 0.0
    %3322 = vmatpush2.msra.mxu0 0.0
    %3323 = vmatprep.subr.mxu0 0.0
    %3324 = vmatpush2.msra.mxu0 0.0
    %3325 = vmatprep.subr.mxu0 0.0
    %3326 = vmatpush2.msra.mxu0 0.0
    %3327 = vmatprep.subr.mxu0 0.0
    %3328 = vmatpush2.msra.mxu0 0.0
    %3329 = vmatprep.subr.mxu0 0.0
    %3330 = vmatpush2.msra.mxu0 0.0
    %3331 = vmatprep.subr.mxu0 0.0
    %3332 = vmatpush2.msra.mxu0 0.0
    %3333 = vmatprep.subr.mxu0 0.0
    %3334 = vmatpush2.msra.mxu0 0.0
    %3335 = vmatprep.subr.mxu0 0.0
    %3336 = vmatpush2.msra.mxu0 0.0
    %3337 = vmatprep.subr.mxu0 0.0
    %3338 = vmatpush2.msra.mxu0 0.0
    %3339 = vmatprep.subr.mxu0 0.0
    %3340 = vmatpush2.msra.mxu0 0.0
    %3341 = vmatprep.subr.mxu0 0.0
    %3342 = vmatpush2.msra.mxu0 0.0
    %3343 = vmatprep.subr.mxu0 0.0
    %3344 = vmatpush2.msra.mxu0 0.0
    %3345 = vmatprep.subr.mxu0 0.0
    %3346 = vmatpush2.msra.mxu0 0.0
    %3347 = vmatprep.subr.mxu0 0.0
    %3348 = vmatpush2.msra.mxu0 0.0
    %3349 = vmatprep.subr.mxu0 0.0
    %3350 = vmatpush2.msra.mxu0 0.0
    %3351 = vmatprep.mubr.f32.mxu0 0.0
    %v3352 = vand.u32 %v3204, 4294901760
    %3353 = vmatmul.mubr.f32.gmra.mxu0 %v3352
    %v3354 = vpop.f32.mrf.mxu0
    %v3355 = vadd.f32 %v3279, %v3354
    %v3356 = vpop.f32.mrf.mxu0
    %3357 = vdwg.mxu0
    %3358 = vmatprep.subr.mxu0 0.0
    %3359 = vmatpush1.msra.mxu0 0.0
    %3360 = vmatprep.subr.mxu0 0.0
    %3361 = vmatpush1.msra.mxu0 0.0
    %3362 = vmatprep.subr.mxu0 0.0
    %3363 = vmatpush1.msra.mxu0 0.0
    %3364 = vmatprep.subr.mxu0 0.0
    %3365 = vmatpush1.msra.mxu0 0.0
    %3366 = vmatprep.subr.mxu0 0.0
    %3367 = vmatpush1.msra.mxu0 0.0
    %3368 = vmatprep.subr.mxu0 0.0
    %3369 = vmatpush1.msra.mxu0 0.0
    %3370 = vmatprep.subr.mxu0 0.0
    %3371 = vmatpush1.msra.mxu0 0.0
    %3372 = vmatprep.subr.mxu0 0.0
    %3373 = vmatpush1.msra.mxu0 0.0
    %3374 = vmatprep.subr.mxu0 0.0
    %3375 = vmatpush1.msra.mxu0 0.0
    %3376 = vmatprep.subr.mxu0 0.0
    %3377 = vmatpush1.msra.mxu0 0.0
    %3378 = vmatprep.subr.mxu0 0.0
    %3379 = vmatpush1.msra.mxu0 0.0
    %3380 = vmatprep.subr.mxu0 0.0
    %3381 = vmatpush1.msra.mxu0 0.0
    %3382 = vmatprep.subr.mxu0 0.0
    %3383 = vmatpush1.msra.mxu0 0.0
    %3384 = vmatprep.subr.mxu0 0.0
    %3385 = vmatpush1.msra.mxu0 0.0
    %3386 = vmatprep.subr.mxu0 0.0
    %3387 = vmatpush1.msra.mxu0 0.0
    %3388 = vmatprep.subr.mxu0 0.0
    %v3389 = vand.u32 %v2753, 4294901760
    %v3390 = vsub.f32 %v2753, %v3389
    %3391 = vmatpush1.msra.mxu0 %v3390
    %3392 = vmatprep.subr.mxu0 0.0
    %3393 = vmatpush2.msra.mxu0 0.0
    %3394 = vmatprep.subr.mxu0 0.0
    %3395 = vmatpush2.msra.mxu0 0.0
    %3396 = vmatprep.subr.mxu0 0.0
    %3397 = vmatpush2.msra.mxu0 0.0
    %3398 = vmatprep.subr.mxu0 0.0
    %3399 = vmatpush2.msra.mxu0 0.0
    %3400 = vmatprep.subr.mxu0 0.0
    %3401 = vmatpush2.msra.mxu0 0.0
    %3402 = vmatprep.subr.mxu0 0.0
    %3403 = vmatpush2.msra.mxu0 0.0
    %3404 = vmatprep.subr.mxu0 0.0
    %3405 = vmatpush2.msra.mxu0 0.0
    %3406 = vmatprep.subr.mxu0 0.0
    %3407 = vmatpush2.msra.mxu0 0.0
    %3408 = vmatprep.subr.mxu0 0.0
    %3409 = vmatpush2.msra.mxu0 0.0
    %3410 = vmatprep.subr.mxu0 0.0
    %3411 = vmatpush2.msra.mxu0 0.0
    %3412 = vmatprep.subr.mxu0 0.0
    %3413 = vmatpush2.msra.mxu0 0.0
    %3414 = vmatprep.subr.mxu0 0.0
    %3415 = vmatpush2.msra.mxu0 0.0
    %3416 = vmatprep.subr.mxu0 0.0
    %3417 = vmatpush2.msra.mxu0 0.0
    %3418 = vmatprep.subr.mxu0 0.0
    %3419 = vmatpush2.msra.mxu0 0.0
    %3420 = vmatprep.subr.mxu0 0.0
    %3421 = vmatpush2.msra.mxu0 0.0
    %3422 = vmatprep.subr.mxu0 0.0
    %3423 = vmatpush2.msra.mxu0 0.0
    %3424 = vmatprep.mubr.f32.mxu0 0.0
    %v3425 = vand.u32 %v3204, 4294901760
    %v3426 = vsub.f32 %v3204, %v3425
    %3427 = vmatmul.mubr.f32.gmra.mxu0 %v3426
    %v3428 = vpop.f32.mrf.mxu0
    %v3429 = vadd.f32 %v3355, %v3428
    %v3430 = vpop.f32.mrf.mxu0
    %3431 = vdwg.mxu0
    %3432 = vmatprep.subr.mxu0 0.0
    %3433 = vmatpush1.msra.mxu0 0.0
    %3434 = vmatprep.subr.mxu0 0.0
    %3435 = vmatpush1.msra.mxu0 0.0
    %3436 = vmatprep.subr.mxu0 0.0
    %3437 = vmatpush1.msra.mxu0 0.0
    %3438 = vmatprep.subr.mxu0 0.0
    %3439 = vmatpush1.msra.mxu0 0.0
    %3440 = vmatprep.subr.mxu0 0.0
    %3441 = vmatpush1.msra.mxu0 0.0
    %3442 = vmatprep.subr.mxu0 0.0
    %3443 = vmatpush1.msra.mxu0 0.0
    %3444 = vmatprep.subr.mxu0 0.0
    %3445 = vmatpush1.msra.mxu0 0.0
    %3446 = vmatprep.subr.mxu0 0.0
    %3447 = vmatpush1.msra.mxu0 0.0
    %3448 = vmatprep.subr.mxu0 0.0
    %3449 = vmatpush1.msra.mxu0 0.0
    %3450 = vmatprep.subr.mxu0 0.0
    %3451 = vmatpush1.msra.mxu0 0.0
    %3452 = vmatprep.subr.mxu0 0.0
    %3453 = vmatpush1.msra.mxu0 0.0
    %3454 = vmatprep.subr.mxu0 0.0
    %3455 = vmatpush1.msra.mxu0 0.0
    %3456 = vmatprep.subr.mxu0 0.0
    %3457 = vmatpush1.msra.mxu0 0.0
    %3458 = vmatprep.subr.mxu0 0.0
    %3459 = vmatpush1.msra.mxu0 0.0
    %3460 = vmatprep.subr.mxu0 0.0
    %3461 = vmatpush1.msra.mxu0 0.0
    %3462 = vmatprep.subr.mxu0 0.0
    %v3463 = vand.u32 %v2753, 4294901760
    %3464 = vmatpush1.msra.mxu0 %v3463
    %3465 = vmatprep.subr.mxu0 0.0
    %3466 = vmatpush2.msra.mxu0 0.0
    %3467 = vmatprep.subr.mxu0 0.0
    %3468 = vmatpush2.msra.mxu0 0.0
    %3469 = vmatprep.subr.mxu0 0.0
    %3470 = vmatpush2.msra.mxu0 0.0
    %3471 = vmatprep.subr.mxu0 0.0
    %3472 = vmatpush2.msra.mxu0 0.0
    %3473 = vmatprep.subr.mxu0 0.0
    %3474 = vmatpush2.msra.mxu0 0.0
    %3475 = vmatprep.subr.mxu0 0.0
    %3476 = vmatpush2.msra.mxu0 0.0
    %3477 = vmatprep.subr.mxu0 0.0
    %3478 = vmatpush2.msra.mxu0 0.0
    %3479 = vmatprep.subr.mxu0 0.0
    %3480 = vmatpush2.msra.mxu0 0.0
    %3481 = vmatprep.subr.mxu0 0.0
    %3482 = vmatpush2.msra.mxu0 0.0
    %3483 = vmatprep.subr.mxu0 0.0
    %3484 = vmatpush2.msra.mxu0 0.0
    %3485 = vmatprep.subr.mxu0 0.0
    %3486 = vmatpush2.msra.mxu0 0.0
    %3487 = vmatprep.subr.mxu0 0.0
    %3488 = vmatpush2.msra.mxu0 0.0
    %3489 = vmatprep.subr.mxu0 0.0
    %3490 = vmatpush2.msra.mxu0 0.0
    %3491 = vmatprep.subr.mxu0 0.0
    %3492 = vmatpush2.msra.mxu0 0.0
    %3493 = vmatprep.subr.mxu0 0.0
    %3494 = vmatpush2.msra.mxu0 0.0
    %3495 = vmatprep.subr.mxu0 0.0
    %3496 = vmatpush2.msra.mxu0 0.0
    %3497 = vmatprep.mubr.f32.mxu0 0.0
    %v3498 = vand.u32 %v3204, 4294901760
    %v3499 = vsub.f32 %v3204, %v3498
    %v3500 = vand.u32 %v3499, 4294901760
    %3501 = vmatmul.mubr.f32.gmra.mxu0 %v3500
    %v3502 = vpop.f32.mrf.mxu0
    %v3503 = vadd.f32 %v3429, %v3502
    %v3504 = vpop.f32.mrf.mxu0
    %3505 = vdwg.mxu0
    %3506 = vmatprep.subr.mxu0 0.0
    %3507 = vmatpush1.msra.mxu0 0.0
    %3508 = vmatprep.subr.mxu0 0.0
    %3509 = vmatpush1.msra.mxu0 0.0
    %3510 = vmatprep.subr.mxu0 0.0
    %3511 = vmatpush1.msra.mxu0 0.0
    %3512 = vmatprep.subr.mxu0 0.0
    %3513 = vmatpush1.msra.mxu0 0.0
    %3514 = vmatprep.subr.mxu0 0.0
    %3515 = vmatpush1.msra.mxu0 0.0
    %3516 = vmatprep.subr.mxu0 0.0
    %3517 = vmatpush1.msra.mxu0 0.0
    %3518 = vmatprep.subr.mxu0 0.0
    %3519 = vmatpush1.msra.mxu0 0.0
    %3520 = vmatprep.subr.mxu0 0.0
    %3521 = vmatpush1.msra.mxu0 0.0
    %3522 = vmatprep.subr.mxu0 0.0
    %3523 = vmatpush1.msra.mxu0 0.0
    %3524 = vmatprep.subr.mxu0 0.0
    %3525 = vmatpush1.msra.mxu0 0.0
    %3526 = vmatprep.subr.mxu0 0.0
    %3527 = vmatpush1.msra.mxu0 0.0
    %3528 = vmatprep.subr.mxu0 0.0
    %3529 = vmatpush1.msra.mxu0 0.0
    %3530 = vmatprep.subr.mxu0 0.0
    %3531 = vmatpush1.msra.mxu0 0.0
    %3532 = vmatprep.subr.mxu0 0.0
    %3533 = vmatpush1.msra.mxu0 0.0
    %3534 = vmatprep.subr.mxu0 0.0
    %3535 = vmatpush1.msra.mxu0 0.0
    %3536 = vmatprep.subr.mxu0 0.0
    %v3537 = vand.u32 %v2753, 4294901760
    %v3538 = vsub.f32 %v2753, %v3537
    %v3539 = vand.u32 %v3538, 4294901760
    %3540 = vmatpush1.msra.mxu0 %v3539
    %3541 = vmatprep.subr.mxu0 0.0
    %3542 = vmatpush2.msra.mxu0 0.0
    %3543 = vmatprep.subr.mxu0 0.0
    %3544 = vmatpush2.msra.mxu0 0.0
    %3545 = vmatprep.subr.mxu0 0.0
    %3546 = vmatpush2.msra.mxu0 0.0
    %3547 = vmatprep.subr.mxu0 0.0
    %3548 = vmatpush2.msra.mxu0 0.0
    %3549 = vmatprep.subr.mxu0 0.0
    %3550 = vmatpush2.msra.mxu0 0.0
    %3551 = vmatprep.subr.mxu0 0.0
    %3552 = vmatpush2.msra.mxu0 0.0
    %3553 = vmatprep.subr.mxu0 0.0
    %3554 = vmatpush2.msra.mxu0 0.0
    %3555 = vmatprep.subr.mxu0 0.0
    %3556 = vmatpush2.msra.mxu0 0.0
    %3557 = vmatprep.subr.mxu0 0.0
    %3558 = vmatpush2.msra.mxu0 0.0
    %3559 = vmatprep.subr.mxu0 0.0
    %3560 = vmatpush2.msra.mxu0 0.0
    %3561 = vmatprep.subr.mxu0 0.0
    %3562 = vmatpush2.msra.mxu0 0.0
    %3563 = vmatprep.subr.mxu0 0.0
    %3564 = vmatpush2.msra.mxu0 0.0
    %3565 = vmatprep.subr.mxu0 0.0
    %3566 = vmatpush2.msra.mxu0 0.0
    %3567 = vmatprep.subr.mxu0 0.0
    %3568 = vmatpush2.msra.mxu0 0.0
    %3569 = vmatprep.subr.mxu0 0.0
    %3570 = vmatpush2.msra.mxu0 0.0
    %3571 = vmatprep.subr.mxu0 0.0
    %3572 = vmatpush2.msra.mxu0 0.0
    %3573 = vmatprep.mubr.f32.mxu0 0.0
    %v3574 = vand.u32 %v3204, 4294901760
    %3575 = vmatmul.mubr.f32.gmra.mxu0 %v3574
    %v3576 = vpop.f32.mrf.mxu0
    %v3577 = vadd.f32 %v3503, %v3576
    %v3578 = vpop.f32.mrf.mxu0
    %3579 = vdwg.mxu0
    %3580 = vmatprep.subr.mxu0 0.0
    %3581 = vmatpush1.msra.mxu0 0.0
    %3582 = vmatprep.subr.mxu0 0.0
    %3583 = vmatpush1.msra.mxu0 0.0
    %3584 = vmatprep.subr.mxu0 0.0
    %3585 = vmatpush1.msra.mxu0 0.0
    %3586 = vmatprep.subr.mxu0 0.0
    %3587 = vmatpush1.msra.mxu0 0.0
    %3588 = vmatprep.subr.mxu0 0.0
    %3589 = vmatpush1.msra.mxu0 0.0
    %3590 = vmatprep.subr.mxu0 0.0
    %3591 = vmatpush1.msra.mxu0 0.0
    %3592 = vmatprep.subr.mxu0 0.0
    %3593 = vmatpush1.msra.mxu0 0.0
    %3594 = vmatprep.subr.mxu0 0.0
    %3595 = vmatpush1.msra.mxu0 0.0
    %3596 = vmatprep.subr.mxu0 0.0
    %3597 = vmatpush1.msra.mxu0 0.0
    %3598 = vmatprep.subr.mxu0 0.0
    %3599 = vmatpush1.msra.mxu0 0.0
    %3600 = vmatprep.subr.mxu0 0.0
    %3601 = vmatpush1.msra.mxu0 0.0
    %3602 = vmatprep.subr.mxu0 0.0
    %3603 = vmatpush1.msra.mxu0 0.0
    %3604 = vmatprep.subr.mxu0 0.0
    %3605 = vmatpush1.msra.mxu0 0.0
    %3606 = vmatprep.subr.mxu0 0.0
    %3607 = vmatpush1.msra.mxu0 0.0
    %3608 = vmatprep.subr.mxu0 0.0
    %3609 = vmatpush1.msra.mxu0 0.0
    %3610 = vmatprep.subr.mxu0 0.0
    %v3611 = vand.u32 %v2753, 4294901760
    %3612 = vmatpush1.msra.mxu0 %v3611
    %3613 = vmatprep.subr.mxu0 0.0
    %3614 = vmatpush2.msra.mxu0 0.0
    %3615 = vmatprep.subr.mxu0 0.0
    %3616 = vmatpush2.msra.mxu0 0.0
    %3617 = vmatprep.subr.mxu0 0.0
    %3618 = vmatpush2.msra.mxu0 0.0
    %3619 = vmatprep.subr.mxu0 0.0
    %3620 = vmatpush2.msra.mxu0 0.0
    %3621 = vmatprep.subr.mxu0 0.0
    %3622 = vmatpush2.msra.mxu0 0.0
    %3623 = vmatprep.subr.mxu0 0.0
    %3624 = vmatpush2.msra.mxu0 0.0
    %3625 = vmatprep.subr.mxu0 0.0
    %3626 = vmatpush2.msra.mxu0 0.0
    %3627 = vmatprep.subr.mxu0 0.0
    %3628 = vmatpush2.msra.mxu0 0.0
    %3629 = vmatprep.subr.mxu0 0.0
    %3630 = vmatpush2.msra.mxu0 0.0
    %3631 = vmatprep.subr.mxu0 0.0
    %3632 = vmatpush2.msra.mxu0 0.0
    %3633 = vmatprep.subr.mxu0 0.0
    %3634 = vmatpush2.msra.mxu0 0.0
    %3635 = vmatprep.subr.mxu0 0.0
    %3636 = vmatpush2.msra.mxu0 0.0
    %3637 = vmatprep.subr.mxu0 0.0
    %3638 = vmatpush2.msra.mxu0 0.0
    %3639 = vmatprep.subr.mxu0 0.0
    %3640 = vmatpush2.msra.mxu0 0.0
    %3641 = vmatprep.subr.mxu0 0.0
    %3642 = vmatpush2.msra.mxu0 0.0
    %3643 = vmatprep.subr.mxu0 0.0
    %3644 = vmatpush2.msra.mxu0 0.0
    %3645 = vmatprep.mubr.f32.mxu0 0.0
    %v3646 = vand.u32 %v3204, 4294901760
    %3647 = vmatmul.mubr.f32.gmra.mxu0 %v3646
    %v3648 = vpop.f32.mrf.mxu0
    %v3649 = vadd.f32 %v3577, %v3648
    %v3650 = vpop.f32.mrf.mxu0
    %3651 = vdwg.mxu0
    %v3652 = vld [vmem:[%s12] sm:$0x1]
    %v3654 = vlaneseq
    %v3655 = vshrl.u32 %v3654, 7
    %v3656 = vsub.s32 0, %v3655
    %v3657 = vrot.slane %v3652, %v3656
    %v3659 = vadd.f32 %v3649, %v3657
    %v3660 = vmax.f32 %v3659, 0.0
    %v3661 = vadd.f32 %v1235, %v2750
    %v3662 = vadd.f32 %v3661, %v3660
    %3663 = vst [vmem:[#allocation19] sm:$0xff] %v3662
    // Predicated region
    $region94: #{tpu_custom_call.1} parent=1 // pred_check
      _
    $region95: #{tpu_custom_call.1} parent=1 // pred_check_branch
      %3665 = sbr.rel (0) target = $region97
    $region96: #{tpu_custom_call.1} parent=1 // pred_region
      %s3667 = ssub.s32 128, 128
      %3668 = vsyncadd [#allocation4], %s3667
      %s3670 = sshll.u32 [#allocation19], 4
      %s3671 = int_to_ptr.vmem [resolvable:$true] %s3670
      %3673 = dma.vmem_to_hbm [thread:$0]  %s3671, 128, %s13, [#allocation4]
    $region97: #{tpu_custom_call.1} parent=1 // pred_fallthru
      _
    // Predicated region
    $region98: #{tpu_custom_call.1} parent=1 // pred_check
      _
    $region99: #{tpu_custom_call.1} parent=1 // pred_check_branch
      %3675 = sbr.rel (0) target = $region101
    $region100: #{tpu_custom_call.1} parent=1 // pred_region
      %3676 = dma.done [#allocation4], 128
    $region101: #{tpu_custom_call.1} parent=1 // pred_fallthru
      _
    %3677 = vsyncpa [#allocation3], 1
    %3678 = vsyncpa [#allocation6], 1
    %3679 = vsyncpa [#allocation9], 1
    %3680 = vsyncpa [#allocation12], 1
    %3681 = vsyncpa [#allocation15], 1
    %3682 = vsyncpa [#allocation18], 1
    %3683 = vsyncpa [#allocation4], 1

</llo_original>
